<compile_context>
chip_gen: v6e
topology: v6e:2x2x1
jax: 0.10.0
libtpu: 0.0.40
codegen_flags: <defaults>
</compile_context>

<pallas_src>
import jax
import jax.numpy as jnp
from jax import lax
from jax.experimental import pallas as pl
from jax.experimental.pallas import tpu as pltpu

PAD = 3     # 'same' padding of the folded 7x7 kernel
KEFF = 7    # effective kernel size after folding (7x7 superset of 5x5/3x3/identity)
LPAD = 8    # left column pad inside the scratch: multiple of 8 so the interior
            # copy and all per-tap column windows are sublane-tile aligned


def _round_up(a: int, m: int) -> int:
    return (a + m - 1) // m * m


def _ppeg_kernel(x_ref, w_ref, b_ref, out_ref, xpad_ref):
    # x_ref:    (BBLK, H, W, C)   unpadded feature images for this grid step
    # w_ref:    (49, C)           folded 7x7 kernel, flattened (kh*7 + kw, c)
    # b_ref:    (1, C)            folded bias (b7 + b5 + b3)
    # out_ref:  (BBLK, H, W, C)
    # xpad_ref: VMEM scratch (H + 2*PAD, Wpad, C), Wpad = round_up(LPAD+W+PAD, 8)
    bblk, H, W, C = out_ref.shape
    Hp, Wpad, _ = xpad_ref.shape
    zdt = xpad_ref.dtype

    # --- zero only the halo strips (aligned stores); the interior is overwritten.
    xpad_ref[0:PAD, :, :] = jnp.zeros((PAD, Wpad, C), zdt)
    xpad_ref[PAD + H:Hp, :, :] = jnp.zeros((Hp - PAD - H, Wpad, C), zdt)
    xpad_ref[PAD:PAD + H, 0:LPAD, :] = jnp.zeros((H, LPAD, C), zdt)
    xpad_ref[PAD:PAD + H, LPAD + W:Wpad, :] = jnp.zeros((H, Wpad - LPAD - W, C), zdt)

    # Single bias broadcast, hoisted out of the per-image / tap loops.
    bias = jnp.broadcast_to(b_ref[0][None, None, :], (H, W, C)).astype(jnp.float32)

    # Static unroll over the images of this step; each image's accumulator dies
    # at its out_ref store, so live vreg ranges stay bounded.
    for b in range(bblk):
        # Interior copy: column offset LPAD (multiple of 8) -> unmasked stores.
        xpad_ref[PAD:PAD + H, LPAD:LPAD + W, :] = x_ref[b]

        xfull = xpad_ref[...]          # one aligned load of the padded slab
        acc = bias
        for kw in range(KEFF):
            # Rotate the kw-offset column window onto the tile-aligned interior
            # columns (XLU work, effectively free in this VPU-bound kernel),
            # then slice the aligned window.  No wrap: Wpad >= LPAD + W + PAD.
            shift = (PAD - kw) % Wpad
            rolled = xfull if shift == 0 else pltpu.roll(xfull, shift=shift, axis=1)
            slab = rolled[:, LPAD:LPAD + W, :]             # (Hp, W, C)
            for kh in range(KEFF):
                tap = slab[kh:kh + H]                       # (H, W, C), leading-dim slice
                w_tap = w_ref[kh * KEFF + kw, :].astype(jnp.float32)
                acc = acc + tap.astype(jnp.float32) * w_tap[None, None, :]
        out_ref[b] = acc.astype(out_ref.dtype)


def _pick_images_per_step(batch: int, per_image_bytes: int,
                          budget_bytes: int = 8 << 20) -> int:
    """Largest divisor of `batch` (<= 8) whose double-buffered in+out blocks fit
    the budget, while keeping >= 2 grid steps when the batch allows (so v7x's
    two TensorCores both get work; on 1-TC v5e/v6e batching amortizes the
    ~0.35us per-step overhead)."""
    best = 1
    for cand in range(1, min(batch, 8) + 1):
        if batch % cand:
            continue
        if 4 * cand * per_image_bytes > budget_bytes:   # 2 buffers x (in + out)
            continue
        if batch >= 2 and batch // cand < 2:
            continue
        best = cand
    return best


def ppeg_conv_nhwc(feat, w7, b7, w5, b5, w3, b3, images_per_step=None):
    """feat: (B, H, W, C).  Returns dwconv7(x) + x + dwconv5(x) + dwconv3(x)
    (all depthwise, 'same' padding), computed with one folded 7x7 kernel."""
    B, H, W, C = feat.shape
    Hp = H + 2 * PAD
    Wpad = _round_up(LPAD + W + PAD, 8)

    # Fold 7x7 + centre-embedded 5x5 + 3x3 + identity into one 7x7 kernel, and
    # the three biases into one; flatten to (49, C) so each tap is a lane row.
    w_eff = w7
    w_eff = w_eff.at[1:6, 1:6, :].add(w5)
    w_eff = w_eff.at[2:5, 2:5, :].add(w3)
    w_eff = w_eff.at[3, 3, :].add(1.0)          # identity (cnn_feat) term
    w_eff = w_eff.reshape(KEFF * KEFF, C)
    b_eff = (b7 + b5 + b3).reshape(1, C)

    itemsize = feat.dtype.itemsize
    per_img = H * W * C * itemsize
    bblk = images_per_step or _pick_images_per_step(B, per_img)
    assert B % bblk == 0

    # Explicit VMEM budget (v7x has only 64 MiB physical VMEM; default scoped
    # limit is 32 MiB).  For bigger shapes switch to the H-tiled halo variant.
    need = 4 * bblk * per_img + Hp * Wpad * C * itemsize + (KEFF * KEFF + 1) * C * 4
    assert need < (40 << 20), (
        "per-step VMEM footprint too large; use the H-tiled halo variant")
    vmem_limit = int(min(max(2 * need, 16 << 20), 64 << 20))

    return pl.pallas_call(
        _ppeg_kernel,
        out_shape=jax.ShapeDtypeStruct((B, H, W, C), feat.dtype),
        grid=(B // bblk,),
        in_specs=[
            pl.BlockSpec((bblk, H, W, C), lambda i: (i, 0, 0, 0)),
            pl.BlockSpec((KEFF * KEFF, C), lambda i: (0, 0)),
            pl.BlockSpec((1, C), lambda i: (0, 0)),
        ],
        out_specs=pl.BlockSpec((bblk, H, W, C), lambda i: (i, 0, 0, 0)),
        scratch_shapes=[pltpu.VMEM((Hp, Wpad, C), feat.dtype)],
        compiler_params=pltpu.CompilerParams(
            dimension_semantics=("parallel",),
            vmem_limit_bytes=vmem_limit),
    )(feat, w_eff, b_eff)


def ppeg_forward(x, H, W, params):
    """x: (B, 1+H*W, C) tokens.  Returns (B, 1+H*W, C)."""
    B, N, C = x.shape
    assert N == 1 + H * W
    feat = x[:, 1:, :].reshape(B, H, W, C)      # token n -> (n // W, n % W)
    y = ppeg_conv_nhwc(feat,
                       params["w7"], params["b7"],
                       params["w5"], params["b5"],
                       params["w3"], params["b3"])
    # Write the conv result back over the feature tokens; the cls row stays.
    # Jit this function with donate_argnums=(0,) so the update is done in place
    # instead of materializing a second full (B, N, C) buffer in HBM.
    return x.at[:, 1:, :].set(y.reshape(B, H * W, C))


def init_params(key, dim):
    """Deterministic depthwise-conv params, stored as (k, k, C) per-channel
    kernels + (C,) biases (equivalent to PyTorch's (C, 1, k, k) depthwise)."""
    ks = jax.random.split(key, 6)

    def w(k, size):
        bound = 1.0 / jnp.sqrt(size * size)     # fan_in = k*k (groups = dim)
        return jax.random.uniform(k, (size, size, dim), jnp.float32, -bound, bound)

    def b(k, size):
        bound = 1.0 / jnp.sqrt(size * size)
        return jax.random.uniform(k, (dim,), jnp.float32, -bound, bound)

    return {
        "w7": w(ks[0], 7), "b7": b(ks[1], 7),
        "w5": w(ks[2], 5), "b5": b(ks[3], 5),
        "w3": w(ks[4], 3), "b3": b(ks[5], 3),
    }


def _ppeg_reference(x, H, W, params):
    """Pure-JAX reference (matches the PyTorch module)."""
    B, N, C = x.shape
    cls_token = x[:, :1, :]
    feat = x[:, 1:, :].reshape(B, H, W, C)

    def dwconv(f, w, b):
        w_hwio = w.reshape(w.shape[0], w.shape[1], 1, C)
        y = lax.conv_general_dilated(
            f, w_hwio, window_strides=(1, 1), padding="SAME",
            dimension_numbers=("NHWC", "HWIO", "NHWC"),
            feature_group_count=C)
        return y + b[None, None, None, :]

    y = (dwconv(feat, params["w7"], params["b7"]) + feat +
         dwconv(feat, params["w5"], params["b5"]) +
         dwconv(feat, params["w3"], params["b3"]))
    return jnp.concatenate([cls_token, y.reshape(B, H * W, C)], axis=1)


if __name__ == "__main__":
    key = jax.random.PRNGKey(0)
    k_x, k_p = jax.random.split(key)

    B, C, H, W = 4, 128, 8, 8          # small shapes; C on the lane axis
    N = 1 + H * W
    x = jax.random.normal(k_x, (B, N, C), jnp.float32)
    params = init_params(k_p, C)

    # Compute the reference first: x is donated to the jitted forward below.
    ref = jax.block_until_ready(_ppeg_reference(x, H, W, params))

    fwd = jax.jit(ppeg_forward, static_argnums=(1, 2), donate_argnums=(0,))
    out = jax.block_until_ready(fwd(x, H, W, params))

    assert out.shape == (B, N, C)
    assert jnp.allclose(out, ref, atol=1e-4, rtol=1e-4), \
        float(jnp.max(jnp.abs(out - ref)))
    print("KERNEL_OK")
</pallas_src>

<mosaic_0001>
module attributes {stable_mosaic.version = 11 : i64} {
  func.func @_ppeg_kernel(%arg0: i32, %arg1: memref<2x8x8x128xf32, #tpu.memory_space<vmem>>, %arg2: memref<49x128xf32, #tpu.memory_space<vmem>>, %arg3: memref<1x128xf32, #tpu.memory_space<vmem>>, %arg4: memref<2x8x8x128xf32, #tpu.memory_space<vmem>>, %arg5: memref<14x24x128xf32, #tpu.memory_space<vmem>>) attributes {dimension_semantics = [#tpu.dimension_semantics<parallel>], iteration_bounds = array<i64: 2>, scalar_prefetch = 0 : i64, scratch_operands = 1 : i64, tpu.core_type = #tpu.core_type<tc>, window_params = [{transform_indices = @transform_0, window_bounds = array<i64: 2, 8, 8, 128>}, {pipeline_mode = #tpu.pipeline_mode<synchronous>, transform_indices = @transform_1, window_bounds = array<i64: 49, 128>}, {pipeline_mode = #tpu.pipeline_mode<synchronous>, transform_indices = @transform_2, window_bounds = array<i64: 1, 128>}, {transform_indices = @transform_3, window_bounds = array<i64: 2, 8, 8, 128>}]} {
    %cst = arith.constant 0.000000e+00 : f32
    %0 = vector.broadcast %cst : f32 to vector<3x24x128xf32>
    %c0 = arith.constant 0 : index
    %c0_0 = arith.constant 0 : index
    %c0_1 = arith.constant 0 : index
    %1 = vector.load %arg5[%c0, %c0_0, %c0_1] : memref<14x24x128xf32, #tpu.memory_space<vmem>>, vector<3x24x128xf32>
    tpu.vector_store %arg5[%c0, %c0_0, %c0_1], %0 {strides = array<i32>} : memref<14x24x128xf32, #tpu.memory_space<vmem>>, vector<3x24x128xf32>,
    %cst_2 = arith.constant 0.000000e+00 : f32
    %2 = vector.broadcast %cst_2 : f32 to vector<3x24x128xf32>
    %c11 = arith.constant 11 : index
    %c0_3 = arith.constant 0 : index
    %c0_4 = arith.constant 0 : index
    %3 = vector.load %arg5[%c11, %c0_3, %c0_4] : memref<14x24x128xf32, #tpu.memory_space<vmem>>, vector<3x24x128xf32>
    tpu.vector_store %arg5[%c11, %c0_3, %c0_4], %2 {strides = array<i32>} : memref<14x24x128xf32, #tpu.memory_space<vmem>>, vector<3x24x128xf32>,
    %cst_5 = arith.constant 0.000000e+00 : f32
    %4 = vector.broadcast %cst_5 : f32 to vector<8x8x128xf32>
    %c3 = arith.constant 3 : index
    %c0_6 = arith.constant 0 : index
    %c0_7 = arith.constant 0 : index
    %5 = vector.load %arg5[%c3, %c0_6, %c0_7] : memref<14x24x128xf32, #tpu.memory_space<vmem>>, vector<8x8x128xf32>
    tpu.vector_store %arg5[%c3, %c0_6, %c0_7], %4 {strides = array<i32>} : memref<14x24x128xf32, #tpu.memory_space<vmem>>, vector<8x8x128xf32>,
    %cst_8 = arith.constant 0.000000e+00 : f32
    %6 = vector.broadcast %cst_8 : f32 to vector<8x8x128xf32>
    %c3_9 = arith.constant 3 : index
    %c16 = arith.constant 16 : index
    %c0_10 = arith.constant 0 : index
    %7 = vector.load %arg5[%c3_9, %c16, %c0_10] : memref<14x24x128xf32, #tpu.memory_space<vmem>>, vector<8x8x128xf32>
    tpu.vector_store %arg5[%c3_9, %c16, %c0_10], %6 {strides = array<i32>} : memref<14x24x128xf32, #tpu.memory_space<vmem>>, vector<8x8x128xf32>,
    %c0_11 = arith.constant 0 : index
    %c0_12 = arith.constant 0 : index
    %8 = vector.load %arg3[%c0_11, %c0_12] : memref<1x128xf32, #tpu.memory_space<vmem>>, vector<1x128xf32>
    %9 = vector.shape_cast %8 : vector<1x128xf32> to vector<128xf32>
    %10 = vector.shape_cast %9 : vector<128xf32> to vector<1x1x128xf32>
    %11 = vector.shape_cast %10 : vector<1x1x128xf32> to vector<1x1x128xf32>
    %12 = vector.broadcast %11 : vector<1x1x128xf32> to vector<8x8x128xf32>
    %c0_13 = arith.constant 0 : index
    %c0_14 = arith.constant 0 : index
    %c0_15 = arith.constant 0 : index
    %c0_16 = arith.constant 0 : index
    %13 = vector.load %arg1[%c0_13, %c0_14, %c0_15, %c0_16] : memref<2x8x8x128xf32, #tpu.memory_space<vmem>>, vector<1x8x8x128xf32>
    %14 = vector.shape_cast %13 : vector<1x8x8x128xf32> to vector<8x8x128xf32>
    %c3_17 = arith.constant 3 : index
    %c8 = arith.constant 8 : index
    %c0_18 = arith.constant 0 : index
    %15 = vector.load %arg5[%c3_17, %c8, %c0_18] : memref<14x24x128xf32, #tpu.memory_space<vmem>>, vector<8x8x128xf32>
    tpu.vector_store %arg5[%c3_17, %c8, %c0_18], %14 {strides = array<i32>} : memref<14x24x128xf32, #tpu.memory_space<vmem>>, vector<8x8x128xf32>,
    %c0_19 = arith.constant 0 : index
    %c0_20 = arith.constant 0 : index
    %c0_21 = arith.constant 0 : index
    %16 = vector.load %arg5[%c0_19, %c0_20, %c0_21] : memref<14x24x128xf32, #tpu.memory_space<vmem>>, vector<14x24x128xf32>
    %c3_i32 = arith.constant 3 : i32
    %17 = tpu.dynamic_rotate %16 by %c3_i32 dim 1 : vector<14x24x128xf32>, i32 -> vector<14x24x128xf32>
    %18 = vector.extract_strided_slice %17 {offsets = [0, 8, 0], sizes = [14, 8, 128], strides = [1, 1, 1]} : vector<14x24x128xf32> to vector<14x8x128xf32>
    %19 = vector.extract_strided_slice %18 {offsets = [0, 0, 0], sizes = [8, 8, 128], strides = [1, 1, 1]} : vector<14x8x128xf32> to vector<8x8x128xf32>
    %c0_22 = arith.constant 0 : index
    %c0_23 = arith.constant 0 : index
    %20 = vector.load %arg2[%c0_22, %c0_23] : memref<49x128xf32, #tpu.memory_space<vmem>>, vector<1x128xf32>
    %21 = vector.shape_cast %20 : vector<1x128xf32> to vector<128xf32>
    %22 = vector.shape_cast %21 : vector<128xf32> to vector<1x1x128xf32>
    %23 = vector.broadcast %22 : vector<1x1x128xf32> to vector<8x8x128xf32>
    %24 = arith.mulf %19, %23 : vector<8x8x128xf32>
    %25 = arith.addf %12, %24 : vector<8x8x128xf32>
    %26 = vector.extract_strided_slice %18 {offsets = [1, 0, 0], sizes = [8, 8, 128], strides = [1, 1, 1]} : vector<14x8x128xf32> to vector<8x8x128xf32>
    %c7 = arith.constant 7 : index
    %c0_24 = arith.constant 0 : index
    %27 = vector.load %arg2[%c7, %c0_24] : memref<49x128xf32, #tpu.memory_space<vmem>>, vector<1x128xf32>
    %28 = vector.shape_cast %27 : vector<1x128xf32> to vector<128xf32>
    %29 = vector.shape_cast %28 : vector<128xf32> to vector<1x1x128xf32>
    %30 = vector.broadcast %29 : vector<1x1x128xf32> to vector<8x8x128xf32>
    %31 = arith.mulf %26, %30 : vector<8x8x128xf32>
    %32 = arith.addf %25, %31 : vector<8x8x128xf32>
    %33 = vector.extract_strided_slice %18 {offsets = [2, 0, 0], sizes = [8, 8, 128], strides = [1, 1, 1]} : vector<14x8x128xf32> to vector<8x8x128xf32>
    %c14 = arith.constant 14 : index
    %c0_25 = arith.constant 0 : index
    %34 = vector.load %arg2[%c14, %c0_25] : memref<49x128xf32, #tpu.memory_space<vmem>>, vector<1x128xf32>
    %35 = vector.shape_cast %34 : vector<1x128xf32> to vector<128xf32>
    %36 = vector.shape_cast %35 : vector<128xf32> to vector<1x1x128xf32>
    %37 = vector.broadcast %36 : vector<1x1x128xf32> to vector<8x8x128xf32>
    %38 = arith.mulf %33, %37 : vector<8x8x128xf32>
    %39 = arith.addf %32, %38 : vector<8x8x128xf32>
    %40 = vector.extract_strided_slice %18 {offsets = [3, 0, 0], sizes = [8, 8, 128], strides = [1, 1, 1]} : vector<14x8x128xf32> to vector<8x8x128xf32>
    %c21 = arith.constant 21 : index
    %c0_26 = arith.constant 0 : index
    %41 = vector.load %arg2[%c21, %c0_26] : memref<49x128xf32, #tpu.memory_space<vmem>>, vector<1x128xf32>
    %42 = vector.shape_cast %41 : vector<1x128xf32> to vector<128xf32>
    %43 = vector.shape_cast %42 : vector<128xf32> to vector<1x1x128xf32>
    %44 = vector.broadcast %43 : vector<1x1x128xf32> to vector<8x8x128xf32>
    %45 = arith.mulf %40, %44 : vector<8x8x128xf32>
    %46 = arith.addf %39, %45 : vector<8x8x128xf32>
    %47 = vector.extract_strided_slice %18 {offsets = [4, 0, 0], sizes = [8, 8, 128], strides = [1, 1, 1]} : vector<14x8x128xf32> to vector<8x8x128xf32>
    %c28 = arith.constant 28 : index
    %c0_27 = arith.constant 0 : index
    %48 = vector.load %arg2[%c28, %c0_27] : memref<49x128xf32, #tpu.memory_space<vmem>>, vector<1x128xf32>
    %49 = vector.shape_cast %48 : vector<1x128xf32> to vector<128xf32>
    %50 = vector.shape_cast %49 : vector<128xf32> to vector<1x1x128xf32>
    %51 = vector.broadcast %50 : vector<1x1x128xf32> to vector<8x8x128xf32>
    %52 = arith.mulf %47, %51 : vector<8x8x128xf32>
    %53 = arith.addf %46, %52 : vector<8x8x128xf32>
    %54 = vector.extract_strided_slice %18 {offsets = [5, 0, 0], sizes = [8, 8, 128], strides = [1, 1, 1]} : vector<14x8x128xf32> to vector<8x8x128xf32>
    %c35 = arith.constant 35 : index
    %c0_28 = arith.constant 0 : index
    %55 = vector.load %arg2[%c35, %c0_28] : memref<49x128xf32, #tpu.memory_space<vmem>>, vector<1x128xf32>
    %56 = vector.shape_cast %55 : vector<1x128xf32> to vector<128xf32>
    %57 = vector.shape_cast %56 : vector<128xf32> to vector<1x1x128xf32>
    %58 = vector.broadcast %57 : vector<1x1x128xf32> to vector<8x8x128xf32>
    %59 = arith.mulf %54, %58 : vector<8x8x128xf32>
    %60 = arith.addf %53, %59 : vector<8x8x128xf32>
    %61 = vector.extract_strided_slice %18 {offsets = [6, 0, 0], sizes = [8, 8, 128], strides = [1, 1, 1]} : vector<14x8x128xf32> to vector<8x8x128xf32>
    %c42 = arith.constant 42 : index
    %c0_29 = arith.constant 0 : index
    %62 = vector.load %arg2[%c42, %c0_29] : memref<49x128xf32, #tpu.memory_space<vmem>>, vector<1x128xf32>
    %63 = vector.shape_cast %62 : vector<1x128xf32> to vector<128xf32>
    %64 = vector.shape_cast %63 : vector<128xf32> to vector<1x1x128xf32>
    %65 = vector.broadcast %64 : vector<1x1x128xf32> to vector<8x8x128xf32>
    %66 = arith.mulf %61, %65 : vector<8x8x128xf32>
    %67 = arith.addf %60, %66 : vector<8x8x128xf32>
    %c2_i32 = arith.constant 2 : i32
    %68 = tpu.dynamic_rotate %16 by %c2_i32 dim 1 : vector<14x24x128xf32>, i32 -> vector<14x24x128xf32>
    %69 = vector.extract_strided_slice %68 {offsets = [0, 8, 0], sizes = [14, 8, 128], strides = [1, 1, 1]} : vector<14x24x128xf32> to vector<14x8x128xf32>
    %70 = vector.extract_strided_slice %69 {offsets = [0, 0, 0], sizes = [8, 8, 128], strides = [1, 1, 1]} : vector<14x8x128xf32> to vector<8x8x128xf32>
    %c1 = arith.constant 1 : index
    %c0_30 = arith.constant 0 : index
    %71 = vector.load %arg2[%c1, %c0_30] : memref<49x128xf32, #tpu.memory_space<vmem>>, vector<1x128xf32>
    %72 = vector.shape_cast %71 : vector<1x128xf32> to vector<128xf32>
    %73 = vector.shape_cast %72 : vector<128xf32> to vector<1x1x128xf32>
    %74 = vector.broadcast %73 : vector<1x1x128xf32> to vector<8x8x128xf32>
    %75 = arith.mulf %70, %74 : vector<8x8x128xf32>
    %76 = arith.addf %67, %75 : vector<8x8x128xf32>
    %77 = vector.extract_strided_slice %69 {offsets = [1, 0, 0], sizes = [8, 8, 128], strides = [1, 1, 1]} : vector<14x8x128xf32> to vector<8x8x128xf32>
    %c8_31 = arith.constant 8 : index
    %c0_32 = arith.constant 0 : index
    %78 = vector.load %arg2[%c8_31, %c0_32] : memref<49x128xf32, #tpu.memory_space<vmem>>, vector<1x128xf32>
    %79 = vector.shape_cast %78 : vector<1x128xf32> to vector<128xf32>
    %80 = vector.shape_cast %79 : vector<128xf32> to vector<1x1x128xf32>
    %81 = vector.broadcast %80 : vector<1x1x128xf32> to vector<8x8x128xf32>
    %82 = arith.mulf %77, %81 : vector<8x8x128xf32>
    %83 = arith.addf %76, %82 : vector<8x8x128xf32>
    %84 = vector.extract_strided_slice %69 {offsets = [2, 0, 0], sizes = [8, 8, 128], strides = [1, 1, 1]} : vector<14x8x128xf32> to vector<8x8x128xf32>
    %c15 = arith.constant 15 : index
    %c0_33 = arith.constant 0 : index
    %85 = vector.load %arg2[%c15, %c0_33] : memref<49x128xf32, #tpu.memory_space<vmem>>, vector<1x128xf32>
    %86 = vector.shape_cast %85 : vector<1x128xf32> to vector<128xf32>
    %87 = vector.shape_cast %86 : vector<128xf32> to vector<1x1x128xf32>
    %88 = vector.broadcast %87 : vector<1x1x128xf32> to vector<8x8x128xf32>
    %89 = arith.mulf %84, %88 : vector<8x8x128xf32>
    %90 = arith.addf %83, %89 : vector<8x8x128xf32>
    %91 = vector.extract_strided_slice %69 {offsets = [3, 0, 0], sizes = [8, 8, 128], strides = [1, 1, 1]} : vector<14x8x128xf32> to vector<8x8x128xf32>
    %c22 = arith.constant 22 : index
    %c0_34 = arith.constant 0 : index
    %92 = vector.load %arg2[%c22, %c0_34] : memref<49x128xf32, #tpu.memory_space<vmem>>, vector<1x128xf32>
    %93 = vector.shape_cast %92 : vector<1x128xf32> to vector<128xf32>
    %94 = vector.shape_cast %93 : vector<128xf32> to vector<1x1x128xf32>
    %95 = vector.broadcast %94 : vector<1x1x128xf32> to vector<8x8x128xf32>
    %96 = arith.mulf %91, %95 : vector<8x8x128xf32>
    %97 = arith.addf %90, %96 : vector<8x8x128xf32>
    %98 = vector.extract_strided_slice %69 {offsets = [4, 0, 0], sizes = [8, 8, 128], strides = [1, 1, 1]} : vector<14x8x128xf32> to vector<8x8x128xf32>
    %c29 = arith.constant 29 : index
    %c0_35 = arith.constant 0 : index
    %99 = vector.load %arg2[%c29, %c0_35] : memref<49x128xf32, #tpu.memory_space<vmem>>, vector<1x128xf32>
    %100 = vector.shape_cast %99 : vector<1x128xf32> to vector<128xf32>
    %101 = vector.shape_cast %100 : vector<128xf32> to vector<1x1x128xf32>
    %102 = vector.broadcast %101 : vector<1x1x128xf32> to vector<8x8x128xf32>
    %103 = arith.mulf %98, %102 : vector<8x8x128xf32>
    %104 = arith.addf %97, %103 : vector<8x8x128xf32>
    %105 = vector.extract_strided_slice %69 {offsets = [5, 0, 0], sizes = [8, 8, 128], strides = [1, 1, 1]} : vector<14x8x128xf32> to vector<8x8x128xf32>
    %c36 = arith.constant 36 : index
    %c0_36 = arith.constant 0 : index
    %106 = vector.load %arg2[%c36, %c0_36] : memref<49x128xf32, #tpu.memory_space<vmem>>, vector<1x128xf32>
    %107 = vector.shape_cast %106 : vector<1x128xf32> to vector<128xf32>
    %108 = vector.shape_cast %107 : vector<128xf32> to vector<1x1x128xf32>
    %109 = vector.broadcast %108 : vector<1x1x128xf32> to vector<8x8x128xf32>
    %110 = arith.mulf %105, %109 : vector<8x8x128xf32>
    %111 = arith.addf %104, %110 : vector<8x8x128xf32>
    %112 = vector.extract_strided_slice %69 {offsets = [6, 0, 0], sizes = [8, 8, 128], strides = [1, 1, 1]} : vector<14x8x128xf32> to vector<8x8x128xf32>
    %c43 = arith.constant 43 : index
    %c0_37 = arith.constant 0 : index
    %113 = vector.load %arg2[%c43, %c0_37] : memref<49x128xf32, #tpu.memory_space<vmem>>, vector<1x128xf32>
    %114 = vector.shape_cast %113 : vector<1x128xf32> to vector<128xf32>
    %115 = vector.shape_cast %114 : vector<128xf32> to vector<1x1x128xf32>
    %116 = vector.broadcast %115 : vector<1x1x128xf32> to vector<8x8x128xf32>
    %117 = arith.mulf %112, %116 : vector<8x8x128xf32>
    %118 = arith.addf %111, %117 : vector<8x8x128xf32>
    %c1_i32 = arith.constant 1 : i32
    %119 = tpu.dynamic_rotate %16 by %c1_i32 dim 1 : vector<14x24x128xf32>, i32 -> vector<14x24x128xf32>
    %120 = vector.extract_strided_slice %119 {offsets = [0, 8, 0], sizes = [14, 8, 128], strides = [1, 1, 1]} : vector<14x24x128xf32> to vector<14x8x128xf32>
    %121 = vector.extract_strided_slice %120 {offsets = [0, 0, 0], sizes = [8, 8, 128], strides = [1, 1, 1]} : vector<14x8x128xf32> to vector<8x8x128xf32>
    %c2 = arith.constant 2 : index
    %c0_38 = arith.constant 0 : index
    %122 = vector.load %arg2[%c2, %c0_38] : memref<49x128xf32, #tpu.memory_space<vmem>>, vector<1x128xf32>
    %123 = vector.shape_cast %122 : vector<1x128xf32> to vector<128xf32>
    %124 = vector.shape_cast %123 : vector<128xf32> to vector<1x1x128xf32>
    %125 = vector.broadcast %124 : vector<1x1x128xf32> to vector<8x8x128xf32>
    %126 = arith.mulf %121, %125 : vector<8x8x128xf32>
    %127 = arith.addf %118, %126 : vector<8x8x128xf32>
    %128 = vector.extract_strided_slice %120 {offsets = [1, 0, 0], sizes = [8, 8, 128], strides = [1, 1, 1]} : vector<14x8x128xf32> to vector<8x8x128xf32>
    %c9 = arith.constant 9 : index
    %c0_39 = arith.constant 0 : index
    %129 = vector.load %arg2[%c9, %c0_39] : memref<49x128xf32, #tpu.memory_space<vmem>>, vector<1x128xf32>
    %130 = vector.shape_cast %129 : vector<1x128xf32> to vector<128xf32>
    %131 = vector.shape_cast %130 : vector<128xf32> to vector<1x1x128xf32>
    %132 = vector.broadcast %131 : vector<1x1x128xf32> to vector<8x8x128xf32>
    %133 = arith.mulf %128, %132 : vector<8x8x128xf32>
    %134 = arith.addf %127, %133 : vector<8x8x128xf32>
    %135 = vector.extract_strided_slice %120 {offsets = [2, 0, 0], sizes = [8, 8, 128], strides = [1, 1, 1]} : vector<14x8x128xf32> to vector<8x8x128xf32>
    %c16_40 = arith.constant 16 : index
    %c0_41 = arith.constant 0 : index
    %136 = vector.load %arg2[%c16_40, %c0_41] : memref<49x128xf32, #tpu.memory_space<vmem>>, vector<1x128xf32>
    %137 = vector.shape_cast %136 : vector<1x128xf32> to vector<128xf32>
    %138 = vector.shape_cast %137 : vector<128xf32> to vector<1x1x128xf32>
    %139 = vector.broadcast %138 : vector<1x1x128xf32> to vector<8x8x128xf32>
    %140 = arith.mulf %135, %139 : vector<8x8x128xf32>
    %141 = arith.addf %134, %140 : vector<8x8x128xf32>
    %142 = vector.extract_strided_slice %120 {offsets = [3, 0, 0], sizes = [8, 8, 128], strides = [1, 1, 1]} : vector<14x8x128xf32> to vector<8x8x128xf32>
    %c23 = arith.constant 23 : index
    %c0_42 = arith.constant 0 : index
    %143 = vector.load %arg2[%c23, %c0_42] : memref<49x128xf32, #tpu.memory_space<vmem>>, vector<1x128xf32>
    %144 = vector.shape_cast %143 : vector<1x128xf32> to vector<128xf32>
    %145 = vector.shape_cast %144 : vector<128xf32> to vector<1x1x128xf32>
    %146 = vector.broadcast %145 : vector<1x1x128xf32> to vector<8x8x128xf32>
    %147 = arith.mulf %142, %146 : vector<8x8x128xf32>
    %148 = arith.addf %141, %147 : vector<8x8x128xf32>
    %149 = vector.extract_strided_slice %120 {offsets = [4, 0, 0], sizes = [8, 8, 128], strides = [1, 1, 1]} : vector<14x8x128xf32> to vector<8x8x128xf32>
    %c30 = arith.constant 30 : index
    %c0_43 = arith.constant 0 : index
    %150 = vector.load %arg2[%c30, %c0_43] : memref<49x128xf32, #tpu.memory_space<vmem>>, vector<1x128xf32>
    %151 = vector.shape_cast %150 : vector<1x128xf32> to vector<128xf32>
    %152 = vector.shape_cast %151 : vector<128xf32> to vector<1x1x128xf32>
    %153 = vector.broadcast %152 : vector<1x1x128xf32> to vector<8x8x128xf32>
    %154 = arith.mulf %149, %153 : vector<8x8x128xf32>
    %155 = arith.addf %148, %154 : vector<8x8x128xf32>
    %156 = vector.extract_strided_slice %120 {offsets = [5, 0, 0], sizes = [8, 8, 128], strides = [1, 1, 1]} : vector<14x8x128xf32> to vector<8x8x128xf32>
    %c37 = arith.constant 37 : index
    %c0_44 = arith.constant 0 : index
    %157 = vector.load %arg2[%c37, %c0_44] : memref<49x128xf32, #tpu.memory_space<vmem>>, vector<1x128xf32>
    %158 = vector.shape_cast %157 : vector<1x128xf32> to vector<128xf32>
    %159 = vector.shape_cast %158 : vector<128xf32> to vector<1x1x128xf32>
    %160 = vector.broadcast %159 : vector<1x1x128xf32> to vector<8x8x128xf32>
    %161 = arith.mulf %156, %160 : vector<8x8x128xf32>
    %162 = arith.addf %155, %161 : vector<8x8x128xf32>
    %163 = vector.extract_strided_slice %120 {offsets = [6, 0, 0], sizes = [8, 8, 128], strides = [1, 1, 1]} : vector<14x8x128xf32> to vector<8x8x128xf32>
    %c44 = arith.constant 44 : index
    %c0_45 = arith.constant 0 : index
    %164 = vector.load %arg2[%c44, %c0_45] : memref<49x128xf32, #tpu.memory_space<vmem>>, vector<1x128xf32>
    %165 = vector.shape_cast %164 : vector<1x128xf32> to vector<128xf32>
    %166 = vector.shape_cast %165 : vector<128xf32> to vector<1x1x128xf32>
    %167 = vector.broadcast %166 : vector<1x1x128xf32> to vector<8x8x128xf32>
    %168 = arith.mulf %163, %167 : vector<8x8x128xf32>
    %169 = arith.addf %162, %168 : vector<8x8x128xf32>
    %170 = vector.extract_strided_slice %16 {offsets = [0, 8, 0], sizes = [14, 8, 128], strides = [1, 1, 1]} : vector<14x24x128xf32> to vector<14x8x128xf32>
    %171 = vector.extract_strided_slice %170 {offsets = [0, 0, 0], sizes = [8, 8, 128], strides = [1, 1, 1]} : vector<14x8x128xf32> to vector<8x8x128xf32>
    %c3_46 = arith.constant 3 : index
    %c0_47 = arith.constant 0 : index
    %172 = vector.load %arg2[%c3_46, %c0_47] : memref<49x128xf32, #tpu.memory_space<vmem>>, vector<1x128xf32>
    %173 = vector.shape_cast %172 : vector<1x128xf32> to vector<128xf32>
    %174 = vector.shape_cast %173 : vector<128xf32> to vector<1x1x128xf32>
    %175 = vector.broadcast %174 : vector<1x1x128xf32> to vector<8x8x128xf32>
    %176 = arith.mulf %171, %175 : vector<8x8x128xf32>
    %177 = arith.addf %169, %176 : vector<8x8x128xf32>
    %178 = vector.extract_strided_slice %170 {offsets = [1, 0, 0], sizes = [8, 8, 128], strides = [1, 1, 1]} : vector<14x8x128xf32> to vector<8x8x128xf32>
    %c10 = arith.constant 10 : index
    %c0_48 = arith.constant 0 : index
    %179 = vector.load %arg2[%c10, %c0_48] : memref<49x128xf32, #tpu.memory_space<vmem>>, vector<1x128xf32>
    %180 = vector.shape_cast %179 : vector<1x128xf32> to vector<128xf32>
    %181 = vector.shape_cast %180 : vector<128xf32> to vector<1x1x128xf32>
    %182 = vector.broadcast %181 : vector<1x1x128xf32> to vector<8x8x128xf32>
    %183 = arith.mulf %178, %182 : vector<8x8x128xf32>
    %184 = arith.addf %177, %183 : vector<8x8x128xf32>
    %185 = vector.extract_strided_slice %170 {offsets = [2, 0, 0], sizes = [8, 8, 128], strides = [1, 1, 1]} : vector<14x8x128xf32> to vector<8x8x128xf32>
    %c17 = arith.constant 17 : index
    %c0_49 = arith.constant 0 : index
    %186 = vector.load %arg2[%c17, %c0_49] : memref<49x128xf32, #tpu.memory_space<vmem>>, vector<1x128xf32>
    %187 = vector.shape_cast %186 : vector<1x128xf32> to vector<128xf32>
    %188 = vector.shape_cast %187 : vector<128xf32> to vector<1x1x128xf32>
    %189 = vector.broadcast %188 : vector<1x1x128xf32> to vector<8x8x128xf32>
    %190 = arith.mulf %185, %189 : vector<8x8x128xf32>
    %191 = arith.addf %184, %190 : vector<8x8x128xf32>
    %192 = vector.extract_strided_slice %170 {offsets = [3, 0, 0], sizes = [8, 8, 128], strides = [1, 1, 1]} : vector<14x8x128xf32> to vector<8x8x128xf32>
    %c24 = arith.constant 24 : index
    %c0_50 = arith.constant 0 : index
    %193 = vector.load %arg2[%c24, %c0_50] : memref<49x128xf32, #tpu.memory_space<vmem>>, vector<1x128xf32>
    %194 = vector.shape_cast %193 : vector<1x128xf32> to vector<128xf32>
    %195 = vector.shape_cast %194 : vector<128xf32> to vector<1x1x128xf32>
    %196 = vector.broadcast %195 : vector<1x1x128xf32> to vector<8x8x128xf32>
    %197 = arith.mulf %192, %196 : vector<8x8x128xf32>
    %198 = arith.addf %191, %197 : vector<8x8x128xf32>
    %199 = vector.extract_strided_slice %170 {offsets = [4, 0, 0], sizes = [8, 8, 128], strides = [1, 1, 1]} : vector<14x8x128xf32> to vector<8x8x128xf32>
    %c31 = arith.constant 31 : index
    %c0_51 = arith.constant 0 : index
    %200 = vector.load %arg2[%c31, %c0_51] : memref<49x128xf32, #tpu.memory_space<vmem>>, vector<1x128xf32>
    %201 = vector.shape_cast %200 : vector<1x128xf32> to vector<128xf32>
    %202 = vector.shape_cast %201 : vector<128xf32> to vector<1x1x128xf32>
    %203 = vector.broadcast %202 : vector<1x1x128xf32> to vector<8x8x128xf32>
    %204 = arith.mulf %199, %203 : vector<8x8x128xf32>
    %205 = arith.addf %198, %204 : vector<8x8x128xf32>
    %206 = vector.extract_strided_slice %170 {offsets = [5, 0, 0], sizes = [8, 8, 128], strides = [1, 1, 1]} : vector<14x8x128xf32> to vector<8x8x128xf32>
    %c38 = arith.constant 38 : index
    %c0_52 = arith.constant 0 : index
    %207 = vector.load %arg2[%c38, %c0_52] : memref<49x128xf32, #tpu.memory_space<vmem>>, vector<1x128xf32>
    %208 = vector.shape_cast %207 : vector<1x128xf32> to vector<128xf32>
    %209 = vector.shape_cast %208 : vector<128xf32> to vector<1x1x128xf32>
    %210 = vector.broadcast %209 : vector<1x1x128xf32> to vector<8x8x128xf32>
    %211 = arith.mulf %206, %210 : vector<8x8x128xf32>
    %212 = arith.addf %205, %211 : vector<8x8x128xf32>
    %213 = vector.extract_strided_slice %170 {offsets = [6, 0, 0], sizes = [8, 8, 128], strides = [1, 1, 1]} : vector<14x8x128xf32> to vector<8x8x128xf32>
    %c45 = arith.constant 45 : index
    %c0_53 = arith.constant 0 : index
    %214 = vector.load %arg2[%c45, %c0_53] : memref<49x128xf32, #tpu.memory_space<vmem>>, vector<1x128xf32>
    %215 = vector.shape_cast %214 : vector<1x128xf32> to vector<128xf32>
    %216 = vector.shape_cast %215 : vector<128xf32> to vector<1x1x128xf32>
    %217 = vector.broadcast %216 : vector<1x1x128xf32> to vector<8x8x128xf32>
    %218 = arith.mulf %213, %217 : vector<8x8x128xf32>
    %219 = arith.addf %212, %218 : vector<8x8x128xf32>
    %c23_i32 = arith.constant 23 : i32
    %220 = tpu.dynamic_rotate %16 by %c23_i32 dim 1 : vector<14x24x128xf32>, i32 -> vector<14x24x128xf32>
    %221 = vector.extract_strided_slice %220 {offsets = [0, 8, 0], sizes = [14, 8, 128], strides = [1, 1, 1]} : vector<14x24x128xf32> to vector<14x8x128xf32>
    %222 = vector.extract_strided_slice %221 {offsets = [0, 0, 0], sizes = [8, 8, 128], strides = [1, 1, 1]} : vector<14x8x128xf32> to vector<8x8x128xf32>
    %c4 = arith.constant 4 : index
    %c0_54 = arith.constant 0 : index
    %223 = vector.load %arg2[%c4, %c0_54] : memref<49x128xf32, #tpu.memory_space<vmem>>, vector<1x128xf32>
    %224 = vector.shape_cast %223 : vector<1x128xf32> to vector<128xf32>
    %225 = vector.shape_cast %224 : vector<128xf32> to vector<1x1x128xf32>
    %226 = vector.broadcast %225 : vector<1x1x128xf32> to vector<8x8x128xf32>
    %227 = arith.mulf %222, %226 : vector<8x8x128xf32>
    %228 = arith.addf %219, %227 : vector<8x8x128xf32>
    %229 = vector.extract_strided_slice %221 {offsets = [1, 0, 0], sizes = [8, 8, 128], strides = [1, 1, 1]} : vector<14x8x128xf32> to vector<8x8x128xf32>
    %c11_55 = arith.constant 11 : index
    %c0_56 = arith.constant 0 : index
    %230 = vector.load %arg2[%c11_55, %c0_56] : memref<49x128xf32, #tpu.memory_space<vmem>>, vector<1x128xf32>
    %231 = vector.shape_cast %230 : vector<1x128xf32> to vector<128xf32>
    %232 = vector.shape_cast %231 : vector<128xf32> to vector<1x1x128xf32>
    %233 = vector.broadcast %232 : vector<1x1x128xf32> to vector<8x8x128xf32>
    %234 = arith.mulf %229, %233 : vector<8x8x128xf32>
    %235 = arith.addf %228, %234 : vector<8x8x128xf32>
    %236 = vector.extract_strided_slice %221 {offsets = [2, 0, 0], sizes = [8, 8, 128], strides = [1, 1, 1]} : vector<14x8x128xf32> to vector<8x8x128xf32>
    %c18 = arith.constant 18 : index
    %c0_57 = arith.constant 0 : index
    %237 = vector.load %arg2[%c18, %c0_57] : memref<49x128xf32, #tpu.memory_space<vmem>>, vector<1x128xf32>
    %238 = vector.shape_cast %237 : vector<1x128xf32> to vector<128xf32>
    %239 = vector.shape_cast %238 : vector<128xf32> to vector<1x1x128xf32>
    %240 = vector.broadcast %239 : vector<1x1x128xf32> to vector<8x8x128xf32>
    %241 = arith.mulf %236, %240 : vector<8x8x128xf32>
    %242 = arith.addf %235, %241 : vector<8x8x128xf32>
    %243 = vector.extract_strided_slice %221 {offsets = [3, 0, 0], sizes = [8, 8, 128], strides = [1, 1, 1]} : vector<14x8x128xf32> to vector<8x8x128xf32>
    %c25 = arith.constant 25 : index
    %c0_58 = arith.constant 0 : index
    %244 = vector.load %arg2[%c25, %c0_58] : memref<49x128xf32, #tpu.memory_space<vmem>>, vector<1x128xf32>
    %245 = vector.shape_cast %244 : vector<1x128xf32> to vector<128xf32>
    %246 = vector.shape_cast %245 : vector<128xf32> to vector<1x1x128xf32>
    %247 = vector.broadcast %246 : vector<1x1x128xf32> to vector<8x8x128xf32>
    %248 = arith.mulf %243, %247 : vector<8x8x128xf32>
    %249 = arith.addf %242, %248 : vector<8x8x128xf32>
    %250 = vector.extract_strided_slice %221 {offsets = [4, 0, 0], sizes = [8, 8, 128], strides = [1, 1, 1]} : vector<14x8x128xf32> to vector<8x8x128xf32>
    %c32 = arith.constant 32 : index
    %c0_59 = arith.constant 0 : index
    %251 = vector.load %arg2[%c32, %c0_59] : memref<49x128xf32, #tpu.memory_space<vmem>>, vector<1x128xf32>
    %252 = vector.shape_cast %251 : vector<1x128xf32> to vector<128xf32>
    %253 = vector.shape_cast %252 : vector<128xf32> to vector<1x1x128xf32>
    %254 = vector.broadcast %253 : vector<1x1x128xf32> to vector<8x8x128xf32>
    %255 = arith.mulf %250, %254 : vector<8x8x128xf32>
    %256 = arith.addf %249, %255 : vector<8x8x128xf32>
    %257 = vector.extract_strided_slice %221 {offsets = [5, 0, 0], sizes = [8, 8, 128], strides = [1, 1, 1]} : vector<14x8x128xf32> to vector<8x8x128xf32>
    %c39 = arith.constant 39 : index
    %c0_60 = arith.constant 0 : index
    %258 = vector.load %arg2[%c39, %c0_60] : memref<49x128xf32, #tpu.memory_space<vmem>>, vector<1x128xf32>
    %259 = vector.shape_cast %258 : vector<1x128xf32> to vector<128xf32>
    %260 = vector.shape_cast %259 : vector<128xf32> to vector<1x1x128xf32>
    %261 = vector.broadcast %260 : vector<1x1x128xf32> to vector<8x8x128xf32>
    %262 = arith.mulf %257, %261 : vector<8x8x128xf32>
    %263 = arith.addf %256, %262 : vector<8x8x128xf32>
    %264 = vector.extract_strided_slice %221 {offsets = [6, 0, 0], sizes = [8, 8, 128], strides = [1, 1, 1]} : vector<14x8x128xf32> to vector<8x8x128xf32>
    %c46 = arith.constant 46 : index
    %c0_61 = arith.constant 0 : index
    %265 = vector.load %arg2[%c46, %c0_61] : memref<49x128xf32, #tpu.memory_space<vmem>>, vector<1x128xf32>
    %266 = vector.shape_cast %265 : vector<1x128xf32> to vector<128xf32>
    %267 = vector.shape_cast %266 : vector<128xf32> to vector<1x1x128xf32>
    %268 = vector.broadcast %267 : vector<1x1x128xf32> to vector<8x8x128xf32>
    %269 = arith.mulf %264, %268 : vector<8x8x128xf32>
    %270 = arith.addf %263, %269 : vector<8x8x128xf32>
    %c22_i32 = arith.constant 22 : i32
    %271 = tpu.dynamic_rotate %16 by %c22_i32 dim 1 : vector<14x24x128xf32>, i32 -> vector<14x24x128xf32>
    %272 = vector.extract_strided_slice %271 {offsets = [0, 8, 0], sizes = [14, 8, 128], strides = [1, 1, 1]} : vector<14x24x128xf32> to vector<14x8x128xf32>
    %273 = vector.extract_strided_slice %272 {offsets = [0, 0, 0], sizes = [8, 8, 128], strides = [1, 1, 1]} : vector<14x8x128xf32> to vector<8x8x128xf32>
    %c5 = arith.constant 5 : index
    %c0_62 = arith.constant 0 : index
    %274 = vector.load %arg2[%c5, %c0_62] : memref<49x128xf32, #tpu.memory_space<vmem>>, vector<1x128xf32>
    %275 = vector.shape_cast %274 : vector<1x128xf32> to vector<128xf32>
    %276 = vector.shape_cast %275 : vector<128xf32> to vector<1x1x128xf32>
    %277 = vector.broadcast %276 : vector<1x1x128xf32> to vector<8x8x128xf32>
    %278 = arith.mulf %273, %277 : vector<8x8x128xf32>
    %279 = arith.addf %270, %278 : vector<8x8x128xf32>
    %280 = vector.extract_strided_slice %272 {offsets = [1, 0, 0], sizes = [8, 8, 128], strides = [1, 1, 1]} : vector<14x8x128xf32> to vector<8x8x128xf32>
    %c12 = arith.constant 12 : index
    %c0_63 = arith.constant 0 : index
    %281 = vector.load %arg2[%c12, %c0_63] : memref<49x128xf32, #tpu.memory_space<vmem>>, vector<1x128xf32>
    %282 = vector.shape_cast %281 : vector<1x128xf32> to vector<128xf32>
    %283 = vector.shape_cast %282 : vector<128xf32> to vector<1x1x128xf32>
    %284 = vector.broadcast %283 : vector<1x1x128xf32> to vector<8x8x128xf32>
    %285 = arith.mulf %280, %284 : vector<8x8x128xf32>
    %286 = arith.addf %279, %285 : vector<8x8x128xf32>
    %287 = vector.extract_strided_slice %272 {offsets = [2, 0, 0], sizes = [8, 8, 128], strides = [1, 1, 1]} : vector<14x8x128xf32> to vector<8x8x128xf32>
    %c19 = arith.constant 19 : index
    %c0_64 = arith.constant 0 : index
    %288 = vector.load %arg2[%c19, %c0_64] : memref<49x128xf32, #tpu.memory_space<vmem>>, vector<1x128xf32>
    %289 = vector.shape_cast %288 : vector<1x128xf32> to vector<128xf32>
    %290 = vector.shape_cast %289 : vector<128xf32> to vector<1x1x128xf32>
    %291 = vector.broadcast %290 : vector<1x1x128xf32> to vector<8x8x128xf32>
    %292 = arith.mulf %287, %291 : vector<8x8x128xf32>
    %293 = arith.addf %286, %292 : vector<8x8x128xf32>
    %294 = vector.extract_strided_slice %272 {offsets = [3, 0, 0], sizes = [8, 8, 128], strides = [1, 1, 1]} : vector<14x8x128xf32> to vector<8x8x128xf32>
    %c26 = arith.constant 26 : index
    %c0_65 = arith.constant 0 : index
    %295 = vector.load %arg2[%c26, %c0_65] : memref<49x128xf32, #tpu.memory_space<vmem>>, vector<1x128xf32>
    %296 = vector.shape_cast %295 : vector<1x128xf32> to vector<128xf32>
    %297 = vector.shape_cast %296 : vector<128xf32> to vector<1x1x128xf32>
    %298 = vector.broadcast %297 : vector<1x1x128xf32> to vector<8x8x128xf32>
    %299 = arith.mulf %294, %298 : vector<8x8x128xf32>
    %300 = arith.addf %293, %299 : vector<8x8x128xf32>
    %301 = vector.extract_strided_slice %272 {offsets = [4, 0, 0], sizes = [8, 8, 128], strides = [1, 1, 1]} : vector<14x8x128xf32> to vector<8x8x128xf32>
    %c33 = arith.constant 33 : index
    %c0_66 = arith.constant 0 : index
    %302 = vector.load %arg2[%c33, %c0_66] : memref<49x128xf32, #tpu.memory_space<vmem>>, vector<1x128xf32>
    %303 = vector.shape_cast %302 : vector<1x128xf32> to vector<128xf32>
    %304 = vector.shape_cast %303 : vector<128xf32> to vector<1x1x128xf32>
    %305 = vector.broadcast %304 : vector<1x1x128xf32> to vector<8x8x128xf32>
    %306 = arith.mulf %301, %305 : vector<8x8x128xf32>
    %307 = arith.addf %300, %306 : vector<8x8x128xf32>
    %308 = vector.extract_strided_slice %272 {offsets = [5, 0, 0], sizes = [8, 8, 128], strides = [1, 1, 1]} : vector<14x8x128xf32> to vector<8x8x128xf32>
    %c40 = arith.constant 40 : index
    %c0_67 = arith.constant 0 : index
    %309 = vector.load %arg2[%c40, %c0_67] : memref<49x128xf32, #tpu.memory_space<vmem>>, vector<1x128xf32>
    %310 = vector.shape_cast %309 : vector<1x128xf32> to vector<128xf32>
    %311 = vector.shape_cast %310 : vector<128xf32> to vector<1x1x128xf32>
    %312 = vector.broadcast %311 : vector<1x1x128xf32> to vector<8x8x128xf32>
    %313 = arith.mulf %308, %312 : vector<8x8x128xf32>
    %314 = arith.addf %307, %313 : vector<8x8x128xf32>
    %315 = vector.extract_strided_slice %272 {offsets = [6, 0, 0], sizes = [8, 8, 128], strides = [1, 1, 1]} : vector<14x8x128xf32> to vector<8x8x128xf32>
    %c47 = arith.constant 47 : index
    %c0_68 = arith.constant 0 : index
    %316 = vector.load %arg2[%c47, %c0_68] : memref<49x128xf32, #tpu.memory_space<vmem>>, vector<1x128xf32>
    %317 = vector.shape_cast %316 : vector<1x128xf32> to vector<128xf32>
    %318 = vector.shape_cast %317 : vector<128xf32> to vector<1x1x128xf32>
    %319 = vector.broadcast %318 : vector<1x1x128xf32> to vector<8x8x128xf32>
    %320 = arith.mulf %315, %319 : vector<8x8x128xf32>
    %321 = arith.addf %314, %320 : vector<8x8x128xf32>
    %c21_i32 = arith.constant 21 : i32
    %322 = tpu.dynamic_rotate %16 by %c21_i32 dim 1 : vector<14x24x128xf32>, i32 -> vector<14x24x128xf32>
    %323 = vector.extract_strided_slice %322 {offsets = [0, 8, 0], sizes = [14, 8, 128], strides = [1, 1, 1]} : vector<14x24x128xf32> to vector<14x8x128xf32>
    %324 = vector.extract_strided_slice %323 {offsets = [0, 0, 0], sizes = [8, 8, 128], strides = [1, 1, 1]} : vector<14x8x128xf32> to vector<8x8x128xf32>
    %c6 = arith.constant 6 : index
    %c0_69 = arith.constant 0 : index
    %325 = vector.load %arg2[%c6, %c0_69] : memref<49x128xf32, #tpu.memory_space<vmem>>, vector<1x128xf32>
    %326 = vector.shape_cast %325 : vector<1x128xf32> to vector<128xf32>
    %327 = vector.shape_cast %326 : vector<128xf32> to vector<1x1x128xf32>
    %328 = vector.broadcast %327 : vector<1x1x128xf32> to vector<8x8x128xf32>
    %329 = arith.mulf %324, %328 : vector<8x8x128xf32>
    %330 = arith.addf %321, %329 : vector<8x8x128xf32>
    %331 = vector.extract_strided_slice %323 {offsets = [1, 0, 0], sizes = [8, 8, 128], strides = [1, 1, 1]} : vector<14x8x128xf32> to vector<8x8x128xf32>
    %c13 = arith.constant 13 : index
    %c0_70 = arith.constant 0 : index
    %332 = vector.load %arg2[%c13, %c0_70] : memref<49x128xf32, #tpu.memory_space<vmem>>, vector<1x128xf32>
    %333 = vector.shape_cast %332 : vector<1x128xf32> to vector<128xf32>
    %334 = vector.shape_cast %333 : vector<128xf32> to vector<1x1x128xf32>
    %335 = vector.broadcast %334 : vector<1x1x128xf32> to vector<8x8x128xf32>
    %336 = arith.mulf %331, %335 : vector<8x8x128xf32>
    %337 = arith.addf %330, %336 : vector<8x8x128xf32>
    %338 = vector.extract_strided_slice %323 {offsets = [2, 0, 0], sizes = [8, 8, 128], strides = [1, 1, 1]} : vector<14x8x128xf32> to vector<8x8x128xf32>
    %c20 = arith.constant 20 : index
    %c0_71 = arith.constant 0 : index
    %339 = vector.load %arg2[%c20, %c0_71] : memref<49x128xf32, #tpu.memory_space<vmem>>, vector<1x128xf32>
    %340 = vector.shape_cast %339 : vector<1x128xf32> to vector<128xf32>
    %341 = vector.shape_cast %340 : vector<128xf32> to vector<1x1x128xf32>
    %342 = vector.broadcast %341 : vector<1x1x128xf32> to vector<8x8x128xf32>
    %343 = arith.mulf %338, %342 : vector<8x8x128xf32>
    %344 = arith.addf %337, %343 : vector<8x8x128xf32>
    %345 = vector.extract_strided_slice %323 {offsets = [3, 0, 0], sizes = [8, 8, 128], strides = [1, 1, 1]} : vector<14x8x128xf32> to vector<8x8x128xf32>
    %c27 = arith.constant 27 : index
    %c0_72 = arith.constant 0 : index
    %346 = vector.load %arg2[%c27, %c0_72] : memref<49x128xf32, #tpu.memory_space<vmem>>, vector<1x128xf32>
    %347 = vector.shape_cast %346 : vector<1x128xf32> to vector<128xf32>
    %348 = vector.shape_cast %347 : vector<128xf32> to vector<1x1x128xf32>
    %349 = vector.broadcast %348 : vector<1x1x128xf32> to vector<8x8x128xf32>
    %350 = arith.mulf %345, %349 : vector<8x8x128xf32>
    %351 = arith.addf %344, %350 : vector<8x8x128xf32>
    %352 = vector.extract_strided_slice %323 {offsets = [4, 0, 0], sizes = [8, 8, 128], strides = [1, 1, 1]} : vector<14x8x128xf32> to vector<8x8x128xf32>
    %c34 = arith.constant 34 : index
    %c0_73 = arith.constant 0 : index
    %353 = vector.load %arg2[%c34, %c0_73] : memref<49x128xf32, #tpu.memory_space<vmem>>, vector<1x128xf32>
    %354 = vector.shape_cast %353 : vector<1x128xf32> to vector<128xf32>
    %355 = vector.shape_cast %354 : vector<128xf32> to vector<1x1x128xf32>
    %356 = vector.broadcast %355 : vector<1x1x128xf32> to vector<8x8x128xf32>
    %357 = arith.mulf %352, %356 : vector<8x8x128xf32>
    %358 = arith.addf %351, %357 : vector<8x8x128xf32>
    %359 = vector.extract_strided_slice %323 {offsets = [5, 0, 0], sizes = [8, 8, 128], strides = [1, 1, 1]} : vector<14x8x128xf32> to vector<8x8x128xf32>
    %c41 = arith.constant 41 : index
    %c0_74 = arith.constant 0 : index
    %360 = vector.load %arg2[%c41, %c0_74] : memref<49x128xf32, #tpu.memory_space<vmem>>, vector<1x128xf32>
    %361 = vector.shape_cast %360 : vector<1x128xf32> to vector<128xf32>
    %362 = vector.shape_cast %361 : vector<128xf32> to vector<1x1x128xf32>
    %363 = vector.broadcast %362 : vector<1x1x128xf32> to vector<8x8x128xf32>
    %364 = arith.mulf %359, %363 : vector<8x8x128xf32>
    %365 = arith.addf %358, %364 : vector<8x8x128xf32>
    %366 = vector.extract_strided_slice %323 {offsets = [6, 0, 0], sizes = [8, 8, 128], strides = [1, 1, 1]} : vector<14x8x128xf32> to vector<8x8x128xf32>
    %c48 = arith.constant 48 : index
    %c0_75 = arith.constant 0 : index
    %367 = vector.load %arg2[%c48, %c0_75] : memref<49x128xf32, #tpu.memory_space<vmem>>, vector<1x128xf32>
    %368 = vector.shape_cast %367 : vector<1x128xf32> to vector<128xf32>
    %369 = vector.shape_cast %368 : vector<128xf32> to vector<1x1x128xf32>
    %370 = vector.broadcast %369 : vector<1x1x128xf32> to vector<8x8x128xf32>
    %371 = arith.mulf %366, %370 : vector<8x8x128xf32>
    %372 = arith.addf %365, %371 : vector<8x8x128xf32>
    %c0_76 = arith.constant 0 : index
    %c0_77 = arith.constant 0 : index
    %c0_78 = arith.constant 0 : index
    %c0_79 = arith.constant 0 : index
    %373 = vector.load %arg4[%c0_76, %c0_77, %c0_78, %c0_79] : memref<2x8x8x128xf32, #tpu.memory_space<vmem>>, vector<1x8x8x128xf32>
    %374 = vector.shape_cast %373 : vector<1x8x8x128xf32> to vector<8x8x128xf32>
    %375 = vector.shape_cast %372 : vector<8x8x128xf32> to vector<1x8x8x128xf32>
    tpu.vector_store %arg4[%c0_76, %c0_77, %c0_78, %c0_79], %375 {strides = array<i32>} : memref<2x8x8x128xf32, #tpu.memory_space<vmem>>, vector<1x8x8x128xf32>,
    %c1_80 = arith.constant 1 : index
    %c0_81 = arith.constant 0 : index
    %c0_82 = arith.constant 0 : index
    %c0_83 = arith.constant 0 : index
    %376 = vector.load %arg1[%c1_80, %c0_81, %c0_82, %c0_83] : memref<2x8x8x128xf32, #tpu.memory_space<vmem>>, vector<1x8x8x128xf32>
    %377 = vector.shape_cast %376 : vector<1x8x8x128xf32> to vector<8x8x128xf32>
    %c3_84 = arith.constant 3 : index
    %c8_85 = arith.constant 8 : index
    %c0_86 = arith.constant 0 : index
    %378 = vector.load %arg5[%c3_84, %c8_85, %c0_86] : memref<14x24x128xf32, #tpu.memory_space<vmem>>, vector<8x8x128xf32>
    tpu.vector_store %arg5[%c3_84, %c8_85, %c0_86], %377 {strides = array<i32>} : memref<14x24x128xf32, #tpu.memory_space<vmem>>, vector<8x8x128xf32>,
    %c0_87 = arith.constant 0 : index
    %c0_88 = arith.constant 0 : index
    %c0_89 = arith.constant 0 : index
    %379 = vector.load %arg5[%c0_87, %c0_88, %c0_89] : memref<14x24x128xf32, #tpu.memory_space<vmem>>, vector<14x24x128xf32>
    %c3_i32_90 = arith.constant 3 : i32
    %380 = tpu.dynamic_rotate %379 by %c3_i32_90 dim 1 : vector<14x24x128xf32>, i32 -> vector<14x24x128xf32>
    %381 = vector.extract_strided_slice %380 {offsets = [0, 8, 0], sizes = [14, 8, 128], strides = [1, 1, 1]} : vector<14x24x128xf32> to vector<14x8x128xf32>
    %382 = vector.extract_strided_slice %381 {offsets = [0, 0, 0], sizes = [8, 8, 128], strides = [1, 1, 1]} : vector<14x8x128xf32> to vector<8x8x128xf32>
    %c0_91 = arith.constant 0 : index
    %c0_92 = arith.constant 0 : index
    %383 = vector.load %arg2[%c0_91, %c0_92] : memref<49x128xf32, #tpu.memory_space<vmem>>, vector<1x128xf32>
    %384 = vector.shape_cast %383 : vector<1x128xf32> to vector<128xf32>
    %385 = vector.shape_cast %384 : vector<128xf32> to vector<1x1x128xf32>
    %386 = vector.broadcast %385 : vector<1x1x128xf32> to vector<8x8x128xf32>
    %387 = arith.mulf %382, %386 : vector<8x8x128xf32>
    %388 = arith.addf %12, %387 : vector<8x8x128xf32>
    %389 = vector.extract_strided_slice %381 {offsets = [1, 0, 0], sizes = [8, 8, 128], strides = [1, 1, 1]} : vector<14x8x128xf32> to vector<8x8x128xf32>
    %c7_93 = arith.constant 7 : index
    %c0_94 = arith.constant 0 : index
    %390 = vector.load %arg2[%c7_93, %c0_94] : memref<49x128xf32, #tpu.memory_space<vmem>>, vector<1x128xf32>
    %391 = vector.shape_cast %390 : vector<1x128xf32> to vector<128xf32>
    %392 = vector.shape_cast %391 : vector<128xf32> to vector<1x1x128xf32>
    %393 = vector.broadcast %392 : vector<1x1x128xf32> to vector<8x8x128xf32>
    %394 = arith.mulf %389, %393 : vector<8x8x128xf32>
    %395 = arith.addf %388, %394 : vector<8x8x128xf32>
    %396 = vector.extract_strided_slice %381 {offsets = [2, 0, 0], sizes = [8, 8, 128], strides = [1, 1, 1]} : vector<14x8x128xf32> to vector<8x8x128xf32>
    %c14_95 = arith.constant 14 : index
    %c0_96 = arith.constant 0 : index
    %397 = vector.load %arg2[%c14_95, %c0_96] : memref<49x128xf32, #tpu.memory_space<vmem>>, vector<1x128xf32>
    %398 = vector.shape_cast %397 : vector<1x128xf32> to vector<128xf32>
    %399 = vector.shape_cast %398 : vector<128xf32> to vector<1x1x128xf32>
    %400 = vector.broadcast %399 : vector<1x1x128xf32> to vector<8x8x128xf32>
    %401 = arith.mulf %396, %400 : vector<8x8x128xf32>
    %402 = arith.addf %395, %401 : vector<8x8x128xf32>
    %403 = vector.extract_strided_slice %381 {offsets = [3, 0, 0], sizes = [8, 8, 128], strides = [1, 1, 1]} : vector<14x8x128xf32> to vector<8x8x128xf32>
    %c21_97 = arith.constant 21 : index
    %c0_98 = arith.constant 0 : index
    %404 = vector.load %arg2[%c21_97, %c0_98] : memref<49x128xf32, #tpu.memory_space<vmem>>, vector<1x128xf32>
    %405 = vector.shape_cast %404 : vector<1x128xf32> to vector<128xf32>
    %406 = vector.shape_cast %405 : vector<128xf32> to vector<1x1x128xf32>
    %407 = vector.broadcast %406 : vector<1x1x128xf32> to vector<8x8x128xf32>
    %408 = arith.mulf %403, %407 : vector<8x8x128xf32>
    %409 = arith.addf %402, %408 : vector<8x8x128xf32>
    %410 = vector.extract_strided_slice %381 {offsets = [4, 0, 0], sizes = [8, 8, 128], strides = [1, 1, 1]} : vector<14x8x128xf32> to vector<8x8x128xf32>
    %c28_99 = arith.constant 28 : index
    %c0_100 = arith.constant 0 : index
    %411 = vector.load %arg2[%c28_99, %c0_100] : memref<49x128xf32, #tpu.memory_space<vmem>>, vector<1x128xf32>
    %412 = vector.shape_cast %411 : vector<1x128xf32> to vector<128xf32>
    %413 = vector.shape_cast %412 : vector<128xf32> to vector<1x1x128xf32>
    %414 = vector.broadcast %413 : vector<1x1x128xf32> to vector<8x8x128xf32>
    %415 = arith.mulf %410, %414 : vector<8x8x128xf32>
    %416 = arith.addf %409, %415 : vector<8x8x128xf32>
    %417 = vector.extract_strided_slice %381 {offsets = [5, 0, 0], sizes = [8, 8, 128], strides = [1, 1, 1]} : vector<14x8x128xf32> to vector<8x8x128xf32>
    %c35_101 = arith.constant 35 : index
    %c0_102 = arith.constant 0 : index
    %418 = vector.load %arg2[%c35_101, %c0_102] : memref<49x128xf32, #tpu.memory_space<vmem>>, vector<1x128xf32>
    %419 = vector.shape_cast %418 : vector<1x128xf32> to vector<128xf32>
    %420 = vector.shape_cast %419 : vector<128xf32> to vector<1x1x128xf32>
    %421 = vector.broadcast %420 : vector<1x1x128xf32> to vector<8x8x128xf32>
    %422 = arith.mulf %417, %421 : vector<8x8x128xf32>
    %423 = arith.addf %416, %422 : vector<8x8x128xf32>
    %424 = vector.extract_strided_slice %381 {offsets = [6, 0, 0], sizes = [8, 8, 128], strides = [1, 1, 1]} : vector<14x8x128xf32> to vector<8x8x128xf32>
    %c42_103 = arith.constant 42 : index
    %c0_104 = arith.constant 0 : index
    %425 = vector.load %arg2[%c42_103, %c0_104] : memref<49x128xf32, #tpu.memory_space<vmem>>, vector<1x128xf32>
    %426 = vector.shape_cast %425 : vector<1x128xf32> to vector<128xf32>
    %427 = vector.shape_cast %426 : vector<128xf32> to vector<1x1x128xf32>
    %428 = vector.broadcast %427 : vector<1x1x128xf32> to vector<8x8x128xf32>
    %429 = arith.mulf %424, %428 : vector<8x8x128xf32>
    %430 = arith.addf %423, %429 : vector<8x8x128xf32>
    %c2_i32_105 = arith.constant 2 : i32
    %431 = tpu.dynamic_rotate %379 by %c2_i32_105 dim 1 : vector<14x24x128xf32>, i32 -> vector<14x24x128xf32>
    %432 = vector.extract_strided_slice %431 {offsets = [0, 8, 0], sizes = [14, 8, 128], strides = [1, 1, 1]} : vector<14x24x128xf32> to vector<14x8x128xf32>
    %433 = vector.extract_strided_slice %432 {offsets = [0, 0, 0], sizes = [8, 8, 128], strides = [1, 1, 1]} : vector<14x8x128xf32> to vector<8x8x128xf32>
    %c1_106 = arith.constant 1 : index
    %c0_107 = arith.constant 0 : index
    %434 = vector.load %arg2[%c1_106, %c0_107] : memref<49x128xf32, #tpu.memory_space<vmem>>, vector<1x128xf32>
    %435 = vector.shape_cast %434 : vector<1x128xf32> to vector<128xf32>
    %436 = vector.shape_cast %435 : vector<128xf32> to vector<1x1x128xf32>
    %437 = vector.broadcast %436 : vector<1x1x128xf32> to vector<8x8x128xf32>
    %438 = arith.mulf %433, %437 : vector<8x8x128xf32>
    %439 = arith.addf %430, %438 : vector<8x8x128xf32>
    %440 = vector.extract_strided_slice %432 {offsets = [1, 0, 0], sizes = [8, 8, 128], strides = [1, 1, 1]} : vector<14x8x128xf32> to vector<8x8x128xf32>
    %c8_108 = arith.constant 8 : index
    %c0_109 = arith.constant 0 : index
    %441 = vector.load %arg2[%c8_108, %c0_109] : memref<49x128xf32, #tpu.memory_space<vmem>>, vector<1x128xf32>
    %442 = vector.shape_cast %441 : vector<1x128xf32> to vector<128xf32>
    %443 = vector.shape_cast %442 : vector<128xf32> to vector<1x1x128xf32>
    %444 = vector.broadcast %443 : vector<1x1x128xf32> to vector<8x8x128xf32>
    %445 = arith.mulf %440, %444 : vector<8x8x128xf32>
    %446 = arith.addf %439, %445 : vector<8x8x128xf32>
    %447 = vector.extract_strided_slice %432 {offsets = [2, 0, 0], sizes = [8, 8, 128], strides = [1, 1, 1]} : vector<14x8x128xf32> to vector<8x8x128xf32>
    %c15_110 = arith.constant 15 : index
    %c0_111 = arith.constant 0 : index
    %448 = vector.load %arg2[%c15_110, %c0_111] : memref<49x128xf32, #tpu.memory_space<vmem>>, vector<1x128xf32>
    %449 = vector.shape_cast %448 : vector<1x128xf32> to vector<128xf32>
    %450 = vector.shape_cast %449 : vector<128xf32> to vector<1x1x128xf32>
    %451 = vector.broadcast %450 : vector<1x1x128xf32> to vector<8x8x128xf32>
    %452 = arith.mulf %447, %451 : vector<8x8x128xf32>
    %453 = arith.addf %446, %452 : vector<8x8x128xf32>
    %454 = vector.extract_strided_slice %432 {offsets = [3, 0, 0], sizes = [8, 8, 128], strides = [1, 1, 1]} : vector<14x8x128xf32> to vector<8x8x128xf32>
    %c22_112 = arith.constant 22 : index
    %c0_113 = arith.constant 0 : index
    %455 = vector.load %arg2[%c22_112, %c0_113] : memref<49x128xf32, #tpu.memory_space<vmem>>, vector<1x128xf32>
    %456 = vector.shape_cast %455 : vector<1x128xf32> to vector<128xf32>
    %457 = vector.shape_cast %456 : vector<128xf32> to vector<1x1x128xf32>
    %458 = vector.broadcast %457 : vector<1x1x128xf32> to vector<8x8x128xf32>
    %459 = arith.mulf %454, %458 : vector<8x8x128xf32>
    %460 = arith.addf %453, %459 : vector<8x8x128xf32>
    %461 = vector.extract_strided_slice %432 {offsets = [4, 0, 0], sizes = [8, 8, 128], strides = [1, 1, 1]} : vector<14x8x128xf32> to vector<8x8x128xf32>
    %c29_114 = arith.constant 29 : index
    %c0_115 = arith.constant 0 : index
    %462 = vector.load %arg2[%c29_114, %c0_115] : memref<49x128xf32, #tpu.memory_space<vmem>>, vector<1x128xf32>
    %463 = vector.shape_cast %462 : vector<1x128xf32> to vector<128xf32>
    %464 = vector.shape_cast %463 : vector<128xf32> to vector<1x1x128xf32>
    %465 = vector.broadcast %464 : vector<1x1x128xf32> to vector<8x8x128xf32>
    %466 = arith.mulf %461, %465 : vector<8x8x128xf32>
    %467 = arith.addf %460, %466 : vector<8x8x128xf32>
    %468 = vector.extract_strided_slice %432 {offsets = [5, 0, 0], sizes = [8, 8, 128], strides = [1, 1, 1]} : vector<14x8x128xf32> to vector<8x8x128xf32>
    %c36_116 = arith.constant 36 : index
    %c0_117 = arith.constant 0 : index
    %469 = vector.load %arg2[%c36_116, %c0_117] : memref<49x128xf32, #tpu.memory_space<vmem>>, vector<1x128xf32>
    %470 = vector.shape_cast %469 : vector<1x128xf32> to vector<128xf32>
    %471 = vector.shape_cast %470 : vector<128xf32> to vector<1x1x128xf32>
    %472 = vector.broadcast %471 : vector<1x1x128xf32> to vector<8x8x128xf32>
    %473 = arith.mulf %468, %472 : vector<8x8x128xf32>
    %474 = arith.addf %467, %473 : vector<8x8x128xf32>
    %475 = vector.extract_strided_slice %432 {offsets = [6, 0, 0], sizes = [8, 8, 128], strides = [1, 1, 1]} : vector<14x8x128xf32> to vector<8x8x128xf32>
    %c43_118 = arith.constant 43 : index
    %c0_119 = arith.constant 0 : index
    %476 = vector.load %arg2[%c43_118, %c0_119] : memref<49x128xf32, #tpu.memory_space<vmem>>, vector<1x128xf32>
    %477 = vector.shape_cast %476 : vector<1x128xf32> to vector<128xf32>
    %478 = vector.shape_cast %477 : vector<128xf32> to vector<1x1x128xf32>
    %479 = vector.broadcast %478 : vector<1x1x128xf32> to vector<8x8x128xf32>
    %480 = arith.mulf %475, %479 : vector<8x8x128xf32>
    %481 = arith.addf %474, %480 : vector<8x8x128xf32>
    %c1_i32_120 = arith.constant 1 : i32
    %482 = tpu.dynamic_rotate %379 by %c1_i32_120 dim 1 : vector<14x24x128xf32>, i32 -> vector<14x24x128xf32>
    %483 = vector.extract_strided_slice %482 {offsets = [0, 8, 0], sizes = [14, 8, 128], strides = [1, 1, 1]} : vector<14x24x128xf32> to vector<14x8x128xf32>
    %484 = vector.extract_strided_slice %483 {offsets = [0, 0, 0], sizes = [8, 8, 128], strides = [1, 1, 1]} : vector<14x8x128xf32> to vector<8x8x128xf32>
    %c2_121 = arith.constant 2 : index
    %c0_122 = arith.constant 0 : index
    %485 = vector.load %arg2[%c2_121, %c0_122] : memref<49x128xf32, #tpu.memory_space<vmem>>, vector<1x128xf32>
    %486 = vector.shape_cast %485 : vector<1x128xf32> to vector<128xf32>
    %487 = vector.shape_cast %486 : vector<128xf32> to vector<1x1x128xf32>
    %488 = vector.broadcast %487 : vector<1x1x128xf32> to vector<8x8x128xf32>
    %489 = arith.mulf %484, %488 : vector<8x8x128xf32>
    %490 = arith.addf %481, %489 : vector<8x8x128xf32>
    %491 = vector.extract_strided_slice %483 {offsets = [1, 0, 0], sizes = [8, 8, 128], strides = [1, 1, 1]} : vector<14x8x128xf32> to vector<8x8x128xf32>
    %c9_123 = arith.constant 9 : index
    %c0_124 = arith.constant 0 : index
    %492 = vector.load %arg2[%c9_123, %c0_124] : memref<49x128xf32, #tpu.memory_space<vmem>>, vector<1x128xf32>
    %493 = vector.shape_cast %492 : vector<1x128xf32> to vector<128xf32>
    %494 = vector.shape_cast %493 : vector<128xf32> to vector<1x1x128xf32>
    %495 = vector.broadcast %494 : vector<1x1x128xf32> to vector<8x8x128xf32>
    %496 = arith.mulf %491, %495 : vector<8x8x128xf32>
    %497 = arith.addf %490, %496 : vector<8x8x128xf32>
    %498 = vector.extract_strided_slice %483 {offsets = [2, 0, 0], sizes = [8, 8, 128], strides = [1, 1, 1]} : vector<14x8x128xf32> to vector<8x8x128xf32>
    %c16_125 = arith.constant 16 : index
    %c0_126 = arith.constant 0 : index
    %499 = vector.load %arg2[%c16_125, %c0_126] : memref<49x128xf32, #tpu.memory_space<vmem>>, vector<1x128xf32>
    %500 = vector.shape_cast %499 : vector<1x128xf32> to vector<128xf32>
    %501 = vector.shape_cast %500 : vector<128xf32> to vector<1x1x128xf32>
    %502 = vector.broadcast %501 : vector<1x1x128xf32> to vector<8x8x128xf32>
    %503 = arith.mulf %498, %502 : vector<8x8x128xf32>
    %504 = arith.addf %497, %503 : vector<8x8x128xf32>
    %505 = vector.extract_strided_slice %483 {offsets = [3, 0, 0], sizes = [8, 8, 128], strides = [1, 1, 1]} : vector<14x8x128xf32> to vector<8x8x128xf32>
    %c23_127 = arith.constant 23 : index
    %c0_128 = arith.constant 0 : index
    %506 = vector.load %arg2[%c23_127, %c0_128] : memref<49x128xf32, #tpu.memory_space<vmem>>, vector<1x128xf32>
    %507 = vector.shape_cast %506 : vector<1x128xf32> to vector<128xf32>
    %508 = vector.shape_cast %507 : vector<128xf32> to vector<1x1x128xf32>
    %509 = vector.broadcast %508 : vector<1x1x128xf32> to vector<8x8x128xf32>
    %510 = arith.mulf %505, %509 : vector<8x8x128xf32>
    %511 = arith.addf %504, %510 : vector<8x8x128xf32>
    %512 = vector.extract_strided_slice %483 {offsets = [4, 0, 0], sizes = [8, 8, 128], strides = [1, 1, 1]} : vector<14x8x128xf32> to vector<8x8x128xf32>
    %c30_129 = arith.constant 30 : index
    %c0_130 = arith.constant 0 : index
    %513 = vector.load %arg2[%c30_129, %c0_130] : memref<49x128xf32, #tpu.memory_space<vmem>>, vector<1x128xf32>
    %514 = vector.shape_cast %513 : vector<1x128xf32> to vector<128xf32>
    %515 = vector.shape_cast %514 : vector<128xf32> to vector<1x1x128xf32>
    %516 = vector.broadcast %515 : vector<1x1x128xf32> to vector<8x8x128xf32>
    %517 = arith.mulf %512, %516 : vector<8x8x128xf32>
    %518 = arith.addf %511, %517 : vector<8x8x128xf32>
    %519 = vector.extract_strided_slice %483 {offsets = [5, 0, 0], sizes = [8, 8, 128], strides = [1, 1, 1]} : vector<14x8x128xf32> to vector<8x8x128xf32>
    %c37_131 = arith.constant 37 : index
    %c0_132 = arith.constant 0 : index
    %520 = vector.load %arg2[%c37_131, %c0_132] : memref<49x128xf32, #tpu.memory_space<vmem>>, vector<1x128xf32>
    %521 = vector.shape_cast %520 : vector<1x128xf32> to vector<128xf32>
    %522 = vector.shape_cast %521 : vector<128xf32> to vector<1x1x128xf32>
    %523 = vector.broadcast %522 : vector<1x1x128xf32> to vector<8x8x128xf32>
    %524 = arith.mulf %519, %523 : vector<8x8x128xf32>
    %525 = arith.addf %518, %524 : vector<8x8x128xf32>
    %526 = vector.extract_strided_slice %483 {offsets = [6, 0, 0], sizes = [8, 8, 128], strides = [1, 1, 1]} : vector<14x8x128xf32> to vector<8x8x128xf32>
    %c44_133 = arith.constant 44 : index
    %c0_134 = arith.constant 0 : index
    %527 = vector.load %arg2[%c44_133, %c0_134] : memref<49x128xf32, #tpu.memory_space<vmem>>, vector<1x128xf32>
    %528 = vector.shape_cast %527 : vector<1x128xf32> to vector<128xf32>
    %529 = vector.shape_cast %528 : vector<128xf32> to vector<1x1x128xf32>
    %530 = vector.broadcast %529 : vector<1x1x128xf32> to vector<8x8x128xf32>
    %531 = arith.mulf %526, %530 : vector<8x8x128xf32>
    %532 = arith.addf %525, %531 : vector<8x8x128xf32>
    %533 = vector.extract_strided_slice %379 {offsets = [0, 8, 0], sizes = [14, 8, 128], strides = [1, 1, 1]} : vector<14x24x128xf32> to vector<14x8x128xf32>
    %534 = vector.extract_strided_slice %533 {offsets = [0, 0, 0], sizes = [8, 8, 128], strides = [1, 1, 1]} : vector<14x8x128xf32> to vector<8x8x128xf32>
    %c3_135 = arith.constant 3 : index
    %c0_136 = arith.constant 0 : index
    %535 = vector.load %arg2[%c3_135, %c0_136] : memref<49x128xf32, #tpu.memory_space<vmem>>, vector<1x128xf32>
    %536 = vector.shape_cast %535 : vector<1x128xf32> to vector<128xf32>
    %537 = vector.shape_cast %536 : vector<128xf32> to vector<1x1x128xf32>
    %538 = vector.broadcast %537 : vector<1x1x128xf32> to vector<8x8x128xf32>
    %539 = arith.mulf %534, %538 : vector<8x8x128xf32>
    %540 = arith.addf %532, %539 : vector<8x8x128xf32>
    %541 = vector.extract_strided_slice %533 {offsets = [1, 0, 0], sizes = [8, 8, 128], strides = [1, 1, 1]} : vector<14x8x128xf32> to vector<8x8x128xf32>
    %c10_137 = arith.constant 10 : index
    %c0_138 = arith.constant 0 : index
    %542 = vector.load %arg2[%c10_137, %c0_138] : memref<49x128xf32, #tpu.memory_space<vmem>>, vector<1x128xf32>
    %543 = vector.shape_cast %542 : vector<1x128xf32> to vector<128xf32>
    %544 = vector.shape_cast %543 : vector<128xf32> to vector<1x1x128xf32>
    %545 = vector.broadcast %544 : vector<1x1x128xf32> to vector<8x8x128xf32>
    %546 = arith.mulf %541, %545 : vector<8x8x128xf32>
    %547 = arith.addf %540, %546 : vector<8x8x128xf32>
    %548 = vector.extract_strided_slice %533 {offsets = [2, 0, 0], sizes = [8, 8, 128], strides = [1, 1, 1]} : vector<14x8x128xf32> to vector<8x8x128xf32>
    %c17_139 = arith.constant 17 : index
    %c0_140 = arith.constant 0 : index
    %549 = vector.load %arg2[%c17_139, %c0_140] : memref<49x128xf32, #tpu.memory_space<vmem>>, vector<1x128xf32>
    %550 = vector.shape_cast %549 : vector<1x128xf32> to vector<128xf32>
    %551 = vector.shape_cast %550 : vector<128xf32> to vector<1x1x128xf32>
    %552 = vector.broadcast %551 : vector<1x1x128xf32> to vector<8x8x128xf32>
    %553 = arith.mulf %548, %552 : vector<8x8x128xf32>
    %554 = arith.addf %547, %553 : vector<8x8x128xf32>
    %555 = vector.extract_strided_slice %533 {offsets = [3, 0, 0], sizes = [8, 8, 128], strides = [1, 1, 1]} : vector<14x8x128xf32> to vector<8x8x128xf32>
    %c24_141 = arith.constant 24 : index
    %c0_142 = arith.constant 0 : index
    %556 = vector.load %arg2[%c24_141, %c0_142] : memref<49x128xf32, #tpu.memory_space<vmem>>, vector<1x128xf32>
    %557 = vector.shape_cast %556 : vector<1x128xf32> to vector<128xf32>
    %558 = vector.shape_cast %557 : vector<128xf32> to vector<1x1x128xf32>
    %559 = vector.broadcast %558 : vector<1x1x128xf32> to vector<8x8x128xf32>
    %560 = arith.mulf %555, %559 : vector<8x8x128xf32>
    %561 = arith.addf %554, %560 : vector<8x8x128xf32>
    %562 = vector.extract_strided_slice %533 {offsets = [4, 0, 0], sizes = [8, 8, 128], strides = [1, 1, 1]} : vector<14x8x128xf32> to vector<8x8x128xf32>
    %c31_143 = arith.constant 31 : index
    %c0_144 = arith.constant 0 : index
    %563 = vector.load %arg2[%c31_143, %c0_144] : memref<49x128xf32, #tpu.memory_space<vmem>>, vector<1x128xf32>
    %564 = vector.shape_cast %563 : vector<1x128xf32> to vector<128xf32>
    %565 = vector.shape_cast %564 : vector<128xf32> to vector<1x1x128xf32>
    %566 = vector.broadcast %565 : vector<1x1x128xf32> to vector<8x8x128xf32>
    %567 = arith.mulf %562, %566 : vector<8x8x128xf32>
    %568 = arith.addf %561, %567 : vector<8x8x128xf32>
    %569 = vector.extract_strided_slice %533 {offsets = [5, 0, 0], sizes = [8, 8, 128], strides = [1, 1, 1]} : vector<14x8x128xf32> to vector<8x8x128xf32>
    %c38_145 = arith.constant 38 : index
    %c0_146 = arith.constant 0 : index
    %570 = vector.load %arg2[%c38_145, %c0_146] : memref<49x128xf32, #tpu.memory_space<vmem>>, vector<1x128xf32>
    %571 = vector.shape_cast %570 : vector<1x128xf32> to vector<128xf32>
    %572 = vector.shape_cast %571 : vector<128xf32> to vector<1x1x128xf32>
    %573 = vector.broadcast %572 : vector<1x1x128xf32> to vector<8x8x128xf32>
    %574 = arith.mulf %569, %573 : vector<8x8x128xf32>
    %575 = arith.addf %568, %574 : vector<8x8x128xf32>
    %576 = vector.extract_strided_slice %533 {offsets = [6, 0, 0], sizes = [8, 8, 128], strides = [1, 1, 1]} : vector<14x8x128xf32> to vector<8x8x128xf32>
    %c45_147 = arith.constant 45 : index
    %c0_148 = arith.constant 0 : index
    %577 = vector.load %arg2[%c45_147, %c0_148] : memref<49x128xf32, #tpu.memory_space<vmem>>, vector<1x128xf32>
    %578 = vector.shape_cast %577 : vector<1x128xf32> to vector<128xf32>
    %579 = vector.shape_cast %578 : vector<128xf32> to vector<1x1x128xf32>
    %580 = vector.broadcast %579 : vector<1x1x128xf32> to vector<8x8x128xf32>
    %581 = arith.mulf %576, %580 : vector<8x8x128xf32>
    %582 = arith.addf %575, %581 : vector<8x8x128xf32>
    %c23_i32_149 = arith.constant 23 : i32
    %583 = tpu.dynamic_rotate %379 by %c23_i32_149 dim 1 : vector<14x24x128xf32>, i32 -> vector<14x24x128xf32>
    %584 = vector.extract_strided_slice %583 {offsets = [0, 8, 0], sizes = [14, 8, 128], strides = [1, 1, 1]} : vector<14x24x128xf32> to vector<14x8x128xf32>
    %585 = vector.extract_strided_slice %584 {offsets = [0, 0, 0], sizes = [8, 8, 128], strides = [1, 1, 1]} : vector<14x8x128xf32> to vector<8x8x128xf32>
    %c4_150 = arith.constant 4 : index
    %c0_151 = arith.constant 0 : index
    %586 = vector.load %arg2[%c4_150, %c0_151] : memref<49x128xf32, #tpu.memory_space<vmem>>, vector<1x128xf32>
    %587 = vector.shape_cast %586 : vector<1x128xf32> to vector<128xf32>
    %588 = vector.shape_cast %587 : vector<128xf32> to vector<1x1x128xf32>
    %589 = vector.broadcast %588 : vector<1x1x128xf32> to vector<8x8x128xf32>
    %590 = arith.mulf %585, %589 : vector<8x8x128xf32>
    %591 = arith.addf %582, %590 : vector<8x8x128xf32>
    %592 = vector.extract_strided_slice %584 {offsets = [1, 0, 0], sizes = [8, 8, 128], strides = [1, 1, 1]} : vector<14x8x128xf32> to vector<8x8x128xf32>
    %c11_152 = arith.constant 11 : index
    %c0_153 = arith.constant 0 : index
    %593 = vector.load %arg2[%c11_152, %c0_153] : memref<49x128xf32, #tpu.memory_space<vmem>>, vector<1x128xf32>
    %594 = vector.shape_cast %593 : vector<1x128xf32> to vector<128xf32>
    %595 = vector.shape_cast %594 : vector<128xf32> to vector<1x1x128xf32>
    %596 = vector.broadcast %595 : vector<1x1x128xf32> to vector<8x8x128xf32>
    %597 = arith.mulf %592, %596 : vector<8x8x128xf32>
    %598 = arith.addf %591, %597 : vector<8x8x128xf32>
    %599 = vector.extract_strided_slice %584 {offsets = [2, 0, 0], sizes = [8, 8, 128], strides = [1, 1, 1]} : vector<14x8x128xf32> to vector<8x8x128xf32>
    %c18_154 = arith.constant 18 : index
    %c0_155 = arith.constant 0 : index
    %600 = vector.load %arg2[%c18_154, %c0_155] : memref<49x128xf32, #tpu.memory_space<vmem>>, vector<1x128xf32>
    %601 = vector.shape_cast %600 : vector<1x128xf32> to vector<128xf32>
    %602 = vector.shape_cast %601 : vector<128xf32> to vector<1x1x128xf32>
    %603 = vector.broadcast %602 : vector<1x1x128xf32> to vector<8x8x128xf32>
    %604 = arith.mulf %599, %603 : vector<8x8x128xf32>
    %605 = arith.addf %598, %604 : vector<8x8x128xf32>
    %606 = vector.extract_strided_slice %584 {offsets = [3, 0, 0], sizes = [8, 8, 128], strides = [1, 1, 1]} : vector<14x8x128xf32> to vector<8x8x128xf32>
    %c25_156 = arith.constant 25 : index
    %c0_157 = arith.constant 0 : index
    %607 = vector.load %arg2[%c25_156, %c0_157] : memref<49x128xf32, #tpu.memory_space<vmem>>, vector<1x128xf32>
    %608 = vector.shape_cast %607 : vector<1x128xf32> to vector<128xf32>
    %609 = vector.shape_cast %608 : vector<128xf32> to vector<1x1x128xf32>
    %610 = vector.broadcast %609 : vector<1x1x128xf32> to vector<8x8x128xf32>
    %611 = arith.mulf %606, %610 : vector<8x8x128xf32>
    %612 = arith.addf %605, %611 : vector<8x8x128xf32>
    %613 = vector.extract_strided_slice %584 {offsets = [4, 0, 0], sizes = [8, 8, 128], strides = [1, 1, 1]} : vector<14x8x128xf32> to vector<8x8x128xf32>
    %c32_158 = arith.constant 32 : index
    %c0_159 = arith.constant 0 : index
    %614 = vector.load %arg2[%c32_158, %c0_159] : memref<49x128xf32, #tpu.memory_space<vmem>>, vector<1x128xf32>
    %615 = vector.shape_cast %614 : vector<1x128xf32> to vector<128xf32>
    %616 = vector.shape_cast %615 : vector<128xf32> to vector<1x1x128xf32>
    %617 = vector.broadcast %616 : vector<1x1x128xf32> to vector<8x8x128xf32>
    %618 = arith.mulf %613, %617 : vector<8x8x128xf32>
    %619 = arith.addf %612, %618 : vector<8x8x128xf32>
    %620 = vector.extract_strided_slice %584 {offsets = [5, 0, 0], sizes = [8, 8, 128], strides = [1, 1, 1]} : vector<14x8x128xf32> to vector<8x8x128xf32>
    %c39_160 = arith.constant 39 : index
    %c0_161 = arith.constant 0 : index
    %621 = vector.load %arg2[%c39_160, %c0_161] : memref<49x128xf32, #tpu.memory_space<vmem>>, vector<1x128xf32>
    %622 = vector.shape_cast %621 : vector<1x128xf32> to vector<128xf32>
    %623 = vector.shape_cast %622 : vector<128xf32> to vector<1x1x128xf32>
    %624 = vector.broadcast %623 : vector<1x1x128xf32> to vector<8x8x128xf32>
    %625 = arith.mulf %620, %624 : vector<8x8x128xf32>
    %626 = arith.addf %619, %625 : vector<8x8x128xf32>
    %627 = vector.extract_strided_slice %584 {offsets = [6, 0, 0], sizes = [8, 8, 128], strides = [1, 1, 1]} : vector<14x8x128xf32> to vector<8x8x128xf32>
    %c46_162 = arith.constant 46 : index
    %c0_163 = arith.constant 0 : index
    %628 = vector.load %arg2[%c46_162, %c0_163] : memref<49x128xf32, #tpu.memory_space<vmem>>, vector<1x128xf32>
    %629 = vector.shape_cast %628 : vector<1x128xf32> to vector<128xf32>
    %630 = vector.shape_cast %629 : vector<128xf32> to vector<1x1x128xf32>
    %631 = vector.broadcast %630 : vector<1x1x128xf32> to vector<8x8x128xf32>
    %632 = arith.mulf %627, %631 : vector<8x8x128xf32>
    %633 = arith.addf %626, %632 : vector<8x8x128xf32>
    %c22_i32_164 = arith.constant 22 : i32
    %634 = tpu.dynamic_rotate %379 by %c22_i32_164 dim 1 : vector<14x24x128xf32>, i32 -> vector<14x24x128xf32>
    %635 = vector.extract_strided_slice %634 {offsets = [0, 8, 0], sizes = [14, 8, 128], strides = [1, 1, 1]} : vector<14x24x128xf32> to vector<14x8x128xf32>
    %636 = vector.extract_strided_slice %635 {offsets = [0, 0, 0], sizes = [8, 8, 128], strides = [1, 1, 1]} : vector<14x8x128xf32> to vector<8x8x128xf32>
    %c5_165 = arith.constant 5 : index
    %c0_166 = arith.constant 0 : index
    %637 = vector.load %arg2[%c5_165, %c0_166] : memref<49x128xf32, #tpu.memory_space<vmem>>, vector<1x128xf32>
    %638 = vector.shape_cast %637 : vector<1x128xf32> to vector<128xf32>
    %639 = vector.shape_cast %638 : vector<128xf32> to vector<1x1x128xf32>
    %640 = vector.broadcast %639 : vector<1x1x128xf32> to vector<8x8x128xf32>
    %641 = arith.mulf %636, %640 : vector<8x8x128xf32>
    %642 = arith.addf %633, %641 : vector<8x8x128xf32>
    %643 = vector.extract_strided_slice %635 {offsets = [1, 0, 0], sizes = [8, 8, 128], strides = [1, 1, 1]} : vector<14x8x128xf32> to vector<8x8x128xf32>
    %c12_167 = arith.constant 12 : index
    %c0_168 = arith.constant 0 : index
    %644 = vector.load %arg2[%c12_167, %c0_168] : memref<49x128xf32, #tpu.memory_space<vmem>>, vector<1x128xf32>
    %645 = vector.shape_cast %644 : vector<1x128xf32> to vector<128xf32>
    %646 = vector.shape_cast %645 : vector<128xf32> to vector<1x1x128xf32>
    %647 = vector.broadcast %646 : vector<1x1x128xf32> to vector<8x8x128xf32>
    %648 = arith.mulf %643, %647 : vector<8x8x128xf32>
    %649 = arith.addf %642, %648 : vector<8x8x128xf32>
    %650 = vector.extract_strided_slice %635 {offsets = [2, 0, 0], sizes = [8, 8, 128], strides = [1, 1, 1]} : vector<14x8x128xf32> to vector<8x8x128xf32>
    %c19_169 = arith.constant 19 : index
    %c0_170 = arith.constant 0 : index
    %651 = vector.load %arg2[%c19_169, %c0_170] : memref<49x128xf32, #tpu.memory_space<vmem>>, vector<1x128xf32>
    %652 = vector.shape_cast %651 : vector<1x128xf32> to vector<128xf32>
    %653 = vector.shape_cast %652 : vector<128xf32> to vector<1x1x128xf32>
    %654 = vector.broadcast %653 : vector<1x1x128xf32> to vector<8x8x128xf32>
    %655 = arith.mulf %650, %654 : vector<8x8x128xf32>
    %656 = arith.addf %649, %655 : vector<8x8x128xf32>
    %657 = vector.extract_strided_slice %635 {offsets = [3, 0, 0], sizes = [8, 8, 128], strides = [1, 1, 1]} : vector<14x8x128xf32> to vector<8x8x128xf32>
    %c26_171 = arith.constant 26 : index
    %c0_172 = arith.constant 0 : index
    %658 = vector.load %arg2[%c26_171, %c0_172] : memref<49x128xf32, #tpu.memory_space<vmem>>, vector<1x128xf32>
    %659 = vector.shape_cast %658 : vector<1x128xf32> to vector<128xf32>
    %660 = vector.shape_cast %659 : vector<128xf32> to vector<1x1x128xf32>
    %661 = vector.broadcast %660 : vector<1x1x128xf32> to vector<8x8x128xf32>
    %662 = arith.mulf %657, %661 : vector<8x8x128xf32>
    %663 = arith.addf %656, %662 : vector<8x8x128xf32>
    %664 = vector.extract_strided_slice %635 {offsets = [4, 0, 0], sizes = [8, 8, 128], strides = [1, 1, 1]} : vector<14x8x128xf32> to vector<8x8x128xf32>
    %c33_173 = arith.constant 33 : index
    %c0_174 = arith.constant 0 : index
    %665 = vector.load %arg2[%c33_173, %c0_174] : memref<49x128xf32, #tpu.memory_space<vmem>>, vector<1x128xf32>
    %666 = vector.shape_cast %665 : vector<1x128xf32> to vector<128xf32>
    %667 = vector.shape_cast %666 : vector<128xf32> to vector<1x1x128xf32>
    %668 = vector.broadcast %667 : vector<1x1x128xf32> to vector<8x8x128xf32>
    %669 = arith.mulf %664, %668 : vector<8x8x128xf32>
    %670 = arith.addf %663, %669 : vector<8x8x128xf32>
    %671 = vector.extract_strided_slice %635 {offsets = [5, 0, 0], sizes = [8, 8, 128], strides = [1, 1, 1]} : vector<14x8x128xf32> to vector<8x8x128xf32>
    %c40_175 = arith.constant 40 : index
    %c0_176 = arith.constant 0 : index
    %672 = vector.load %arg2[%c40_175, %c0_176] : memref<49x128xf32, #tpu.memory_space<vmem>>, vector<1x128xf32>
    %673 = vector.shape_cast %672 : vector<1x128xf32> to vector<128xf32>
    %674 = vector.shape_cast %673 : vector<128xf32> to vector<1x1x128xf32>
    %675 = vector.broadcast %674 : vector<1x1x128xf32> to vector<8x8x128xf32>
    %676 = arith.mulf %671, %675 : vector<8x8x128xf32>
    %677 = arith.addf %670, %676 : vector<8x8x128xf32>
    %678 = vector.extract_strided_slice %635 {offsets = [6, 0, 0], sizes = [8, 8, 128], strides = [1, 1, 1]} : vector<14x8x128xf32> to vector<8x8x128xf32>
    %c47_177 = arith.constant 47 : index
    %c0_178 = arith.constant 0 : index
    %679 = vector.load %arg2[%c47_177, %c0_178] : memref<49x128xf32, #tpu.memory_space<vmem>>, vector<1x128xf32>
    %680 = vector.shape_cast %679 : vector<1x128xf32> to vector<128xf32>
    %681 = vector.shape_cast %680 : vector<128xf32> to vector<1x1x128xf32>
    %682 = vector.broadcast %681 : vector<1x1x128xf32> to vector<8x8x128xf32>
    %683 = arith.mulf %678, %682 : vector<8x8x128xf32>
    %684 = arith.addf %677, %683 : vector<8x8x128xf32>
    %c21_i32_179 = arith.constant 21 : i32
    %685 = tpu.dynamic_rotate %379 by %c21_i32_179 dim 1 : vector<14x24x128xf32>, i32 -> vector<14x24x128xf32>
    %686 = vector.extract_strided_slice %685 {offsets = [0, 8, 0], sizes = [14, 8, 128], strides = [1, 1, 1]} : vector<14x24x128xf32> to vector<14x8x128xf32>
    %687 = vector.extract_strided_slice %686 {offsets = [0, 0, 0], sizes = [8, 8, 128], strides = [1, 1, 1]} : vector<14x8x128xf32> to vector<8x8x128xf32>
    %c6_180 = arith.constant 6 : index
    %c0_181 = arith.constant 0 : index
    %688 = vector.load %arg2[%c6_180, %c0_181] : memref<49x128xf32, #tpu.memory_space<vmem>>, vector<1x128xf32>
    %689 = vector.shape_cast %688 : vector<1x128xf32> to vector<128xf32>
    %690 = vector.shape_cast %689 : vector<128xf32> to vector<1x1x128xf32>
    %691 = vector.broadcast %690 : vector<1x1x128xf32> to vector<8x8x128xf32>
    %692 = arith.mulf %687, %691 : vector<8x8x128xf32>
    %693 = arith.addf %684, %692 : vector<8x8x128xf32>
    %694 = vector.extract_strided_slice %686 {offsets = [1, 0, 0], sizes = [8, 8, 128], strides = [1, 1, 1]} : vector<14x8x128xf32> to vector<8x8x128xf32>
    %c13_182 = arith.constant 13 : index
    %c0_183 = arith.constant 0 : index
    %695 = vector.load %arg2[%c13_182, %c0_183] : memref<49x128xf32, #tpu.memory_space<vmem>>, vector<1x128xf32>
    %696 = vector.shape_cast %695 : vector<1x128xf32> to vector<128xf32>
    %697 = vector.shape_cast %696 : vector<128xf32> to vector<1x1x128xf32>
    %698 = vector.broadcast %697 : vector<1x1x128xf32> to vector<8x8x128xf32>
    %699 = arith.mulf %694, %698 : vector<8x8x128xf32>
    %700 = arith.addf %693, %699 : vector<8x8x128xf32>
    %701 = vector.extract_strided_slice %686 {offsets = [2, 0, 0], sizes = [8, 8, 128], strides = [1, 1, 1]} : vector<14x8x128xf32> to vector<8x8x128xf32>
    %c20_184 = arith.constant 20 : index
    %c0_185 = arith.constant 0 : index
    %702 = vector.load %arg2[%c20_184, %c0_185] : memref<49x128xf32, #tpu.memory_space<vmem>>, vector<1x128xf32>
    %703 = vector.shape_cast %702 : vector<1x128xf32> to vector<128xf32>
    %704 = vector.shape_cast %703 : vector<128xf32> to vector<1x1x128xf32>
    %705 = vector.broadcast %704 : vector<1x1x128xf32> to vector<8x8x128xf32>
    %706 = arith.mulf %701, %705 : vector<8x8x128xf32>
    %707 = arith.addf %700, %706 : vector<8x8x128xf32>
    %708 = vector.extract_strided_slice %686 {offsets = [3, 0, 0], sizes = [8, 8, 128], strides = [1, 1, 1]} : vector<14x8x128xf32> to vector<8x8x128xf32>
    %c27_186 = arith.constant 27 : index
    %c0_187 = arith.constant 0 : index
    %709 = vector.load %arg2[%c27_186, %c0_187] : memref<49x128xf32, #tpu.memory_space<vmem>>, vector<1x128xf32>
    %710 = vector.shape_cast %709 : vector<1x128xf32> to vector<128xf32>
    %711 = vector.shape_cast %710 : vector<128xf32> to vector<1x1x128xf32>
    %712 = vector.broadcast %711 : vector<1x1x128xf32> to vector<8x8x128xf32>
    %713 = arith.mulf %708, %712 : vector<8x8x128xf32>
    %714 = arith.addf %707, %713 : vector<8x8x128xf32>
    %715 = vector.extract_strided_slice %686 {offsets = [4, 0, 0], sizes = [8, 8, 128], strides = [1, 1, 1]} : vector<14x8x128xf32> to vector<8x8x128xf32>
    %c34_188 = arith.constant 34 : index
    %c0_189 = arith.constant 0 : index
    %716 = vector.load %arg2[%c34_188, %c0_189] : memref<49x128xf32, #tpu.memory_space<vmem>>, vector<1x128xf32>
    %717 = vector.shape_cast %716 : vector<1x128xf32> to vector<128xf32>
    %718 = vector.shape_cast %717 : vector<128xf32> to vector<1x1x128xf32>
    %719 = vector.broadcast %718 : vector<1x1x128xf32> to vector<8x8x128xf32>
    %720 = arith.mulf %715, %719 : vector<8x8x128xf32>
    %721 = arith.addf %714, %720 : vector<8x8x128xf32>
    %722 = vector.extract_strided_slice %686 {offsets = [5, 0, 0], sizes = [8, 8, 128], strides = [1, 1, 1]} : vector<14x8x128xf32> to vector<8x8x128xf32>
    %c41_190 = arith.constant 41 : index
    %c0_191 = arith.constant 0 : index
    %723 = vector.load %arg2[%c41_190, %c0_191] : memref<49x128xf32, #tpu.memory_space<vmem>>, vector<1x128xf32>
    %724 = vector.shape_cast %723 : vector<1x128xf32> to vector<128xf32>
    %725 = vector.shape_cast %724 : vector<128xf32> to vector<1x1x128xf32>
    %726 = vector.broadcast %725 : vector<1x1x128xf32> to vector<8x8x128xf32>
    %727 = arith.mulf %722, %726 : vector<8x8x128xf32>
    %728 = arith.addf %721, %727 : vector<8x8x128xf32>
    %729 = vector.extract_strided_slice %686 {offsets = [6, 0, 0], sizes = [8, 8, 128], strides = [1, 1, 1]} : vector<14x8x128xf32> to vector<8x8x128xf32>
    %c48_192 = arith.constant 48 : index
    %c0_193 = arith.constant 0 : index
    %730 = vector.load %arg2[%c48_192, %c0_193] : memref<49x128xf32, #tpu.memory_space<vmem>>, vector<1x128xf32>
    %731 = vector.shape_cast %730 : vector<1x128xf32> to vector<128xf32>
    %732 = vector.shape_cast %731 : vector<128xf32> to vector<1x1x128xf32>
    %733 = vector.broadcast %732 : vector<1x1x128xf32> to vector<8x8x128xf32>
    %734 = arith.mulf %729, %733 : vector<8x8x128xf32>
    %735 = arith.addf %728, %734 : vector<8x8x128xf32>
    %c1_194 = arith.constant 1 : index
    %c0_195 = arith.constant 0 : index
    %c0_196 = arith.constant 0 : index
    %c0_197 = arith.constant 0 : index
    %736 = vector.load %arg4[%c1_194, %c0_195, %c0_196, %c0_197] : memref<2x8x8x128xf32, #tpu.memory_space<vmem>>, vector<1x8x8x128xf32>
    %737 = vector.shape_cast %736 : vector<1x8x8x128xf32> to vector<8x8x128xf32>
    %738 = vector.shape_cast %735 : vector<8x8x128xf32> to vector<1x8x8x128xf32>
    tpu.vector_store %arg4[%c1_194, %c0_195, %c0_196, %c0_197], %738 {strides = array<i32>} : memref<2x8x8x128xf32, #tpu.memory_space<vmem>>, vector<1x8x8x128xf32>,
    return
  }
  func.func @transform_0(%arg0: i32) -> (i32, i32, i32, i32) {
    %c0_i32 = arith.constant 0 : i32
    %c0_i32_0 = arith.constant 0 : i32
    %c0_i32_1 = arith.constant 0 : i32
    %c0_i32_2 = arith.constant 0 : i32
    return %arg0, %c0_i32, %c0_i32_0, %c0_i32_1 : i32, i32, i32, i32
  }
  func.func @transform_1(%arg0: i32) -> (i32, i32) {
    %c0_i32 = arith.constant 0 : i32
    %c0_i32_0 = arith.constant 0 : i32
    %c0_i32_1 = arith.constant 0 : i32
    return %c0_i32, %c0_i32_0 : i32, i32
  }
  func.func @transform_2(%arg0: i32) -> (i32, i32) {
    %c0_i32 = arith.constant 0 : i32
    %c0_i32_0 = arith.constant 0 : i32
    %c0_i32_1 = arith.constant 0 : i32
    return %c0_i32, %c0_i32_0 : i32, i32
  }
  func.func @transform_3(%arg0: i32) -> (i32, i32, i32, i32) {
    %c0_i32 = arith.constant 0 : i32
    %c0_i32_0 = arith.constant 0 : i32
    %c0_i32_1 = arith.constant 0 : i32
    %c0_i32_2 = arith.constant 0 : i32
    return %arg0, %c0_i32, %c0_i32_0, %c0_i32_1 : i32, i32, i32, i32
  }
}

</mosaic_0001>

<llo_original>
// kernel: ppeg_forward.1
$region0: #{ppeg_forward.1}
  #allocation0 [shape = 'u32[]', space=smem, size = 0x4, offset = 0x4, fixed_abs, tag = 'smem constant byte address 0x4 - core index']
  #allocation1 [shape = 'u32[144,128]{1,0:T(1,128)}', space=vmem, size = 0x12000, scoped, tag = 'internal scratch']
  #allocation2 [shape = 'f32[14,24,128]{2,1,0:T(8,128)}', space=vmem, size = 0x2a000, scoped, tag = 'scratch operand']
  %s0 = inlined_call_operand.vmem [shape: f32[4,8,8,128], index: 0, kind: input, shape index: {}]
  %s1 = inlined_call_operand.vmem [shape: f32[49,128], index: 1, kind: input, shape index: {}]
  %s2 = inlined_call_operand.vmem [shape: f32[1,128], index: 2, kind: input, shape index: {}]
  %s3 = inlined_call_operand.vmem [shape: f32[4,8,8,128], index: 3, kind: output, shape index: {}]
  %s4 = sld [smem:[#allocation0]]
  $region45: #{ppeg_forward.1} parent=0
    _
  %s6 = ssub.s32 1, %s4
  %s7 = scalar_select 0, %s6, %s4
  loop: start=0, step=1, limit=4
  $region2: #{ppeg_forward.1} parent=0 // loop_pre_header
    _
  $region3: #{ppeg_forward.1} parent=0 // loop_header
    %s9 = sphi 0, %s13
    %p10 = scmp.ge.s32.totalorder %s9, 4
    %s19 = sphi 0, %s21
    %s22 = sphi 0, %s19
    %s23 = sphi 0, %s22
    %s39 = sphi 0, %s23
    %s43 = sphi 0, %s43
    %s45 = sphi 0, %s43
    %s46 = sphi 0, %s45
    %s60 = sphi 0, %s46
    %s64 = sphi 0, %s64
    %s66 = sphi 0, %s64
    %s67 = sphi 0, %s66
    %s81 = sphi 0, %s67
    %s87 = sphi 0, %s89
    %s90 = sphi 0, %s87
    %s91 = sphi 0, %s90
    %s107 = sphi 0, %s91
  $region4: #{ppeg_forward.1} parent=0 // loop_header_branch
    %12 = sbr.rel (%p10) target = $region8
  $region5: #{ppeg_forward.1} parent=0 // loop_body
    %s14 = ssub.s32 %s9, 1
    %s15 = ssub.s32 %s9, 2
    %s16 = sadd.s32 %s9, 1
    %s17 = ssub.s32 %s9, %s16
    %p18 = scmp.eq.s32.totalorder %s17, 0
    %s20 = sadd.s32 %s19, 1
    %s21 = scalar_select %p18, %s19, %s20
    %p24 = pneg %p18
    %p25 = scmp.eq.s32.totalorder %s9, 1
    %p26 = por %p24, %p25
    %p27 = scmp.ne.s32.totalorder %s19, %s22
    %p28 = scmp.eq.s32.totalorder %s9, 0
    %p29 = por %p27, %p28
    %p30 = scmp.ne.s32.totalorder %s19, %s22
    %p31 = scmp.eq.s32.totalorder %s14, 1
    %p32 = por %p30, %p31
    %p33 = scmp.ne.s32.totalorder %s22, %s23
    %p34 = scmp.eq.s32.totalorder %s14, 0
    %p35 = por %p33, %p34
    %p36 = scmp.ne.s32.totalorder %s22, %s23
    %p37 = scmp.eq.s32.totalorder %s15, 1
    %p38 = por %p36, %p37
    %p40 = scmp.ne.s32.totalorder %s23, %s39
    %p41 = scmp.eq.s32.totalorder %s15, 0
    %p42 = por %p40, %p41
    %s44 = sadd.s32 %s43, 1
    %p47 = scmp.eq.s32.totalorder %s9, 1
    %p48 = scmp.ne.s32.totalorder %s43, %s45
    %p49 = scmp.eq.s32.totalorder %s9, 0
    %p50 = por %p48, %p49
    %p51 = scmp.ne.s32.totalorder %s43, %s45
    %p52 = scmp.eq.s32.totalorder %s14, 1
    %p53 = por %p51, %p52
    %p54 = scmp.ne.s32.totalorder %s45, %s46
    %p55 = scmp.eq.s32.totalorder %s14, 0
    %p56 = por %p54, %p55
    %p57 = scmp.ne.s32.totalorder %s45, %s46
    %p58 = scmp.eq.s32.totalorder %s15, 1
    %p59 = por %p57, %p58
    %p61 = scmp.ne.s32.totalorder %s46, %s60
    %p62 = scmp.eq.s32.totalorder %s15, 0
    %p63 = por %p61, %p62
    %s65 = sadd.s32 %s64, 1
    %p68 = scmp.eq.s32.totalorder %s9, 1
    %p69 = scmp.ne.s32.totalorder %s64, %s66
    %p70 = scmp.eq.s32.totalorder %s9, 0
    %p71 = por %p69, %p70
    %p72 = scmp.ne.s32.totalorder %s64, %s66
    %p73 = scmp.eq.s32.totalorder %s14, 1
    %p74 = por %p72, %p73
    %p75 = scmp.ne.s32.totalorder %s66, %s67
    %p76 = scmp.eq.s32.totalorder %s14, 0
    %p77 = por %p75, %p76
    %p78 = scmp.ne.s32.totalorder %s66, %s67
    %p79 = scmp.eq.s32.totalorder %s15, 1
    %p80 = por %p78, %p79
    %p82 = scmp.ne.s32.totalorder %s67, %s81
    %p83 = scmp.eq.s32.totalorder %s15, 0
    %p84 = por %p82, %p83
    %s85 = ssub.s32 %s9, %s16
    %p86 = scmp.eq.s32.totalorder %s85, 0
    %s88 = sadd.s32 %s87, 1
    %s89 = scalar_select %p86, %s87, %s88
    %p92 = pneg %p86
    %p93 = scmp.eq.s32.totalorder %s9, 1
    %p94 = por %p92, %p93
    %p95 = scmp.ne.s32.totalorder %s87, %s90
    %p96 = scmp.eq.s32.totalorder %s9, 0
    %p97 = por %p95, %p96
    %p98 = scmp.ne.s32.totalorder %s87, %s90
    %p99 = scmp.eq.s32.totalorder %s14, 1
    %p100 = por %p98, %p99
    %p101 = scmp.ne.s32.totalorder %s90, %s91
    %p102 = scmp.eq.s32.totalorder %s14, 0
    %p103 = por %p101, %p102
    %p104 = scmp.ne.s32.totalorder %s90, %s91
    %p105 = scmp.eq.s32.totalorder %s15, 1
    %p106 = por %p104, %p105
    %p108 = scmp.ne.s32.totalorder %s91, %s107
    %p109 = scmp.eq.s32.totalorder %s15, 0
    %p110 = por %p108, %p109
    %p111 = scmp.le.s32.totalorder 1, %s9
    %p112 = scmp.lt.s32.totalorder %s9, 3
    %p113 = pnand %p111, %p112
    %p114 = pneg %p113
    // Predicated region
    $region9: #{ppeg_forward.1} parent=5 // pred_check
      _
    $region10: #{ppeg_forward.1} parent=5 // pred_check_branch
      %116 = sbr.rel (%p113) target = $region12
    $region11: #{ppeg_forward.1} parent=5 // pred_region
      %s117 = ssub.s32 %s9, 1
      // Predicated region
      $region13: #{ppeg_forward.1} parent=11 // pred_check
        %p118 = pneg %p56
      $region14: #{ppeg_forward.1} parent=11 // pred_check_branch
        %120 = sbr.rel (%p118) target = $region16
      $region15: #{ppeg_forward.1} parent=11 // pred_region
        _
      $region16: #{ppeg_forward.1} parent=11 // pred_fallthru
        _
      // Predicated region
      $region17: #{ppeg_forward.1} parent=11 // pred_check
        %p121 = pneg %p77
      $region18: #{ppeg_forward.1} parent=11 // pred_check_branch
        %123 = sbr.rel (%p121) target = $region20
      $region19: #{ppeg_forward.1} parent=11 // pred_region
        _
      $region20: #{ppeg_forward.1} parent=11 // pred_fallthru
        _
    $region12: #{ppeg_forward.1} parent=5 // pred_fallthru
      _
    %p124 = scmp.lt.s32.totalorder %s9, 2
    // Predicated region
    $region21: #{ppeg_forward.1} parent=5 // pred_check
      %p125 = pneg %p124
    $region22: #{ppeg_forward.1} parent=5 // pred_check_branch
      %127 = sbr.rel (%p125) target = $region24
    $region23: #{ppeg_forward.1} parent=5 // pred_region
      // Predicated region
      $region25: #{ppeg_forward.1} parent=23 // pred_check
        %p128 = pneg %p29
      $region26: #{ppeg_forward.1} parent=23 // pred_check_branch
        %130 = sbr.rel (%p128) target = $region28
      $region27: #{ppeg_forward.1} parent=23 // pred_region
        %s131 = smul.u32 2, %s9
        %p132 = scmp.lt.s32.totalorder %s131, 3
        %s133 = scalar_select %p132, %s131, 3
        %s134 = smul.addr %s133, 8
        %s135 = smul.addr %s134, 8
        %s136 = scalar_lea.vmem %s0, %s135
        %s137 = smul.u32 2, %s9
      $region28: #{ppeg_forward.1} parent=23 // pred_fallthru
        _
    $region24: #{ppeg_forward.1} parent=5 // pred_fallthru
      _
    %p138 = scmp.le.s32.totalorder 1, %s9
    %p139 = scmp.lt.s32.totalorder %s9, 3
    %p140 = pnand %p138, %p139
    %p141 = pneg %p140
    // Predicated region
    $region29: #{ppeg_forward.1} parent=5 // pred_check
      _
    $region30: #{ppeg_forward.1} parent=5 // pred_check_branch
      %143 = sbr.rel (%p140) target = $region32
    $region31: #{ppeg_forward.1} parent=5 // pred_region
      %s144 = ssub.s32 %s9, 1
      %s145 = smul.u32 2, %s14
      %p146 = scmp.lt.s32.totalorder %s145, 3
      %s147 = scalar_select %p146, %s145, 3
      %s148 = smul.addr %s147, 8
      %s149 = smul.addr %s148, 8
      %s150 = scalar_lea.vmem %s0, %s149
      %p151 = pneg %p35
      %p152 = pneg %p32
      %p153 = pneg %p56
      %p154 = pneg %p53
      %p155 = pneg %p77
      %p156 = pneg %p74
      %p157 = pneg %p103
      %p158 = pneg %p100
      %s159 = smul.u32 2, %s14
      %p160 = scmp.lt.s32.totalorder %s159, 3
      %s161 = scalar_select %p160, %s159, 3
      %s162 = smul.addr %s161, 8
      %s163 = smul.addr %s162, 8
      %s164 = scalar_lea.vmem %s3, %s163
      %s165 = smul.u32 2, %s14
      %p166 = scmp.lt.s32.totalorder %s165, 3
      %s167 = scalar_select %p166, %s165, 3
      %s168 = smul.addr %s167, 8
      %s169 = smul.addr %s168, 8
      %s170 = scalar_lea.vmem %s0, %s169
      %s171 = smul.u32 2, %s14
      %s172 = smul.u32 2, %s14
      %p173 = scmp.lt.s32.totalorder %s172, 3
      %s174 = scalar_select %p173, %s172, 3
      %s175 = smul.addr %s174, 8
      %s176 = smul.addr %s175, 8
      %s177 = scalar_lea.vmem %s3, %s176
      %s178 = smul.u32 2, %s14
      %179 = vst [vmem:[#allocation2] sm:$0xff] 0.0
      %180 = vst [vmem:[#allocation2 + $0x8] sm:$0xff] 0.0
      %181 = vst [vmem:[#allocation2 + $0x10] sm:$0xff] 0.0
      %182 = vst [vmem:[#allocation2 + $0x18] sm:$0xff] 0.0
      %183 = vst [vmem:[#allocation2 + $0x20] sm:$0xff] 0.0
      %184 = vst [vmem:[#allocation2 + $0x28] sm:$0xff] 0.0
      %185 = vst [vmem:[#allocation2 + $0x30] sm:$0xff] 0.0
      %186 = vst [vmem:[#allocation2 + $0x38] sm:$0xff] 0.0
      %187 = vst [vmem:[#allocation2 + $0x40] sm:$0xff] 0.0
      %s188 = scalar_lea.vmem [#allocation2], 264
      %189 = vst [vmem:[%s188] sm:$0xff] 0.0
      %190 = vst [vmem:[%s188 + $0x8] sm:$0xff] 0.0
      %191 = vst [vmem:[%s188 + $0x10] sm:$0xff] 0.0
      %192 = vst [vmem:[%s188 + $0x18] sm:$0xff] 0.0
      %193 = vst [vmem:[%s188 + $0x20] sm:$0xff] 0.0
      %194 = vst [vmem:[%s188 + $0x28] sm:$0xff] 0.0
      %195 = vst [vmem:[%s188 + $0x30] sm:$0xff] 0.0
      %196 = vst [vmem:[%s188 + $0x38] sm:$0xff] 0.0
      %197 = vst [vmem:[%s188 + $0x40] sm:$0xff] 0.0
      %s198 = scalar_lea.vmem [#allocation2], 72
      %199 = vst [vmem:[%s198] sm:$0xff] 0.0
      %200 = vst [vmem:[%s198 + $0x18] sm:$0xff] 0.0
      %201 = vst [vmem:[%s198 + $0x30] sm:$0xff] 0.0
      %202 = vst [vmem:[%s198 + $0x48] sm:$0xff] 0.0
      %203 = vst [vmem:[%s198 + $0x60] sm:$0xff] 0.0
      %204 = vst [vmem:[%s198 + $0x78] sm:$0xff] 0.0
      %205 = vst [vmem:[%s198 + $0x90] sm:$0xff] 0.0
      %206 = vst [vmem:[%s198 + $0xa8] sm:$0xff] 0.0
      %207 = vst [vmem:[%s198 + $0x10] sm:$0xff] 0.0
      %208 = vst [vmem:[%s198 + $0x28] sm:$0xff] 0.0
      %209 = vst [vmem:[%s198 + $0x40] sm:$0xff] 0.0
      %210 = vst [vmem:[%s198 + $0x58] sm:$0xff] 0.0
      %211 = vst [vmem:[%s198 + $0x70] sm:$0xff] 0.0
      %212 = vst [vmem:[%s198 + $0x88] sm:$0xff] 0.0
      %213 = vst [vmem:[%s198 + $0xa0] sm:$0xff] 0.0
      %214 = vst [vmem:[%s198 + $0xb8] sm:$0xff] 0.0
      %v215 = vld [vmem:[%s2] sm:$0x1]
      %v217 = vlaneseq
      %v218 = vshrl.u32 %v217, 7
      %v219 = vsub.s32 0, %v218
      %v220 = vrot.slane %v215, %v219
      %v222 = vld [vmem:[%s170] sm:$0xff]
      %v223 = vld [vmem:[%s170 + $0x8] sm:$0xff]
      %v224 = vld [vmem:[%s170 + $0x10] sm:$0xff]
      %v225 = vld [vmem:[%s170 + $0x18] sm:$0xff]
      %v226 = vld [vmem:[%s170 + $0x20] sm:$0xff]
      %v227 = vld [vmem:[%s170 + $0x28] sm:$0xff]
      %v228 = vld [vmem:[%s170 + $0x30] sm:$0xff]
      %v229 = vld [vmem:[%s170 + $0x38] sm:$0xff]
      %230 = vst [vmem:[%s198 + $0x8] sm:$0xff] %v222
      %231 = vst [vmem:[%s198 + $0x20] sm:$0xff] %v223
      %232 = vst [vmem:[%s198 + $0x38] sm:$0xff] %v224
      %233 = vst [vmem:[%s198 + $0x50] sm:$0xff] %v225
      %234 = vst [vmem:[%s198 + $0x68] sm:$0xff] %v226
      %235 = vst [vmem:[%s198 + $0x80] sm:$0xff] %v227
      %236 = vst [vmem:[%s198 + $0x98] sm:$0xff] %v228
      %237 = vst [vmem:[%s198 + $0xb0] sm:$0xff] %v229
      %v238 = vld [vmem:[#allocation2] sm:$0xff]
      %v239 = vld [vmem:[#allocation2 + $0x8] sm:$0xff]
      %v240 = vld [vmem:[#allocation2 + $0x10] sm:$0xff]
      %v241 = vld [vmem:[#allocation2 + $0x18] sm:$0xff]
      %v242 = vld [vmem:[#allocation2 + $0x20] sm:$0xff]
      %v243 = vld [vmem:[#allocation2 + $0x28] sm:$0xff]
      %v244 = vld [vmem:[#allocation2 + $0x30] sm:$0xff]
      %v245 = vld [vmem:[#allocation2 + $0x38] sm:$0xff]
      %v246 = vld [vmem:[#allocation2 + $0x40] sm:$0xff]
      %v247 = vld [vmem:[#allocation2 + $0x48] sm:$0xff]
      %v248 = vld [vmem:[#allocation2 + $0x50] sm:$0xff]
      %v249 = vld [vmem:[#allocation2 + $0x58] sm:$0xff]
      %v250 = vld [vmem:[#allocation2 + $0x60] sm:$0xff]
      %v251 = vld [vmem:[#allocation2 + $0x68] sm:$0xff]
      %v252 = vld [vmem:[#allocation2 + $0x70] sm:$0xff]
      %v253 = vld [vmem:[#allocation2 + $0x78] sm:$0xff]
      %v254 = vld [vmem:[#allocation2 + $0x80] sm:$0xff]
      %v255 = vld [vmem:[#allocation2 + $0x88] sm:$0xff]
      %v256 = vld [vmem:[#allocation2 + $0x90] sm:$0xff]
      %v257 = vld [vmem:[#allocation2 + $0x98] sm:$0xff]
      %v258 = vld [vmem:[#allocation2 + $0xa0] sm:$0xff]
      %v259 = vld [vmem:[#allocation2 + $0xa8] sm:$0xff]
      %v260 = vld [vmem:[#allocation2 + $0xb0] sm:$0xff]
      %v261 = vld [vmem:[#allocation2 + $0xb8] sm:$0xff]
      %v262 = vld [vmem:[#allocation2 + $0xc0] sm:$0xff]
      %v263 = vld [vmem:[#allocation2 + $0xc8] sm:$0xff]
      %v264 = vld [vmem:[#allocation2 + $0xd0] sm:$0xff]
      %v265 = vld [vmem:[#allocation2 + $0xd8] sm:$0xff]
      %v266 = vld [vmem:[#allocation2 + $0xe0] sm:$0xff]
      %v267 = vld [vmem:[#allocation2 + $0xe8] sm:$0xff]
      %v268 = vld [vmem:[#allocation2 + $0xf0] sm:$0xff]
      %v269 = vld [vmem:[#allocation2 + $0xf8] sm:$0xff]
      %v270 = vld [vmem:[#allocation2 + $0x100] sm:$0xff]
      %v271 = vld [vmem:[#allocation2 + $0x108] sm:$0xff]
      %v272 = vld [vmem:[#allocation2 + $0x110] sm:$0xff]
      %v273 = vld [vmem:[#allocation2 + $0x118] sm:$0xff]
      %v274 = vld [vmem:[#allocation2 + $0x120] sm:$0xff]
      %v275 = vld [vmem:[#allocation2 + $0x128] sm:$0xff]
      %v276 = vld [vmem:[#allocation2 + $0x130] sm:$0xff]
      %v277 = vld [vmem:[#allocation2 + $0x138] sm:$0xff]
      %v278 = vld [vmem:[#allocation2 + $0x140] sm:$0xff]
      %v279 = vld [vmem:[#allocation2 + $0x148] sm:$0xff]
      %v280 = vrot.slane %v238, 5
      %v281 = vrot.slane %v241, 5
      %v282 = vrot.slane %v244, 5
      %v283 = vrot.slane %v247, 5
      %v284 = vrot.slane %v250, 5
      %v285 = vrot.slane %v253, 5
      %v286 = vrot.slane %v256, 5
      %v287 = vrot.slane %v259, 5
      %v288 = vrot.slane %v262, 5
      %v289 = vrot.slane %v265, 5
      %v290 = vrot.slane %v268, 5
      %v291 = vrot.slane %v271, 5
      %v292 = vrot.slane %v274, 5
      %v293 = vrot.slane %v277, 5
      %v294 = vrot.slane %v239, 5
      %v295 = vrot.slane %v242, 5
      %v296 = vrot.slane %v245, 5
      %v297 = vrot.slane %v248, 5
      %v298 = vrot.slane %v251, 5
      %v299 = vrot.slane %v254, 5
      %v300 = vrot.slane %v257, 5
      %v301 = vrot.slane %v260, 5
      %v302 = vrot.slane %v263, 5
      %v303 = vrot.slane %v266, 5
      %v304 = vrot.slane %v269, 5
      %v305 = vrot.slane %v272, 5
      %v306 = vrot.slane %v275, 5
      %v307 = vrot.slane %v278, 5
      %v308 = vlaneseq
      %v309 = vshrl.u32 %v308, 7
      %vm310 = vcmp.lt.s32.totalorder %v309, 3
      %v311 = vsel %vm310, %v280, %v294
      %v312 = vsel %vm310, %v281, %v295
      %v313 = vsel %vm310, %v282, %v296
      %v314 = vsel %vm310, %v283, %v297
      %v315 = vsel %vm310, %v284, %v298
      %v316 = vsel %vm310, %v285, %v299
      %v317 = vsel %vm310, %v286, %v300
      %v318 = vsel %vm310, %v287, %v301
      %v319 = vsel %vm310, %v288, %v302
      %v320 = vsel %vm310, %v289, %v303
      %v321 = vsel %vm310, %v290, %v304
      %v322 = vsel %vm310, %v291, %v305
      %v323 = vsel %vm310, %v292, %v306
      %v324 = vsel %vm310, %v293, %v307
      %v325 = vld [vmem:[%s1] sm:$0x1]
      %v326 = vlaneseq
      %v327 = vshrl.u32 %v326, 7
      %v328 = vsub.s32 0, %v327
      %v329 = vrot.slane %v325, %v328
      %v330 = vmul.f32 %v311, %v329
      %v331 = vmul.f32 %v312, %v329
      %v332 = vmul.f32 %v313, %v329
      %v333 = vmul.f32 %v314, %v329
      %v334 = vmul.f32 %v315, %v329
      %v335 = vmul.f32 %v316, %v329
      %v336 = vmul.f32 %v317, %v329
      %v337 = vmul.f32 %v318, %v329
      %v338 = vadd.f32 %v220, %v330
      %v339 = vadd.f32 %v220, %v331
      %v340 = vadd.f32 %v220, %v332
      %v341 = vadd.f32 %v220, %v333
      %v342 = vadd.f32 %v220, %v334
      %v343 = vadd.f32 %v220, %v335
      %v344 = vadd.f32 %v220, %v336
      %v345 = vadd.f32 %v220, %v337
      %v346 = vld [vmem:[%s1 + $0x7] sm:$0x1]
      %v347 = vlaneseq
      %v348 = vshrl.u32 %v347, 7
      %v349 = vsub.s32 0, %v348
      %v350 = vrot.slane %v346, %v349
      %v351 = vmul.f32 %v312, %v350
      %v352 = vmul.f32 %v313, %v350
      %v353 = vmul.f32 %v314, %v350
      %v354 = vmul.f32 %v315, %v350
      %v355 = vmul.f32 %v316, %v350
      %v356 = vmul.f32 %v317, %v350
      %v357 = vmul.f32 %v318, %v350
      %v358 = vmul.f32 %v319, %v350
      %v359 = vadd.f32 %v338, %v351
      %v360 = vadd.f32 %v339, %v352
      %v361 = vadd.f32 %v340, %v353
      %v362 = vadd.f32 %v341, %v354
      %v363 = vadd.f32 %v342, %v355
      %v364 = vadd.f32 %v343, %v356
      %v365 = vadd.f32 %v344, %v357
      %v366 = vadd.f32 %v345, %v358
      %v367 = vld [vmem:[%s1 + $0xe] sm:$0x1]
      %v368 = vlaneseq
      %v369 = vshrl.u32 %v368, 7
      %v370 = vsub.s32 0, %v369
      %v371 = vrot.slane %v367, %v370
      %v372 = vmul.f32 %v313, %v371
      %v373 = vmul.f32 %v314, %v371
      %v374 = vmul.f32 %v315, %v371
      %v375 = vmul.f32 %v316, %v371
      %v376 = vmul.f32 %v317, %v371
      %v377 = vmul.f32 %v318, %v371
      %v378 = vmul.f32 %v319, %v371
      %v379 = vmul.f32 %v320, %v371
      %v380 = vadd.f32 %v359, %v372
      %v381 = vadd.f32 %v360, %v373
      %v382 = vadd.f32 %v361, %v374
      %v383 = vadd.f32 %v362, %v375
      %v384 = vadd.f32 %v363, %v376
      %v385 = vadd.f32 %v364, %v377
      %v386 = vadd.f32 %v365, %v378
      %v387 = vadd.f32 %v366, %v379
      %v388 = vld [vmem:[%s1 + $0x15] sm:$0x1]
      %v389 = vlaneseq
      %v390 = vshrl.u32 %v389, 7
      %v391 = vsub.s32 0, %v390
      %v392 = vrot.slane %v388, %v391
      %v393 = vmul.f32 %v314, %v392
      %v394 = vmul.f32 %v315, %v392
      %v395 = vmul.f32 %v316, %v392
      %v396 = vmul.f32 %v317, %v392
      %v397 = vmul.f32 %v318, %v392
      %v398 = vmul.f32 %v319, %v392
      %v399 = vmul.f32 %v320, %v392
      %v400 = vmul.f32 %v321, %v392
      %v401 = vadd.f32 %v380, %v393
      %v402 = vadd.f32 %v381, %v394
      %v403 = vadd.f32 %v382, %v395
      %v404 = vadd.f32 %v383, %v396
      %v405 = vadd.f32 %v384, %v397
      %v406 = vadd.f32 %v385, %v398
      %v407 = vadd.f32 %v386, %v399
      %v408 = vadd.f32 %v387, %v400
      %v409 = vld [vmem:[%s1 + $0x1c] sm:$0x1]
      %v410 = vlaneseq
      %v411 = vshrl.u32 %v410, 7
      %v412 = vsub.s32 0, %v411
      %v413 = vrot.slane %v409, %v412
      %v414 = vmul.f32 %v315, %v413
      %v415 = vmul.f32 %v316, %v413
      %v416 = vmul.f32 %v317, %v413
      %v417 = vmul.f32 %v318, %v413
      %v418 = vmul.f32 %v319, %v413
      %v419 = vmul.f32 %v320, %v413
      %v420 = vmul.f32 %v321, %v413
      %v421 = vmul.f32 %v322, %v413
      %v422 = vadd.f32 %v401, %v414
      %v423 = vadd.f32 %v402, %v415
      %v424 = vadd.f32 %v403, %v416
      %v425 = vadd.f32 %v404, %v417
      %v426 = vadd.f32 %v405, %v418
      %v427 = vadd.f32 %v406, %v419
      %v428 = vadd.f32 %v407, %v420
      %v429 = vadd.f32 %v408, %v421
      %v430 = vld [vmem:[%s1 + $0x23] sm:$0x1]
      %v431 = vlaneseq
      %v432 = vshrl.u32 %v431, 7
      %v433 = vsub.s32 0, %v432
      %v434 = vrot.slane %v430, %v433
      %v435 = vmul.f32 %v316, %v434
      %v436 = vmul.f32 %v317, %v434
      %v437 = vmul.f32 %v318, %v434
      %v438 = vmul.f32 %v319, %v434
      %v439 = vmul.f32 %v320, %v434
      %v440 = vmul.f32 %v321, %v434
      %v441 = vmul.f32 %v322, %v434
      %v442 = vmul.f32 %v323, %v434
      %v443 = vadd.f32 %v422, %v435
      %v444 = vadd.f32 %v423, %v436
      %v445 = vadd.f32 %v424, %v437
      %v446 = vadd.f32 %v425, %v438
      %v447 = vadd.f32 %v426, %v439
      %v448 = vadd.f32 %v427, %v440
      %v449 = vadd.f32 %v428, %v441
      %v450 = vadd.f32 %v429, %v442
      %v451 = vld [vmem:[%s1 + $0x2a] sm:$0x1]
      %v452 = vlaneseq
      %v453 = vshrl.u32 %v452, 7
      %v454 = vsub.s32 0, %v453
      %v455 = vrot.slane %v451, %v454
      %v456 = vmul.f32 %v317, %v455
      %v457 = vmul.f32 %v318, %v455
      %v458 = vmul.f32 %v319, %v455
      %v459 = vmul.f32 %v320, %v455
      %v460 = vmul.f32 %v321, %v455
      %v461 = vmul.f32 %v322, %v455
      %v462 = vmul.f32 %v323, %v455
      %v463 = vmul.f32 %v324, %v455
      %v464 = vadd.f32 %v443, %v456
      %v465 = vadd.f32 %v444, %v457
      %v466 = vadd.f32 %v445, %v458
      %v467 = vadd.f32 %v446, %v459
      %v468 = vadd.f32 %v447, %v460
      %v469 = vadd.f32 %v448, %v461
      %v470 = vadd.f32 %v449, %v462
      %v471 = vadd.f32 %v450, %v463
      %v472 = vrot.slane %v238, 6
      %v473 = vrot.slane %v241, 6
      %v474 = vrot.slane %v244, 6
      %v475 = vrot.slane %v247, 6
      %v476 = vrot.slane %v250, 6
      %v477 = vrot.slane %v253, 6
      %v478 = vrot.slane %v256, 6
      %v479 = vrot.slane %v259, 6
      %v480 = vrot.slane %v262, 6
      %v481 = vrot.slane %v265, 6
      %v482 = vrot.slane %v268, 6
      %v483 = vrot.slane %v271, 6
      %v484 = vrot.slane %v274, 6
      %v485 = vrot.slane %v277, 6
      %v486 = vrot.slane %v239, 6
      %v487 = vrot.slane %v242, 6
      %v488 = vrot.slane %v245, 6
      %v489 = vrot.slane %v248, 6
      %v490 = vrot.slane %v251, 6
      %v491 = vrot.slane %v254, 6
      %v492 = vrot.slane %v257, 6
      %v493 = vrot.slane %v260, 6
      %v494 = vrot.slane %v263, 6
      %v495 = vrot.slane %v266, 6
      %v496 = vrot.slane %v269, 6
      %v497 = vrot.slane %v272, 6
      %v498 = vrot.slane %v275, 6
      %v499 = vrot.slane %v278, 6
      %vm500 = vcmp.lt.s32.totalorder %v309, 2
      %v501 = vsel %vm500, %v472, %v486
      %v502 = vsel %vm500, %v473, %v487
      %v503 = vsel %vm500, %v474, %v488
      %v504 = vsel %vm500, %v475, %v489
      %v505 = vsel %vm500, %v476, %v490
      %v506 = vsel %vm500, %v477, %v491
      %v507 = vsel %vm500, %v478, %v492
      %v508 = vsel %vm500, %v479, %v493
      %v509 = vsel %vm500, %v480, %v494
      %v510 = vsel %vm500, %v481, %v495
      %v511 = vsel %vm500, %v482, %v496
      %v512 = vsel %vm500, %v483, %v497
      %v513 = vsel %vm500, %v484, %v498
      %v514 = vsel %vm500, %v485, %v499
      %v515 = vld [vmem:[%s1 + $0x1] sm:$0x1]
      %v516 = vlaneseq
      %v517 = vshrl.u32 %v516, 7
      %v518 = vsub.s32 0, %v517
      %v519 = vrot.slane %v515, %v518
      %v520 = vmul.f32 %v501, %v519
      %v521 = vmul.f32 %v502, %v519
      %v522 = vmul.f32 %v503, %v519
      %v523 = vmul.f32 %v504, %v519
      %v524 = vmul.f32 %v505, %v519
      %v525 = vmul.f32 %v506, %v519
      %v526 = vmul.f32 %v507, %v519
      %v527 = vmul.f32 %v508, %v519
      %v528 = vadd.f32 %v464, %v520
      %v529 = vadd.f32 %v465, %v521
      %v530 = vadd.f32 %v466, %v522
      %v531 = vadd.f32 %v467, %v523
      %v532 = vadd.f32 %v468, %v524
      %v533 = vadd.f32 %v469, %v525
      %v534 = vadd.f32 %v470, %v526
      %v535 = vadd.f32 %v471, %v527
      %v536 = vld [vmem:[%s1 + $0x8] sm:$0x1]
      %v537 = vlaneseq
      %v538 = vshrl.u32 %v537, 7
      %v539 = vsub.s32 0, %v538
      %v540 = vrot.slane %v536, %v539
      %v541 = vmul.f32 %v502, %v540
      %v542 = vmul.f32 %v503, %v540
      %v543 = vmul.f32 %v504, %v540
      %v544 = vmul.f32 %v505, %v540
      %v545 = vmul.f32 %v506, %v540
      %v546 = vmul.f32 %v507, %v540
      %v547 = vmul.f32 %v508, %v540
      %v548 = vmul.f32 %v509, %v540
      %v549 = vadd.f32 %v528, %v541
      %v550 = vadd.f32 %v529, %v542
      %v551 = vadd.f32 %v530, %v543
      %v552 = vadd.f32 %v531, %v544
      %v553 = vadd.f32 %v532, %v545
      %v554 = vadd.f32 %v533, %v546
      %v555 = vadd.f32 %v534, %v547
      %v556 = vadd.f32 %v535, %v548
      %v557 = vld [vmem:[%s1 + $0xf] sm:$0x1]
      %v558 = vlaneseq
      %v559 = vshrl.u32 %v558, 7
      %v560 = vsub.s32 0, %v559
      %v561 = vrot.slane %v557, %v560
      %v562 = vmul.f32 %v503, %v561
      %v563 = vmul.f32 %v504, %v561
      %v564 = vmul.f32 %v505, %v561
      %v565 = vmul.f32 %v506, %v561
      %v566 = vmul.f32 %v507, %v561
      %v567 = vmul.f32 %v508, %v561
      %v568 = vmul.f32 %v509, %v561
      %v569 = vmul.f32 %v510, %v561
      %v570 = vadd.f32 %v549, %v562
      %v571 = vadd.f32 %v550, %v563
      %v572 = vadd.f32 %v551, %v564
      %v573 = vadd.f32 %v552, %v565
      %v574 = vadd.f32 %v553, %v566
      %v575 = vadd.f32 %v554, %v567
      %v576 = vadd.f32 %v555, %v568
      %v577 = vadd.f32 %v556, %v569
      %v578 = vld [vmem:[%s1 + $0x16] sm:$0x1]
      %v579 = vlaneseq
      %v580 = vshrl.u32 %v579, 7
      %v581 = vsub.s32 0, %v580
      %v582 = vrot.slane %v578, %v581
      %v583 = vmul.f32 %v504, %v582
      %v584 = vmul.f32 %v505, %v582
      %v585 = vmul.f32 %v506, %v582
      %v586 = vmul.f32 %v507, %v582
      %v587 = vmul.f32 %v508, %v582
      %v588 = vmul.f32 %v509, %v582
      %v589 = vmul.f32 %v510, %v582
      %v590 = vmul.f32 %v511, %v582
      %v591 = vadd.f32 %v570, %v583
      %v592 = vadd.f32 %v571, %v584
      %v593 = vadd.f32 %v572, %v585
      %v594 = vadd.f32 %v573, %v586
      %v595 = vadd.f32 %v574, %v587
      %v596 = vadd.f32 %v575, %v588
      %v597 = vadd.f32 %v576, %v589
      %v598 = vadd.f32 %v577, %v590
      %v599 = vld [vmem:[%s1 + $0x1d] sm:$0x1]
      %v600 = vlaneseq
      %v601 = vshrl.u32 %v600, 7
      %v602 = vsub.s32 0, %v601
      %v603 = vrot.slane %v599, %v602
      %v604 = vmul.f32 %v505, %v603
      %v605 = vmul.f32 %v506, %v603
      %v606 = vmul.f32 %v507, %v603
      %v607 = vmul.f32 %v508, %v603
      %v608 = vmul.f32 %v509, %v603
      %v609 = vmul.f32 %v510, %v603
      %v610 = vmul.f32 %v511, %v603
      %v611 = vmul.f32 %v512, %v603
      %v612 = vadd.f32 %v591, %v604
      %v613 = vadd.f32 %v592, %v605
      %v614 = vadd.f32 %v593, %v606
      %v615 = vadd.f32 %v594, %v607
      %v616 = vadd.f32 %v595, %v608
      %v617 = vadd.f32 %v596, %v609
      %v618 = vadd.f32 %v597, %v610
      %v619 = vadd.f32 %v598, %v611
      %v620 = vld [vmem:[%s1 + $0x24] sm:$0x1]
      %v621 = vlaneseq
      %v622 = vshrl.u32 %v621, 7
      %v623 = vsub.s32 0, %v622
      %v624 = vrot.slane %v620, %v623
      %v625 = vmul.f32 %v506, %v624
      %v626 = vmul.f32 %v507, %v624
      %v627 = vmul.f32 %v508, %v624
      %v628 = vmul.f32 %v509, %v624
      %v629 = vmul.f32 %v510, %v624
      %v630 = vmul.f32 %v511, %v624
      %v631 = vmul.f32 %v512, %v624
      %v632 = vmul.f32 %v513, %v624
      %v633 = vadd.f32 %v612, %v625
      %v634 = vadd.f32 %v613, %v626
      %v635 = vadd.f32 %v614, %v627
      %v636 = vadd.f32 %v615, %v628
      %v637 = vadd.f32 %v616, %v629
      %v638 = vadd.f32 %v617, %v630
      %v639 = vadd.f32 %v618, %v631
      %v640 = vadd.f32 %v619, %v632
      %v641 = vld [vmem:[%s1 + $0x2b] sm:$0x1]
      %v642 = vlaneseq
      %v643 = vshrl.u32 %v642, 7
      %v644 = vsub.s32 0, %v643
      %v645 = vrot.slane %v641, %v644
      %v646 = vmul.f32 %v507, %v645
      %v647 = vmul.f32 %v508, %v645
      %v648 = vmul.f32 %v509, %v645
      %v649 = vmul.f32 %v510, %v645
      %v650 = vmul.f32 %v511, %v645
      %v651 = vmul.f32 %v512, %v645
      %v652 = vmul.f32 %v513, %v645
      %v653 = vmul.f32 %v514, %v645
      %v654 = vadd.f32 %v633, %v646
      %v655 = vadd.f32 %v634, %v647
      %v656 = vadd.f32 %v635, %v648
      %v657 = vadd.f32 %v636, %v649
      %v658 = vadd.f32 %v637, %v650
      %v659 = vadd.f32 %v638, %v651
      %v660 = vadd.f32 %v639, %v652
      %v661 = vadd.f32 %v640, %v653
      %v662 = vrot.slane %v238, 7
      %v663 = vrot.slane %v241, 7
      %v664 = vrot.slane %v244, 7
      %v665 = vrot.slane %v247, 7
      %v666 = vrot.slane %v250, 7
      %v667 = vrot.slane %v253, 7
      %v668 = vrot.slane %v256, 7
      %v669 = vrot.slane %v259, 7
      %v670 = vrot.slane %v262, 7
      %v671 = vrot.slane %v265, 7
      %v672 = vrot.slane %v268, 7
      %v673 = vrot.slane %v271, 7
      %v674 = vrot.slane %v274, 7
      %v675 = vrot.slane %v277, 7
      %v676 = vrot.slane %v239, 7
      %v677 = vrot.slane %v242, 7
      %v678 = vrot.slane %v245, 7
      %v679 = vrot.slane %v248, 7
      %v680 = vrot.slane %v251, 7
      %v681 = vrot.slane %v254, 7
      %v682 = vrot.slane %v257, 7
      %v683 = vrot.slane %v260, 7
      %v684 = vrot.slane %v263, 7
      %v685 = vrot.slane %v266, 7
      %v686 = vrot.slane %v269, 7
      %v687 = vrot.slane %v272, 7
      %v688 = vrot.slane %v275, 7
      %v689 = vrot.slane %v278, 7
      %vm690 = vcmp.lt.s32.totalorder %v309, 1
      %v691 = vsel %vm690, %v662, %v676
      %v692 = vsel %vm690, %v663, %v677
      %v693 = vsel %vm690, %v664, %v678
      %v694 = vsel %vm690, %v665, %v679
      %v695 = vsel %vm690, %v666, %v680
      %v696 = vsel %vm690, %v667, %v681
      %v697 = vsel %vm690, %v668, %v682
      %v698 = vsel %vm690, %v669, %v683
      %v699 = vsel %vm690, %v670, %v684
      %v700 = vsel %vm690, %v671, %v685
      %v701 = vsel %vm690, %v672, %v686
      %v702 = vsel %vm690, %v673, %v687
      %v703 = vsel %vm690, %v674, %v688
      %v704 = vsel %vm690, %v675, %v689
      %v705 = vld [vmem:[%s1 + $0x2] sm:$0x1]
      %v706 = vlaneseq
      %v707 = vshrl.u32 %v706, 7
      %v708 = vsub.s32 0, %v707
      %v709 = vrot.slane %v705, %v708
      %v710 = vmul.f32 %v691, %v709
      %v711 = vmul.f32 %v692, %v709
      %v712 = vmul.f32 %v693, %v709
      %v713 = vmul.f32 %v694, %v709
      %v714 = vmul.f32 %v695, %v709
      %v715 = vmul.f32 %v696, %v709
      %v716 = vmul.f32 %v697, %v709
      %v717 = vmul.f32 %v698, %v709
      %v718 = vadd.f32 %v654, %v710
      %v719 = vadd.f32 %v655, %v711
      %v720 = vadd.f32 %v656, %v712
      %v721 = vadd.f32 %v657, %v713
      %v722 = vadd.f32 %v658, %v714
      %v723 = vadd.f32 %v659, %v715
      %v724 = vadd.f32 %v660, %v716
      %v725 = vadd.f32 %v661, %v717
      %v726 = vld [vmem:[%s1 + $0x9] sm:$0x1]
      %v727 = vlaneseq
      %v728 = vshrl.u32 %v727, 7
      %v729 = vsub.s32 0, %v728
      %v730 = vrot.slane %v726, %v729
      %v731 = vmul.f32 %v692, %v730
      %v732 = vmul.f32 %v693, %v730
      %v733 = vmul.f32 %v694, %v730
      %v734 = vmul.f32 %v695, %v730
      %v735 = vmul.f32 %v696, %v730
      %v736 = vmul.f32 %v697, %v730
      %v737 = vmul.f32 %v698, %v730
      %v738 = vmul.f32 %v699, %v730
      %v739 = vadd.f32 %v718, %v731
      %v740 = vadd.f32 %v719, %v732
      %v741 = vadd.f32 %v720, %v733
      %v742 = vadd.f32 %v721, %v734
      %v743 = vadd.f32 %v722, %v735
      %v744 = vadd.f32 %v723, %v736
      %v745 = vadd.f32 %v724, %v737
      %v746 = vadd.f32 %v725, %v738
      %v747 = vld [vmem:[%s1 + $0x10] sm:$0x1]
      %v748 = vlaneseq
      %v749 = vshrl.u32 %v748, 7
      %v750 = vsub.s32 0, %v749
      %v751 = vrot.slane %v747, %v750
      %v752 = vmul.f32 %v693, %v751
      %v753 = vmul.f32 %v694, %v751
      %v754 = vmul.f32 %v695, %v751
      %v755 = vmul.f32 %v696, %v751
      %v756 = vmul.f32 %v697, %v751
      %v757 = vmul.f32 %v698, %v751
      %v758 = vmul.f32 %v699, %v751
      %v759 = vmul.f32 %v700, %v751
      %v760 = vadd.f32 %v739, %v752
      %v761 = vadd.f32 %v740, %v753
      %v762 = vadd.f32 %v741, %v754
      %v763 = vadd.f32 %v742, %v755
      %v764 = vadd.f32 %v743, %v756
      %v765 = vadd.f32 %v744, %v757
      %v766 = vadd.f32 %v745, %v758
      %v767 = vadd.f32 %v746, %v759
      %v768 = vld [vmem:[%s1 + $0x17] sm:$0x1]
      %v769 = vlaneseq
      %v770 = vshrl.u32 %v769, 7
      %v771 = vsub.s32 0, %v770
      %v772 = vrot.slane %v768, %v771
      %v773 = vmul.f32 %v694, %v772
      %v774 = vmul.f32 %v695, %v772
      %v775 = vmul.f32 %v696, %v772
      %v776 = vmul.f32 %v697, %v772
      %v777 = vmul.f32 %v698, %v772
      %v778 = vmul.f32 %v699, %v772
      %v779 = vmul.f32 %v700, %v772
      %v780 = vmul.f32 %v701, %v772
      %v781 = vadd.f32 %v760, %v773
      %v782 = vadd.f32 %v761, %v774
      %v783 = vadd.f32 %v762, %v775
      %v784 = vadd.f32 %v763, %v776
      %v785 = vadd.f32 %v764, %v777
      %v786 = vadd.f32 %v765, %v778
      %v787 = vadd.f32 %v766, %v779
      %v788 = vadd.f32 %v767, %v780
      %v789 = vld [vmem:[%s1 + $0x1e] sm:$0x1]
      %v790 = vlaneseq
      %v791 = vshrl.u32 %v790, 7
      %v792 = vsub.s32 0, %v791
      %v793 = vrot.slane %v789, %v792
      %v794 = vmul.f32 %v695, %v793
      %v795 = vmul.f32 %v696, %v793
      %v796 = vmul.f32 %v697, %v793
      %v797 = vmul.f32 %v698, %v793
      %v798 = vmul.f32 %v699, %v793
      %v799 = vmul.f32 %v700, %v793
      %v800 = vmul.f32 %v701, %v793
      %v801 = vmul.f32 %v702, %v793
      %v802 = vadd.f32 %v781, %v794
      %v803 = vadd.f32 %v782, %v795
      %v804 = vadd.f32 %v783, %v796
      %v805 = vadd.f32 %v784, %v797
      %v806 = vadd.f32 %v785, %v798
      %v807 = vadd.f32 %v786, %v799
      %v808 = vadd.f32 %v787, %v800
      %v809 = vadd.f32 %v788, %v801
      %v810 = vld [vmem:[%s1 + $0x25] sm:$0x1]
      %v811 = vlaneseq
      %v812 = vshrl.u32 %v811, 7
      %v813 = vsub.s32 0, %v812
      %v814 = vrot.slane %v810, %v813
      %v815 = vmul.f32 %v696, %v814
      %v816 = vmul.f32 %v697, %v814
      %v817 = vmul.f32 %v698, %v814
      %v818 = vmul.f32 %v699, %v814
      %v819 = vmul.f32 %v700, %v814
      %v820 = vmul.f32 %v701, %v814
      %v821 = vmul.f32 %v702, %v814
      %v822 = vmul.f32 %v703, %v814
      %v823 = vadd.f32 %v802, %v815
      %v824 = vadd.f32 %v803, %v816
      %v825 = vadd.f32 %v804, %v817
      %v826 = vadd.f32 %v805, %v818
      %v827 = vadd.f32 %v806, %v819
      %v828 = vadd.f32 %v807, %v820
      %v829 = vadd.f32 %v808, %v821
      %v830 = vadd.f32 %v809, %v822
      %v831 = vld [vmem:[%s1 + $0x2c] sm:$0x1]
      %v832 = vlaneseq
      %v833 = vshrl.u32 %v832, 7
      %v834 = vsub.s32 0, %v833
      %v835 = vrot.slane %v831, %v834
      %v836 = vmul.f32 %v697, %v835
      %v837 = vmul.f32 %v698, %v835
      %v838 = vmul.f32 %v699, %v835
      %v839 = vmul.f32 %v700, %v835
      %v840 = vmul.f32 %v701, %v835
      %v841 = vmul.f32 %v702, %v835
      %v842 = vmul.f32 %v703, %v835
      %v843 = vmul.f32 %v704, %v835
      %v844 = vadd.f32 %v823, %v836
      %v845 = vadd.f32 %v824, %v837
      %v846 = vadd.f32 %v825, %v838
      %v847 = vadd.f32 %v826, %v839
      %v848 = vadd.f32 %v827, %v840
      %v849 = vadd.f32 %v828, %v841
      %v850 = vadd.f32 %v829, %v842
      %v851 = vadd.f32 %v830, %v843
      %v852 = vld [vmem:[%s1 + $0x3] sm:$0x1]
      %v853 = vlaneseq
      %v854 = vshrl.u32 %v853, 7
      %v855 = vsub.s32 0, %v854
      %v856 = vrot.slane %v852, %v855
      %v857 = vmul.f32 %v239, %v856
      %v858 = vmul.f32 %v242, %v856
      %v859 = vmul.f32 %v245, %v856
      %v860 = vmul.f32 %v248, %v856
      %v861 = vmul.f32 %v251, %v856
      %v862 = vmul.f32 %v254, %v856
      %v863 = vmul.f32 %v257, %v856
      %v864 = vmul.f32 %v260, %v856
      %v865 = vadd.f32 %v844, %v857
      %v866 = vadd.f32 %v845, %v858
      %v867 = vadd.f32 %v846, %v859
      %v868 = vadd.f32 %v847, %v860
      %v869 = vadd.f32 %v848, %v861
      %v870 = vadd.f32 %v849, %v862
      %v871 = vadd.f32 %v850, %v863
      %v872 = vadd.f32 %v851, %v864
      %v873 = vld [vmem:[%s1 + $0xa] sm:$0x1]
      %v874 = vlaneseq
      %v875 = vshrl.u32 %v874, 7
      %v876 = vsub.s32 0, %v875
      %v877 = vrot.slane %v873, %v876
      %v878 = vmul.f32 %v242, %v877
      %v879 = vmul.f32 %v245, %v877
      %v880 = vmul.f32 %v248, %v877
      %v881 = vmul.f32 %v251, %v877
      %v882 = vmul.f32 %v254, %v877
      %v883 = vmul.f32 %v257, %v877
      %v884 = vmul.f32 %v260, %v877
      %v885 = vmul.f32 %v263, %v877
      %v886 = vadd.f32 %v865, %v878
      %v887 = vadd.f32 %v866, %v879
      %v888 = vadd.f32 %v867, %v880
      %v889 = vadd.f32 %v868, %v881
      %v890 = vadd.f32 %v869, %v882
      %v891 = vadd.f32 %v870, %v883
      %v892 = vadd.f32 %v871, %v884
      %v893 = vadd.f32 %v872, %v885
      %v894 = vld [vmem:[%s1 + $0x11] sm:$0x1]
      %v895 = vlaneseq
      %v896 = vshrl.u32 %v895, 7
      %v897 = vsub.s32 0, %v896
      %v898 = vrot.slane %v894, %v897
      %v899 = vmul.f32 %v245, %v898
      %v900 = vmul.f32 %v248, %v898
      %v901 = vmul.f32 %v251, %v898
      %v902 = vmul.f32 %v254, %v898
      %v903 = vmul.f32 %v257, %v898
      %v904 = vmul.f32 %v260, %v898
      %v905 = vmul.f32 %v263, %v898
      %v906 = vmul.f32 %v266, %v898
      %v907 = vadd.f32 %v886, %v899
      %v908 = vadd.f32 %v887, %v900
      %v909 = vadd.f32 %v888, %v901
      %v910 = vadd.f32 %v889, %v902
      %v911 = vadd.f32 %v890, %v903
      %v912 = vadd.f32 %v891, %v904
      %v913 = vadd.f32 %v892, %v905
      %v914 = vadd.f32 %v893, %v906
      %v915 = vld [vmem:[%s1 + $0x18] sm:$0x1]
      %v916 = vlaneseq
      %v917 = vshrl.u32 %v916, 7
      %v918 = vsub.s32 0, %v917
      %v919 = vrot.slane %v915, %v918
      %v920 = vmul.f32 %v248, %v919
      %v921 = vmul.f32 %v251, %v919
      %v922 = vmul.f32 %v254, %v919
      %v923 = vmul.f32 %v257, %v919
      %v924 = vmul.f32 %v260, %v919
      %v925 = vmul.f32 %v263, %v919
      %v926 = vmul.f32 %v266, %v919
      %v927 = vmul.f32 %v269, %v919
      %v928 = vadd.f32 %v907, %v920
      %v929 = vadd.f32 %v908, %v921
      %v930 = vadd.f32 %v909, %v922
      %v931 = vadd.f32 %v910, %v923
      %v932 = vadd.f32 %v911, %v924
      %v933 = vadd.f32 %v912, %v925
      %v934 = vadd.f32 %v913, %v926
      %v935 = vadd.f32 %v914, %v927
      %v936 = vld [vmem:[%s1 + $0x1f] sm:$0x1]
      %v937 = vlaneseq
      %v938 = vshrl.u32 %v937, 7
      %v939 = vsub.s32 0, %v938
      %v940 = vrot.slane %v936, %v939
      %v941 = vmul.f32 %v251, %v940
      %v942 = vmul.f32 %v254, %v940
      %v943 = vmul.f32 %v257, %v940
      %v944 = vmul.f32 %v260, %v940
      %v945 = vmul.f32 %v263, %v940
      %v946 = vmul.f32 %v266, %v940
      %v947 = vmul.f32 %v269, %v940
      %v948 = vmul.f32 %v272, %v940
      %v949 = vadd.f32 %v928, %v941
      %v950 = vadd.f32 %v929, %v942
      %v951 = vadd.f32 %v930, %v943
      %v952 = vadd.f32 %v931, %v944
      %v953 = vadd.f32 %v932, %v945
      %v954 = vadd.f32 %v933, %v946
      %v955 = vadd.f32 %v934, %v947
      %v956 = vadd.f32 %v935, %v948
      %v957 = vld [vmem:[%s1 + $0x26] sm:$0x1]
      %v958 = vlaneseq
      %v959 = vshrl.u32 %v958, 7
      %v960 = vsub.s32 0, %v959
      %v961 = vrot.slane %v957, %v960
      %v962 = vmul.f32 %v254, %v961
      %v963 = vmul.f32 %v257, %v961
      %v964 = vmul.f32 %v260, %v961
      %v965 = vmul.f32 %v263, %v961
      %v966 = vmul.f32 %v266, %v961
      %v967 = vmul.f32 %v269, %v961
      %v968 = vmul.f32 %v272, %v961
      %v969 = vmul.f32 %v275, %v961
      %v970 = vadd.f32 %v949, %v962
      %v971 = vadd.f32 %v950, %v963
      %v972 = vadd.f32 %v951, %v964
      %v973 = vadd.f32 %v952, %v965
      %v974 = vadd.f32 %v953, %v966
      %v975 = vadd.f32 %v954, %v967
      %v976 = vadd.f32 %v955, %v968
      %v977 = vadd.f32 %v956, %v969
      %v978 = vld [vmem:[%s1 + $0x2d] sm:$0x1]
      %v979 = vlaneseq
      %v980 = vshrl.u32 %v979, 7
      %v981 = vsub.s32 0, %v980
      %v982 = vrot.slane %v978, %v981
      %v983 = vmul.f32 %v257, %v982
      %v984 = vmul.f32 %v260, %v982
      %v985 = vmul.f32 %v263, %v982
      %v986 = vmul.f32 %v266, %v982
      %v987 = vmul.f32 %v269, %v982
      %v988 = vmul.f32 %v272, %v982
      %v989 = vmul.f32 %v275, %v982
      %v990 = vmul.f32 %v278, %v982
      %v991 = vadd.f32 %v970, %v983
      %v992 = vadd.f32 %v971, %v984
      %v993 = vadd.f32 %v972, %v985
      %v994 = vadd.f32 %v973, %v986
      %v995 = vadd.f32 %v974, %v987
      %v996 = vadd.f32 %v975, %v988
      %v997 = vadd.f32 %v976, %v989
      %v998 = vadd.f32 %v977, %v990
      %v999 = vrot.slane %v239, 1
      %v1000 = vrot.slane %v242, 1
      %v1001 = vrot.slane %v245, 1
      %v1002 = vrot.slane %v248, 1
      %v1003 = vrot.slane %v251, 1
      %v1004 = vrot.slane %v254, 1
      %v1005 = vrot.slane %v257, 1
      %v1006 = vrot.slane %v260, 1
      %v1007 = vrot.slane %v263, 1
      %v1008 = vrot.slane %v266, 1
      %v1009 = vrot.slane %v269, 1
      %v1010 = vrot.slane %v272, 1
      %v1011 = vrot.slane %v275, 1
      %v1012 = vrot.slane %v278, 1
      %v1013 = vrot.slane %v240, 1
      %v1014 = vrot.slane %v243, 1
      %v1015 = vrot.slane %v246, 1
      %v1016 = vrot.slane %v249, 1
      %v1017 = vrot.slane %v252, 1
      %v1018 = vrot.slane %v255, 1
      %v1019 = vrot.slane %v258, 1
      %v1020 = vrot.slane %v261, 1
      %v1021 = vrot.slane %v264, 1
      %v1022 = vrot.slane %v267, 1
      %v1023 = vrot.slane %v270, 1
      %v1024 = vrot.slane %v273, 1
      %v1025 = vrot.slane %v276, 1
      %v1026 = vrot.slane %v279, 1
      %vm1027 = vcmp.lt.s32.totalorder %v309, 7
      %v1028 = vsel %vm1027, %v999, %v1013
      %v1029 = vsel %vm1027, %v1000, %v1014
      %v1030 = vsel %vm1027, %v1001, %v1015
      %v1031 = vsel %vm1027, %v1002, %v1016
      %v1032 = vsel %vm1027, %v1003, %v1017
      %v1033 = vsel %vm1027, %v1004, %v1018
      %v1034 = vsel %vm1027, %v1005, %v1019
      %v1035 = vsel %vm1027, %v1006, %v1020
      %v1036 = vsel %vm1027, %v1007, %v1021
      %v1037 = vsel %vm1027, %v1008, %v1022
      %v1038 = vsel %vm1027, %v1009, %v1023
      %v1039 = vsel %vm1027, %v1010, %v1024
      %v1040 = vsel %vm1027, %v1011, %v1025
      %v1041 = vsel %vm1027, %v1012, %v1026
      %v1042 = vld [vmem:[%s1 + $0x4] sm:$0x1]
      %v1043 = vlaneseq
      %v1044 = vshrl.u32 %v1043, 7
      %v1045 = vsub.s32 0, %v1044
      %v1046 = vrot.slane %v1042, %v1045
      %v1047 = vmul.f32 %v1028, %v1046
      %v1048 = vmul.f32 %v1029, %v1046
      %v1049 = vmul.f32 %v1030, %v1046
      %v1050 = vmul.f32 %v1031, %v1046
      %v1051 = vmul.f32 %v1032, %v1046
      %v1052 = vmul.f32 %v1033, %v1046
      %v1053 = vmul.f32 %v1034, %v1046
      %v1054 = vmul.f32 %v1035, %v1046
      %v1055 = vadd.f32 %v991, %v1047
      %v1056 = vadd.f32 %v992, %v1048
      %v1057 = vadd.f32 %v993, %v1049
      %v1058 = vadd.f32 %v994, %v1050
      %v1059 = vadd.f32 %v995, %v1051
      %v1060 = vadd.f32 %v996, %v1052
      %v1061 = vadd.f32 %v997, %v1053
      %v1062 = vadd.f32 %v998, %v1054
      %v1063 = vld [vmem:[%s1 + $0xb] sm:$0x1]
      %v1064 = vlaneseq
      %v1065 = vshrl.u32 %v1064, 7
      %v1066 = vsub.s32 0, %v1065
      %v1067 = vrot.slane %v1063, %v1066
      %v1068 = vmul.f32 %v1029, %v1067
      %v1069 = vmul.f32 %v1030, %v1067
      %v1070 = vmul.f32 %v1031, %v1067
      %v1071 = vmul.f32 %v1032, %v1067
      %v1072 = vmul.f32 %v1033, %v1067
      %v1073 = vmul.f32 %v1034, %v1067
      %v1074 = vmul.f32 %v1035, %v1067
      %v1075 = vmul.f32 %v1036, %v1067
      %v1076 = vadd.f32 %v1055, %v1068
      %v1077 = vadd.f32 %v1056, %v1069
      %v1078 = vadd.f32 %v1057, %v1070
      %v1079 = vadd.f32 %v1058, %v1071
      %v1080 = vadd.f32 %v1059, %v1072
      %v1081 = vadd.f32 %v1060, %v1073
      %v1082 = vadd.f32 %v1061, %v1074
      %v1083 = vadd.f32 %v1062, %v1075
      %v1084 = vld [vmem:[%s1 + $0x12] sm:$0x1]
      %v1085 = vlaneseq
      %v1086 = vshrl.u32 %v1085, 7
      %v1087 = vsub.s32 0, %v1086
      %v1088 = vrot.slane %v1084, %v1087
      %v1089 = vmul.f32 %v1030, %v1088
      %v1090 = vmul.f32 %v1031, %v1088
      %v1091 = vmul.f32 %v1032, %v1088
      %v1092 = vmul.f32 %v1033, %v1088
      %v1093 = vmul.f32 %v1034, %v1088
      %v1094 = vmul.f32 %v1035, %v1088
      %v1095 = vmul.f32 %v1036, %v1088
      %v1096 = vmul.f32 %v1037, %v1088
      %v1097 = vadd.f32 %v1076, %v1089
      %v1098 = vadd.f32 %v1077, %v1090
      %v1099 = vadd.f32 %v1078, %v1091
      %v1100 = vadd.f32 %v1079, %v1092
      %v1101 = vadd.f32 %v1080, %v1093
      %v1102 = vadd.f32 %v1081, %v1094
      %v1103 = vadd.f32 %v1082, %v1095
      %v1104 = vadd.f32 %v1083, %v1096
      %v1105 = vld [vmem:[%s1 + $0x19] sm:$0x1]
      %v1106 = vlaneseq
      %v1107 = vshrl.u32 %v1106, 7
      %v1108 = vsub.s32 0, %v1107
      %v1109 = vrot.slane %v1105, %v1108
      %v1110 = vmul.f32 %v1031, %v1109
      %v1111 = vmul.f32 %v1032, %v1109
      %v1112 = vmul.f32 %v1033, %v1109
      %v1113 = vmul.f32 %v1034, %v1109
      %v1114 = vmul.f32 %v1035, %v1109
      %v1115 = vmul.f32 %v1036, %v1109
      %v1116 = vmul.f32 %v1037, %v1109
      %v1117 = vmul.f32 %v1038, %v1109
      %v1118 = vadd.f32 %v1097, %v1110
      %v1119 = vadd.f32 %v1098, %v1111
      %v1120 = vadd.f32 %v1099, %v1112
      %v1121 = vadd.f32 %v1100, %v1113
      %v1122 = vadd.f32 %v1101, %v1114
      %v1123 = vadd.f32 %v1102, %v1115
      %v1124 = vadd.f32 %v1103, %v1116
      %v1125 = vadd.f32 %v1104, %v1117
      %v1126 = vld [vmem:[%s1 + $0x20] sm:$0x1]
      %v1127 = vlaneseq
      %v1128 = vshrl.u32 %v1127, 7
      %v1129 = vsub.s32 0, %v1128
      %v1130 = vrot.slane %v1126, %v1129
      %v1131 = vmul.f32 %v1032, %v1130
      %v1132 = vmul.f32 %v1033, %v1130
      %v1133 = vmul.f32 %v1034, %v1130
      %v1134 = vmul.f32 %v1035, %v1130
      %v1135 = vmul.f32 %v1036, %v1130
      %v1136 = vmul.f32 %v1037, %v1130
      %v1137 = vmul.f32 %v1038, %v1130
      %v1138 = vmul.f32 %v1039, %v1130
      %v1139 = vadd.f32 %v1118, %v1131
      %v1140 = vadd.f32 %v1119, %v1132
      %v1141 = vadd.f32 %v1120, %v1133
      %v1142 = vadd.f32 %v1121, %v1134
      %v1143 = vadd.f32 %v1122, %v1135
      %v1144 = vadd.f32 %v1123, %v1136
      %v1145 = vadd.f32 %v1124, %v1137
      %v1146 = vadd.f32 %v1125, %v1138
      %v1147 = vld [vmem:[%s1 + $0x27] sm:$0x1]
      %v1148 = vlaneseq
      %v1149 = vshrl.u32 %v1148, 7
      %v1150 = vsub.s32 0, %v1149
      %v1151 = vrot.slane %v1147, %v1150
      %v1152 = vmul.f32 %v1033, %v1151
      %v1153 = vmul.f32 %v1034, %v1151
      %v1154 = vmul.f32 %v1035, %v1151
      %v1155 = vmul.f32 %v1036, %v1151
      %v1156 = vmul.f32 %v1037, %v1151
      %v1157 = vmul.f32 %v1038, %v1151
      %v1158 = vmul.f32 %v1039, %v1151
      %v1159 = vmul.f32 %v1040, %v1151
      %v1160 = vadd.f32 %v1139, %v1152
      %v1161 = vadd.f32 %v1140, %v1153
      %v1162 = vadd.f32 %v1141, %v1154
      %v1163 = vadd.f32 %v1142, %v1155
      %v1164 = vadd.f32 %v1143, %v1156
      %v1165 = vadd.f32 %v1144, %v1157
      %v1166 = vadd.f32 %v1145, %v1158
      %v1167 = vadd.f32 %v1146, %v1159
      %v1168 = vld [vmem:[%s1 + $0x2e] sm:$0x1]
      %v1169 = vlaneseq
      %v1170 = vshrl.u32 %v1169, 7
      %v1171 = vsub.s32 0, %v1170
      %v1172 = vrot.slane %v1168, %v1171
      %v1173 = vmul.f32 %v1034, %v1172
      %v1174 = vmul.f32 %v1035, %v1172
      %v1175 = vmul.f32 %v1036, %v1172
      %v1176 = vmul.f32 %v1037, %v1172
      %v1177 = vmul.f32 %v1038, %v1172
      %v1178 = vmul.f32 %v1039, %v1172
      %v1179 = vmul.f32 %v1040, %v1172
      %v1180 = vmul.f32 %v1041, %v1172
      %v1181 = vadd.f32 %v1160, %v1173
      %v1182 = vadd.f32 %v1161, %v1174
      %v1183 = vadd.f32 %v1162, %v1175
      %v1184 = vadd.f32 %v1163, %v1176
      %v1185 = vadd.f32 %v1164, %v1177
      %v1186 = vadd.f32 %v1165, %v1178
      %v1187 = vadd.f32 %v1166, %v1179
      %v1188 = vadd.f32 %v1167, %v1180
      %v1189 = vrot.slane %v239, 2
      %v1190 = vrot.slane %v242, 2
      %v1191 = vrot.slane %v245, 2
      %v1192 = vrot.slane %v248, 2
      %v1193 = vrot.slane %v251, 2
      %v1194 = vrot.slane %v254, 2
      %v1195 = vrot.slane %v257, 2
      %v1196 = vrot.slane %v260, 2
      %v1197 = vrot.slane %v263, 2
      %v1198 = vrot.slane %v266, 2
      %v1199 = vrot.slane %v269, 2
      %v1200 = vrot.slane %v272, 2
      %v1201 = vrot.slane %v275, 2
      %v1202 = vrot.slane %v278, 2
      %v1203 = vrot.slane %v240, 2
      %v1204 = vrot.slane %v243, 2
      %v1205 = vrot.slane %v246, 2
      %v1206 = vrot.slane %v249, 2
      %v1207 = vrot.slane %v252, 2
      %v1208 = vrot.slane %v255, 2
      %v1209 = vrot.slane %v258, 2
      %v1210 = vrot.slane %v261, 2
      %v1211 = vrot.slane %v264, 2
      %v1212 = vrot.slane %v267, 2
      %v1213 = vrot.slane %v270, 2
      %v1214 = vrot.slane %v273, 2
      %v1215 = vrot.slane %v276, 2
      %v1216 = vrot.slane %v279, 2
      %vm1217 = vcmp.lt.s32.totalorder %v309, 6
      %v1218 = vsel %vm1217, %v1189, %v1203
      %v1219 = vsel %vm1217, %v1190, %v1204
      %v1220 = vsel %vm1217, %v1191, %v1205
      %v1221 = vsel %vm1217, %v1192, %v1206
      %v1222 = vsel %vm1217, %v1193, %v1207
      %v1223 = vsel %vm1217, %v1194, %v1208
      %v1224 = vsel %vm1217, %v1195, %v1209
      %v1225 = vsel %vm1217, %v1196, %v1210
      %v1226 = vsel %vm1217, %v1197, %v1211
      %v1227 = vsel %vm1217, %v1198, %v1212
      %v1228 = vsel %vm1217, %v1199, %v1213
      %v1229 = vsel %vm1217, %v1200, %v1214
      %v1230 = vsel %vm1217, %v1201, %v1215
      %v1231 = vsel %vm1217, %v1202, %v1216
      %v1232 = vld [vmem:[%s1 + $0x5] sm:$0x1]
      %v1233 = vlaneseq
      %v1234 = vshrl.u32 %v1233, 7
      %v1235 = vsub.s32 0, %v1234
      %v1236 = vrot.slane %v1232, %v1235
      %v1237 = vmul.f32 %v1218, %v1236
      %v1238 = vmul.f32 %v1219, %v1236
      %v1239 = vmul.f32 %v1220, %v1236
      %v1240 = vmul.f32 %v1221, %v1236
      %v1241 = vmul.f32 %v1222, %v1236
      %v1242 = vmul.f32 %v1223, %v1236
      %v1243 = vmul.f32 %v1224, %v1236
      %v1244 = vmul.f32 %v1225, %v1236
      %v1245 = vadd.f32 %v1181, %v1237
      %v1246 = vadd.f32 %v1182, %v1238
      %v1247 = vadd.f32 %v1183, %v1239
      %v1248 = vadd.f32 %v1184, %v1240
      %v1249 = vadd.f32 %v1185, %v1241
      %v1250 = vadd.f32 %v1186, %v1242
      %v1251 = vadd.f32 %v1187, %v1243
      %v1252 = vadd.f32 %v1188, %v1244
      %v1253 = vld [vmem:[%s1 + $0xc] sm:$0x1]
      %v1254 = vlaneseq
      %v1255 = vshrl.u32 %v1254, 7
      %v1256 = vsub.s32 0, %v1255
      %v1257 = vrot.slane %v1253, %v1256
      %v1258 = vmul.f32 %v1219, %v1257
      %v1259 = vmul.f32 %v1220, %v1257
      %v1260 = vmul.f32 %v1221, %v1257
      %v1261 = vmul.f32 %v1222, %v1257
      %v1262 = vmul.f32 %v1223, %v1257
      %v1263 = vmul.f32 %v1224, %v1257
      %v1264 = vmul.f32 %v1225, %v1257
      %v1265 = vmul.f32 %v1226, %v1257
      %v1266 = vadd.f32 %v1245, %v1258
      %v1267 = vadd.f32 %v1246, %v1259
      %v1268 = vadd.f32 %v1247, %v1260
      %v1269 = vadd.f32 %v1248, %v1261
      %v1270 = vadd.f32 %v1249, %v1262
      %v1271 = vadd.f32 %v1250, %v1263
      %v1272 = vadd.f32 %v1251, %v1264
      %v1273 = vadd.f32 %v1252, %v1265
      %v1274 = vld [vmem:[%s1 + $0x13] sm:$0x1]
      %v1275 = vlaneseq
      %v1276 = vshrl.u32 %v1275, 7
      %v1277 = vsub.s32 0, %v1276
      %v1278 = vrot.slane %v1274, %v1277
      %v1279 = vmul.f32 %v1220, %v1278
      %v1280 = vmul.f32 %v1221, %v1278
      %v1281 = vmul.f32 %v1222, %v1278
      %v1282 = vmul.f32 %v1223, %v1278
      %v1283 = vmul.f32 %v1224, %v1278
      %v1284 = vmul.f32 %v1225, %v1278
      %v1285 = vmul.f32 %v1226, %v1278
      %v1286 = vmul.f32 %v1227, %v1278
      %v1287 = vadd.f32 %v1266, %v1279
      %v1288 = vadd.f32 %v1267, %v1280
      %v1289 = vadd.f32 %v1268, %v1281
      %v1290 = vadd.f32 %v1269, %v1282
      %v1291 = vadd.f32 %v1270, %v1283
      %v1292 = vadd.f32 %v1271, %v1284
      %v1293 = vadd.f32 %v1272, %v1285
      %v1294 = vadd.f32 %v1273, %v1286
      %v1295 = vld [vmem:[%s1 + $0x1a] sm:$0x1]
      %v1296 = vlaneseq
      %v1297 = vshrl.u32 %v1296, 7
      %v1298 = vsub.s32 0, %v1297
      %v1299 = vrot.slane %v1295, %v1298
      %v1300 = vmul.f32 %v1221, %v1299
      %v1301 = vmul.f32 %v1222, %v1299
      %v1302 = vmul.f32 %v1223, %v1299
      %v1303 = vmul.f32 %v1224, %v1299
      %v1304 = vmul.f32 %v1225, %v1299
      %v1305 = vmul.f32 %v1226, %v1299
      %v1306 = vmul.f32 %v1227, %v1299
      %v1307 = vmul.f32 %v1228, %v1299
      %v1308 = vadd.f32 %v1287, %v1300
      %v1309 = vadd.f32 %v1288, %v1301
      %v1310 = vadd.f32 %v1289, %v1302
      %v1311 = vadd.f32 %v1290, %v1303
      %v1312 = vadd.f32 %v1291, %v1304
      %v1313 = vadd.f32 %v1292, %v1305
      %v1314 = vadd.f32 %v1293, %v1306
      %v1315 = vadd.f32 %v1294, %v1307
      %v1316 = vld [vmem:[%s1 + $0x21] sm:$0x1]
      %v1317 = vlaneseq
      %v1318 = vshrl.u32 %v1317, 7
      %v1319 = vsub.s32 0, %v1318
      %v1320 = vrot.slane %v1316, %v1319
      %v1321 = vmul.f32 %v1222, %v1320
      %v1322 = vmul.f32 %v1223, %v1320
      %v1323 = vmul.f32 %v1224, %v1320
      %v1324 = vmul.f32 %v1225, %v1320
      %v1325 = vmul.f32 %v1226, %v1320
      %v1326 = vmul.f32 %v1227, %v1320
      %v1327 = vmul.f32 %v1228, %v1320
      %v1328 = vmul.f32 %v1229, %v1320
      %v1329 = vadd.f32 %v1308, %v1321
      %v1330 = vadd.f32 %v1309, %v1322
      %v1331 = vadd.f32 %v1310, %v1323
      %v1332 = vadd.f32 %v1311, %v1324
      %v1333 = vadd.f32 %v1312, %v1325
      %v1334 = vadd.f32 %v1313, %v1326
      %v1335 = vadd.f32 %v1314, %v1327
      %v1336 = vadd.f32 %v1315, %v1328
      %v1337 = vld [vmem:[%s1 + $0x28] sm:$0x1]
      %v1338 = vlaneseq
      %v1339 = vshrl.u32 %v1338, 7
      %v1340 = vsub.s32 0, %v1339
      %v1341 = vrot.slane %v1337, %v1340
      %v1342 = vmul.f32 %v1223, %v1341
      %v1343 = vmul.f32 %v1224, %v1341
      %v1344 = vmul.f32 %v1225, %v1341
      %v1345 = vmul.f32 %v1226, %v1341
      %v1346 = vmul.f32 %v1227, %v1341
      %v1347 = vmul.f32 %v1228, %v1341
      %v1348 = vmul.f32 %v1229, %v1341
      %v1349 = vmul.f32 %v1230, %v1341
      %v1350 = vadd.f32 %v1329, %v1342
      %v1351 = vadd.f32 %v1330, %v1343
      %v1352 = vadd.f32 %v1331, %v1344
      %v1353 = vadd.f32 %v1332, %v1345
      %v1354 = vadd.f32 %v1333, %v1346
      %v1355 = vadd.f32 %v1334, %v1347
      %v1356 = vadd.f32 %v1335, %v1348
      %v1357 = vadd.f32 %v1336, %v1349
      %v1358 = vld [vmem:[%s1 + $0x2f] sm:$0x1]
      %v1359 = vlaneseq
      %v1360 = vshrl.u32 %v1359, 7
      %v1361 = vsub.s32 0, %v1360
      %v1362 = vrot.slane %v1358, %v1361
      %v1363 = vmul.f32 %v1224, %v1362
      %v1364 = vmul.f32 %v1225, %v1362
      %v1365 = vmul.f32 %v1226, %v1362
      %v1366 = vmul.f32 %v1227, %v1362
      %v1367 = vmul.f32 %v1228, %v1362
      %v1368 = vmul.f32 %v1229, %v1362
      %v1369 = vmul.f32 %v1230, %v1362
      %v1370 = vmul.f32 %v1231, %v1362
      %v1371 = vadd.f32 %v1350, %v1363
      %v1372 = vadd.f32 %v1351, %v1364
      %v1373 = vadd.f32 %v1352, %v1365
      %v1374 = vadd.f32 %v1353, %v1366
      %v1375 = vadd.f32 %v1354, %v1367
      %v1376 = vadd.f32 %v1355, %v1368
      %v1377 = vadd.f32 %v1356, %v1369
      %v1378 = vadd.f32 %v1357, %v1370
      %v1379 = vrot.slane %v239, 3
      %v1380 = vrot.slane %v242, 3
      %v1381 = vrot.slane %v245, 3
      %v1382 = vrot.slane %v248, 3
      %v1383 = vrot.slane %v251, 3
      %v1384 = vrot.slane %v254, 3
      %v1385 = vrot.slane %v257, 3
      %v1386 = vrot.slane %v260, 3
      %v1387 = vrot.slane %v263, 3
      %v1388 = vrot.slane %v266, 3
      %v1389 = vrot.slane %v269, 3
      %v1390 = vrot.slane %v272, 3
      %v1391 = vrot.slane %v275, 3
      %v1392 = vrot.slane %v278, 3
      %v1393 = vrot.slane %v240, 3
      %v1394 = vrot.slane %v243, 3
      %v1395 = vrot.slane %v246, 3
      %v1396 = vrot.slane %v249, 3
      %v1397 = vrot.slane %v252, 3
      %v1398 = vrot.slane %v255, 3
      %v1399 = vrot.slane %v258, 3
      %v1400 = vrot.slane %v261, 3
      %v1401 = vrot.slane %v264, 3
      %v1402 = vrot.slane %v267, 3
      %v1403 = vrot.slane %v270, 3
      %v1404 = vrot.slane %v273, 3
      %v1405 = vrot.slane %v276, 3
      %v1406 = vrot.slane %v279, 3
      %vm1407 = vcmp.lt.s32.totalorder %v309, 5
      %v1408 = vsel %vm1407, %v1379, %v1393
      %v1409 = vsel %vm1407, %v1380, %v1394
      %v1410 = vsel %vm1407, %v1381, %v1395
      %v1411 = vsel %vm1407, %v1382, %v1396
      %v1412 = vsel %vm1407, %v1383, %v1397
      %v1413 = vsel %vm1407, %v1384, %v1398
      %v1414 = vsel %vm1407, %v1385, %v1399
      %v1415 = vsel %vm1407, %v1386, %v1400
      %v1416 = vsel %vm1407, %v1387, %v1401
      %v1417 = vsel %vm1407, %v1388, %v1402
      %v1418 = vsel %vm1407, %v1389, %v1403
      %v1419 = vsel %vm1407, %v1390, %v1404
      %v1420 = vsel %vm1407, %v1391, %v1405
      %v1421 = vsel %vm1407, %v1392, %v1406
      %v1422 = vld [vmem:[%s1 + $0x6] sm:$0x1]
      %v1423 = vlaneseq
      %v1424 = vshrl.u32 %v1423, 7
      %v1425 = vsub.s32 0, %v1424
      %v1426 = vrot.slane %v1422, %v1425
      %v1427 = vmul.f32 %v1408, %v1426
      %v1428 = vmul.f32 %v1409, %v1426
      %v1429 = vmul.f32 %v1410, %v1426
      %v1430 = vmul.f32 %v1411, %v1426
      %v1431 = vmul.f32 %v1412, %v1426
      %v1432 = vmul.f32 %v1413, %v1426
      %v1433 = vmul.f32 %v1414, %v1426
      %v1434 = vmul.f32 %v1415, %v1426
      %v1435 = vadd.f32 %v1371, %v1427
      %v1436 = vadd.f32 %v1372, %v1428
      %v1437 = vadd.f32 %v1373, %v1429
      %v1438 = vadd.f32 %v1374, %v1430
      %v1439 = vadd.f32 %v1375, %v1431
      %v1440 = vadd.f32 %v1376, %v1432
      %v1441 = vadd.f32 %v1377, %v1433
      %v1442 = vadd.f32 %v1378, %v1434
      %v1443 = vld [vmem:[%s1 + $0xd] sm:$0x1]
      %v1444 = vlaneseq
      %v1445 = vshrl.u32 %v1444, 7
      %v1446 = vsub.s32 0, %v1445
      %v1447 = vrot.slane %v1443, %v1446
      %v1448 = vmul.f32 %v1409, %v1447
      %v1449 = vmul.f32 %v1410, %v1447
      %v1450 = vmul.f32 %v1411, %v1447
      %v1451 = vmul.f32 %v1412, %v1447
      %v1452 = vmul.f32 %v1413, %v1447
      %v1453 = vmul.f32 %v1414, %v1447
      %v1454 = vmul.f32 %v1415, %v1447
      %v1455 = vmul.f32 %v1416, %v1447
      %v1456 = vadd.f32 %v1435, %v1448
      %v1457 = vadd.f32 %v1436, %v1449
      %v1458 = vadd.f32 %v1437, %v1450
      %v1459 = vadd.f32 %v1438, %v1451
      %v1460 = vadd.f32 %v1439, %v1452
      %v1461 = vadd.f32 %v1440, %v1453
      %v1462 = vadd.f32 %v1441, %v1454
      %v1463 = vadd.f32 %v1442, %v1455
      %v1464 = vld [vmem:[%s1 + $0x14] sm:$0x1]
      %v1465 = vlaneseq
      %v1466 = vshrl.u32 %v1465, 7
      %v1467 = vsub.s32 0, %v1466
      %v1468 = vrot.slane %v1464, %v1467
      %v1469 = vmul.f32 %v1410, %v1468
      %v1470 = vmul.f32 %v1411, %v1468
      %v1471 = vmul.f32 %v1412, %v1468
      %v1472 = vmul.f32 %v1413, %v1468
      %v1473 = vmul.f32 %v1414, %v1468
      %v1474 = vmul.f32 %v1415, %v1468
      %v1475 = vmul.f32 %v1416, %v1468
      %v1476 = vmul.f32 %v1417, %v1468
      %v1477 = vadd.f32 %v1456, %v1469
      %v1478 = vadd.f32 %v1457, %v1470
      %v1479 = vadd.f32 %v1458, %v1471
      %v1480 = vadd.f32 %v1459, %v1472
      %v1481 = vadd.f32 %v1460, %v1473
      %v1482 = vadd.f32 %v1461, %v1474
      %v1483 = vadd.f32 %v1462, %v1475
      %v1484 = vadd.f32 %v1463, %v1476
      %v1485 = vld [vmem:[%s1 + $0x1b] sm:$0x1]
      %v1486 = vlaneseq
      %v1487 = vshrl.u32 %v1486, 7
      %v1488 = vsub.s32 0, %v1487
      %v1489 = vrot.slane %v1485, %v1488
      %v1490 = vmul.f32 %v1411, %v1489
      %v1491 = vmul.f32 %v1412, %v1489
      %v1492 = vmul.f32 %v1413, %v1489
      %v1493 = vmul.f32 %v1414, %v1489
      %v1494 = vmul.f32 %v1415, %v1489
      %v1495 = vmul.f32 %v1416, %v1489
      %v1496 = vmul.f32 %v1417, %v1489
      %v1497 = vmul.f32 %v1418, %v1489
      %v1498 = vadd.f32 %v1477, %v1490
      %v1499 = vadd.f32 %v1478, %v1491
      %v1500 = vadd.f32 %v1479, %v1492
      %v1501 = vadd.f32 %v1480, %v1493
      %v1502 = vadd.f32 %v1481, %v1494
      %v1503 = vadd.f32 %v1482, %v1495
      %v1504 = vadd.f32 %v1483, %v1496
      %v1505 = vadd.f32 %v1484, %v1497
      %v1506 = vld [vmem:[%s1 + $0x22] sm:$0x1]
      %v1507 = vlaneseq
      %v1508 = vshrl.u32 %v1507, 7
      %v1509 = vsub.s32 0, %v1508
      %v1510 = vrot.slane %v1506, %v1509
      %v1511 = vmul.f32 %v1412, %v1510
      %v1512 = vmul.f32 %v1413, %v1510
      %v1513 = vmul.f32 %v1414, %v1510
      %v1514 = vmul.f32 %v1415, %v1510
      %v1515 = vmul.f32 %v1416, %v1510
      %v1516 = vmul.f32 %v1417, %v1510
      %v1517 = vmul.f32 %v1418, %v1510
      %v1518 = vmul.f32 %v1419, %v1510
      %v1519 = vadd.f32 %v1498, %v1511
      %v1520 = vadd.f32 %v1499, %v1512
      %v1521 = vadd.f32 %v1500, %v1513
      %v1522 = vadd.f32 %v1501, %v1514
      %v1523 = vadd.f32 %v1502, %v1515
      %v1524 = vadd.f32 %v1503, %v1516
      %v1525 = vadd.f32 %v1504, %v1517
      %v1526 = vadd.f32 %v1505, %v1518
      %v1527 = vld [vmem:[%s1 + $0x29] sm:$0x1]
      %v1528 = vlaneseq
      %v1529 = vshrl.u32 %v1528, 7
      %v1530 = vsub.s32 0, %v1529
      %v1531 = vrot.slane %v1527, %v1530
      %v1532 = vmul.f32 %v1413, %v1531
      %v1533 = vmul.f32 %v1414, %v1531
      %v1534 = vmul.f32 %v1415, %v1531
      %v1535 = vmul.f32 %v1416, %v1531
      %v1536 = vmul.f32 %v1417, %v1531
      %v1537 = vmul.f32 %v1418, %v1531
      %v1538 = vmul.f32 %v1419, %v1531
      %v1539 = vmul.f32 %v1420, %v1531
      %v1540 = vadd.f32 %v1519, %v1532
      %v1541 = vadd.f32 %v1520, %v1533
      %v1542 = vadd.f32 %v1521, %v1534
      %v1543 = vadd.f32 %v1522, %v1535
      %v1544 = vadd.f32 %v1523, %v1536
      %v1545 = vadd.f32 %v1524, %v1537
      %v1546 = vadd.f32 %v1525, %v1538
      %v1547 = vadd.f32 %v1526, %v1539
      %v1548 = vld [vmem:[%s1 + $0x30] sm:$0x1]
      %v1549 = vlaneseq
      %v1550 = vshrl.u32 %v1549, 7
      %v1551 = vsub.s32 0, %v1550
      %v1552 = vrot.slane %v1548, %v1551
      %v1553 = vmul.f32 %v1414, %v1552
      %v1554 = vmul.f32 %v1415, %v1552
      %v1555 = vmul.f32 %v1416, %v1552
      %v1556 = vmul.f32 %v1417, %v1552
      %v1557 = vmul.f32 %v1418, %v1552
      %v1558 = vmul.f32 %v1419, %v1552
      %v1559 = vmul.f32 %v1420, %v1552
      %v1560 = vmul.f32 %v1421, %v1552
      %v1561 = vadd.f32 %v1540, %v1553
      %v1562 = vadd.f32 %v1541, %v1554
      %v1563 = vadd.f32 %v1542, %v1555
      %v1564 = vadd.f32 %v1543, %v1556
      %v1565 = vadd.f32 %v1544, %v1557
      %v1566 = vadd.f32 %v1545, %v1558
      %v1567 = vadd.f32 %v1546, %v1559
      %v1568 = vadd.f32 %v1547, %v1560
      %1569 = vst [vmem:[%s177] sm:$0xff] %v1561
      %1570 = vst [vmem:[%s177 + $0x8] sm:$0xff] %v1562
      %1571 = vst [vmem:[%s177 + $0x10] sm:$0xff] %v1563
      %1572 = vst [vmem:[%s177 + $0x18] sm:$0xff] %v1564
      %1573 = vst [vmem:[%s177 + $0x20] sm:$0xff] %v1565
      %1574 = vst [vmem:[%s177 + $0x28] sm:$0xff] %v1566
      %1575 = vst [vmem:[%s177 + $0x30] sm:$0xff] %v1567
      %1576 = vst [vmem:[%s177 + $0x38] sm:$0xff] %v1568
      %s1577 = scalar_lea.vmem %s170, 64
      %v1578 = vld [vmem:[%s1577] sm:$0xff]
      %v1579 = vld [vmem:[%s1577 + $0x8] sm:$0xff]
      %v1580 = vld [vmem:[%s1577 + $0x10] sm:$0xff]
      %v1581 = vld [vmem:[%s1577 + $0x18] sm:$0xff]
      %v1582 = vld [vmem:[%s1577 + $0x20] sm:$0xff]
      %v1583 = vld [vmem:[%s1577 + $0x28] sm:$0xff]
      %v1584 = vld [vmem:[%s1577 + $0x30] sm:$0xff]
      %v1585 = vld [vmem:[%s1577 + $0x38] sm:$0xff]
      %1586 = vst [vmem:[%s198 + $0x8] sm:$0xff] %v1578
      %1587 = vst [vmem:[%s198 + $0x20] sm:$0xff] %v1579
      %1588 = vst [vmem:[%s198 + $0x38] sm:$0xff] %v1580
      %1589 = vst [vmem:[%s198 + $0x50] sm:$0xff] %v1581
      %1590 = vst [vmem:[%s198 + $0x68] sm:$0xff] %v1582
      %1591 = vst [vmem:[%s198 + $0x80] sm:$0xff] %v1583
      %1592 = vst [vmem:[%s198 + $0x98] sm:$0xff] %v1584
      %1593 = vst [vmem:[%s198 + $0xb0] sm:$0xff] %v1585
      %v1594 = vld [vmem:[#allocation2] sm:$0xff]
      %v1595 = vld [vmem:[#allocation2 + $0x8] sm:$0xff]
      %v1596 = vld [vmem:[#allocation2 + $0x10] sm:$0xff]
      %v1597 = vld [vmem:[#allocation2 + $0x18] sm:$0xff]
      %v1598 = vld [vmem:[#allocation2 + $0x20] sm:$0xff]
      %v1599 = vld [vmem:[#allocation2 + $0x28] sm:$0xff]
      %v1600 = vld [vmem:[#allocation2 + $0x30] sm:$0xff]
      %v1601 = vld [vmem:[#allocation2 + $0x38] sm:$0xff]
      %v1602 = vld [vmem:[#allocation2 + $0x40] sm:$0xff]
      %v1603 = vld [vmem:[#allocation2 + $0x48] sm:$0xff]
      %v1604 = vld [vmem:[#allocation2 + $0x50] sm:$0xff]
      %v1605 = vld [vmem:[#allocation2 + $0x58] sm:$0xff]
      %v1606 = vld [vmem:[#allocation2 + $0x60] sm:$0xff]
      %v1607 = vld [vmem:[#allocation2 + $0x68] sm:$0xff]
      %v1608 = vld [vmem:[#allocation2 + $0x70] sm:$0xff]
      %v1609 = vld [vmem:[#allocation2 + $0x78] sm:$0xff]
      %v1610 = vld [vmem:[#allocation2 + $0x80] sm:$0xff]
      %v1611 = vld [vmem:[#allocation2 + $0x88] sm:$0xff]
      %v1612 = vld [vmem:[#allocation2 + $0x90] sm:$0xff]
      %v1613 = vld [vmem:[#allocation2 + $0x98] sm:$0xff]
      %v1614 = vld [vmem:[#allocation2 + $0xa0] sm:$0xff]
      %v1615 = vld [vmem:[#allocation2 + $0xa8] sm:$0xff]
      %v1616 = vld [vmem:[#allocation2 + $0xb0] sm:$0xff]
      %v1617 = vld [vmem:[#allocation2 + $0xb8] sm:$0xff]
      %v1618 = vld [vmem:[#allocation2 + $0xc0] sm:$0xff]
      %v1619 = vld [vmem:[#allocation2 + $0xc8] sm:$0xff]
      %v1620 = vld [vmem:[#allocation2 + $0xd0] sm:$0xff]
      %v1621 = vld [vmem:[#allocation2 + $0xd8] sm:$0xff]
      %v1622 = vld [vmem:[#allocation2 + $0xe0] sm:$0xff]
      %v1623 = vld [vmem:[#allocation2 + $0xe8] sm:$0xff]
      %v1624 = vld [vmem:[#allocation2 + $0xf0] sm:$0xff]
      %v1625 = vld [vmem:[#allocation2 + $0xf8] sm:$0xff]
      %v1626 = vld [vmem:[#allocation2 + $0x100] sm:$0xff]
      %v1627 = vld [vmem:[#allocation2 + $0x108] sm:$0xff]
      %v1628 = vld [vmem:[#allocation2 + $0x110] sm:$0xff]
      %v1629 = vld [vmem:[#allocation2 + $0x118] sm:$0xff]
      %v1630 = vld [vmem:[#allocation2 + $0x120] sm:$0xff]
      %v1631 = vld [vmem:[#allocation2 + $0x128] sm:$0xff]
      %v1632 = vld [vmem:[#allocation2 + $0x130] sm:$0xff]
      %v1633 = vld [vmem:[#allocation2 + $0x138] sm:$0xff]
      %v1634 = vld [vmem:[#allocation2 + $0x140] sm:$0xff]
      %v1635 = vld [vmem:[#allocation2 + $0x148] sm:$0xff]
      %v1636 = vrot.slane %v1594, 5
      %v1637 = vrot.slane %v1597, 5
      %v1638 = vrot.slane %v1600, 5
      %v1639 = vrot.slane %v1603, 5
      %v1640 = vrot.slane %v1606, 5
      %v1641 = vrot.slane %v1609, 5
      %v1642 = vrot.slane %v1612, 5
      %v1643 = vrot.slane %v1615, 5
      %v1644 = vrot.slane %v1618, 5
      %v1645 = vrot.slane %v1621, 5
      %v1646 = vrot.slane %v1624, 5
      %v1647 = vrot.slane %v1627, 5
      %v1648 = vrot.slane %v1630, 5
      %v1649 = vrot.slane %v1633, 5
      %v1650 = vrot.slane %v1595, 5
      %v1651 = vrot.slane %v1598, 5
      %v1652 = vrot.slane %v1601, 5
      %v1653 = vrot.slane %v1604, 5
      %v1654 = vrot.slane %v1607, 5
      %v1655 = vrot.slane %v1610, 5
      %v1656 = vrot.slane %v1613, 5
      %v1657 = vrot.slane %v1616, 5
      %v1658 = vrot.slane %v1619, 5
      %v1659 = vrot.slane %v1622, 5
      %v1660 = vrot.slane %v1625, 5
      %v1661 = vrot.slane %v1628, 5
      %v1662 = vrot.slane %v1631, 5
      %v1663 = vrot.slane %v1634, 5
      %v1664 = vsel %vm310, %v1636, %v1650
      %v1665 = vsel %vm310, %v1637, %v1651
      %v1666 = vsel %vm310, %v1638, %v1652
      %v1667 = vsel %vm310, %v1639, %v1653
      %v1668 = vsel %vm310, %v1640, %v1654
      %v1669 = vsel %vm310, %v1641, %v1655
      %v1670 = vsel %vm310, %v1642, %v1656
      %v1671 = vsel %vm310, %v1643, %v1657
      %v1672 = vsel %vm310, %v1644, %v1658
      %v1673 = vsel %vm310, %v1645, %v1659
      %v1674 = vsel %vm310, %v1646, %v1660
      %v1675 = vsel %vm310, %v1647, %v1661
      %v1676 = vsel %vm310, %v1648, %v1662
      %v1677 = vsel %vm310, %v1649, %v1663
      %v1678 = vld [vmem:[%s1] sm:$0x1]
      %v1679 = vlaneseq
      %v1680 = vshrl.u32 %v1679, 7
      %v1681 = vsub.s32 0, %v1680
      %v1682 = vrot.slane %v1678, %v1681
      %v1683 = vmul.f32 %v1664, %v1682
      %v1684 = vmul.f32 %v1665, %v1682
      %v1685 = vmul.f32 %v1666, %v1682
      %v1686 = vmul.f32 %v1667, %v1682
      %v1687 = vmul.f32 %v1668, %v1682
      %v1688 = vmul.f32 %v1669, %v1682
      %v1689 = vmul.f32 %v1670, %v1682
      %v1690 = vmul.f32 %v1671, %v1682
      %v1691 = vadd.f32 %v220, %v1683
      %v1692 = vadd.f32 %v220, %v1684
      %v1693 = vadd.f32 %v220, %v1685
      %v1694 = vadd.f32 %v220, %v1686
      %v1695 = vadd.f32 %v220, %v1687
      %v1696 = vadd.f32 %v220, %v1688
      %v1697 = vadd.f32 %v220, %v1689
      %v1698 = vadd.f32 %v220, %v1690
      %v1699 = vld [vmem:[%s1 + $0x7] sm:$0x1]
      %v1700 = vlaneseq
      %v1701 = vshrl.u32 %v1700, 7
      %v1702 = vsub.s32 0, %v1701
      %v1703 = vrot.slane %v1699, %v1702
      %v1704 = vmul.f32 %v1665, %v1703
      %v1705 = vmul.f32 %v1666, %v1703
      %v1706 = vmul.f32 %v1667, %v1703
      %v1707 = vmul.f32 %v1668, %v1703
      %v1708 = vmul.f32 %v1669, %v1703
      %v1709 = vmul.f32 %v1670, %v1703
      %v1710 = vmul.f32 %v1671, %v1703
      %v1711 = vmul.f32 %v1672, %v1703
      %v1712 = vadd.f32 %v1691, %v1704
      %v1713 = vadd.f32 %v1692, %v1705
      %v1714 = vadd.f32 %v1693, %v1706
      %v1715 = vadd.f32 %v1694, %v1707
      %v1716 = vadd.f32 %v1695, %v1708
      %v1717 = vadd.f32 %v1696, %v1709
      %v1718 = vadd.f32 %v1697, %v1710
      %v1719 = vadd.f32 %v1698, %v1711
      %v1720 = vld [vmem:[%s1 + $0xe] sm:$0x1]
      %v1721 = vlaneseq
      %v1722 = vshrl.u32 %v1721, 7
      %v1723 = vsub.s32 0, %v1722
      %v1724 = vrot.slane %v1720, %v1723
      %v1725 = vmul.f32 %v1666, %v1724
      %v1726 = vmul.f32 %v1667, %v1724
      %v1727 = vmul.f32 %v1668, %v1724
      %v1728 = vmul.f32 %v1669, %v1724
      %v1729 = vmul.f32 %v1670, %v1724
      %v1730 = vmul.f32 %v1671, %v1724
      %v1731 = vmul.f32 %v1672, %v1724
      %v1732 = vmul.f32 %v1673, %v1724
      %v1733 = vadd.f32 %v1712, %v1725
      %v1734 = vadd.f32 %v1713, %v1726
      %v1735 = vadd.f32 %v1714, %v1727
      %v1736 = vadd.f32 %v1715, %v1728
      %v1737 = vadd.f32 %v1716, %v1729
      %v1738 = vadd.f32 %v1717, %v1730
      %v1739 = vadd.f32 %v1718, %v1731
      %v1740 = vadd.f32 %v1719, %v1732
      %v1741 = vld [vmem:[%s1 + $0x15] sm:$0x1]
      %v1742 = vlaneseq
      %v1743 = vshrl.u32 %v1742, 7
      %v1744 = vsub.s32 0, %v1743
      %v1745 = vrot.slane %v1741, %v1744
      %v1746 = vmul.f32 %v1667, %v1745
      %v1747 = vmul.f32 %v1668, %v1745
      %v1748 = vmul.f32 %v1669, %v1745
      %v1749 = vmul.f32 %v1670, %v1745
      %v1750 = vmul.f32 %v1671, %v1745
      %v1751 = vmul.f32 %v1672, %v1745
      %v1752 = vmul.f32 %v1673, %v1745
      %v1753 = vmul.f32 %v1674, %v1745
      %v1754 = vadd.f32 %v1733, %v1746
      %v1755 = vadd.f32 %v1734, %v1747
      %v1756 = vadd.f32 %v1735, %v1748
      %v1757 = vadd.f32 %v1736, %v1749
      %v1758 = vadd.f32 %v1737, %v1750
      %v1759 = vadd.f32 %v1738, %v1751
      %v1760 = vadd.f32 %v1739, %v1752
      %v1761 = vadd.f32 %v1740, %v1753
      %v1762 = vld [vmem:[%s1 + $0x1c] sm:$0x1]
      %v1763 = vlaneseq
      %v1764 = vshrl.u32 %v1763, 7
      %v1765 = vsub.s32 0, %v1764
      %v1766 = vrot.slane %v1762, %v1765
      %v1767 = vmul.f32 %v1668, %v1766
      %v1768 = vmul.f32 %v1669, %v1766
      %v1769 = vmul.f32 %v1670, %v1766
      %v1770 = vmul.f32 %v1671, %v1766
      %v1771 = vmul.f32 %v1672, %v1766
      %v1772 = vmul.f32 %v1673, %v1766
      %v1773 = vmul.f32 %v1674, %v1766
      %v1774 = vmul.f32 %v1675, %v1766
      %v1775 = vadd.f32 %v1754, %v1767
      %v1776 = vadd.f32 %v1755, %v1768
      %v1777 = vadd.f32 %v1756, %v1769
      %v1778 = vadd.f32 %v1757, %v1770
      %v1779 = vadd.f32 %v1758, %v1771
      %v1780 = vadd.f32 %v1759, %v1772
      %v1781 = vadd.f32 %v1760, %v1773
      %v1782 = vadd.f32 %v1761, %v1774
      %v1783 = vld [vmem:[%s1 + $0x23] sm:$0x1]
      %v1784 = vlaneseq
      %v1785 = vshrl.u32 %v1784, 7
      %v1786 = vsub.s32 0, %v1785
      %v1787 = vrot.slane %v1783, %v1786
      %v1788 = vmul.f32 %v1669, %v1787
      %v1789 = vmul.f32 %v1670, %v1787
      %v1790 = vmul.f32 %v1671, %v1787
      %v1791 = vmul.f32 %v1672, %v1787
      %v1792 = vmul.f32 %v1673, %v1787
      %v1793 = vmul.f32 %v1674, %v1787
      %v1794 = vmul.f32 %v1675, %v1787
      %v1795 = vmul.f32 %v1676, %v1787
      %v1796 = vadd.f32 %v1775, %v1788
      %v1797 = vadd.f32 %v1776, %v1789
      %v1798 = vadd.f32 %v1777, %v1790
      %v1799 = vadd.f32 %v1778, %v1791
      %v1800 = vadd.f32 %v1779, %v1792
      %v1801 = vadd.f32 %v1780, %v1793
      %v1802 = vadd.f32 %v1781, %v1794
      %v1803 = vadd.f32 %v1782, %v1795
      %v1804 = vld [vmem:[%s1 + $0x2a] sm:$0x1]
      %v1805 = vlaneseq
      %v1806 = vshrl.u32 %v1805, 7
      %v1807 = vsub.s32 0, %v1806
      %v1808 = vrot.slane %v1804, %v1807
      %v1809 = vmul.f32 %v1670, %v1808
      %v1810 = vmul.f32 %v1671, %v1808
      %v1811 = vmul.f32 %v1672, %v1808
      %v1812 = vmul.f32 %v1673, %v1808
      %v1813 = vmul.f32 %v1674, %v1808
      %v1814 = vmul.f32 %v1675, %v1808
      %v1815 = vmul.f32 %v1676, %v1808
      %v1816 = vmul.f32 %v1677, %v1808
      %v1817 = vadd.f32 %v1796, %v1809
      %v1818 = vadd.f32 %v1797, %v1810
      %v1819 = vadd.f32 %v1798, %v1811
      %v1820 = vadd.f32 %v1799, %v1812
      %v1821 = vadd.f32 %v1800, %v1813
      %v1822 = vadd.f32 %v1801, %v1814
      %v1823 = vadd.f32 %v1802, %v1815
      %v1824 = vadd.f32 %v1803, %v1816
      %v1825 = vrot.slane %v1594, 6
      %v1826 = vrot.slane %v1597, 6
      %v1827 = vrot.slane %v1600, 6
      %v1828 = vrot.slane %v1603, 6
      %v1829 = vrot.slane %v1606, 6
      %v1830 = vrot.slane %v1609, 6
      %v1831 = vrot.slane %v1612, 6
      %v1832 = vrot.slane %v1615, 6
      %v1833 = vrot.slane %v1618, 6
      %v1834 = vrot.slane %v1621, 6
      %v1835 = vrot.slane %v1624, 6
      %v1836 = vrot.slane %v1627, 6
      %v1837 = vrot.slane %v1630, 6
      %v1838 = vrot.slane %v1633, 6
      %v1839 = vrot.slane %v1595, 6
      %v1840 = vrot.slane %v1598, 6
      %v1841 = vrot.slane %v1601, 6
      %v1842 = vrot.slane %v1604, 6
      %v1843 = vrot.slane %v1607, 6
      %v1844 = vrot.slane %v1610, 6
      %v1845 = vrot.slane %v1613, 6
      %v1846 = vrot.slane %v1616, 6
      %v1847 = vrot.slane %v1619, 6
      %v1848 = vrot.slane %v1622, 6
      %v1849 = vrot.slane %v1625, 6
      %v1850 = vrot.slane %v1628, 6
      %v1851 = vrot.slane %v1631, 6
      %v1852 = vrot.slane %v1634, 6
      %v1853 = vsel %vm500, %v1825, %v1839
      %v1854 = vsel %vm500, %v1826, %v1840
      %v1855 = vsel %vm500, %v1827, %v1841
      %v1856 = vsel %vm500, %v1828, %v1842
      %v1857 = vsel %vm500, %v1829, %v1843
      %v1858 = vsel %vm500, %v1830, %v1844
      %v1859 = vsel %vm500, %v1831, %v1845
      %v1860 = vsel %vm500, %v1832, %v1846
      %v1861 = vsel %vm500, %v1833, %v1847
      %v1862 = vsel %vm500, %v1834, %v1848
      %v1863 = vsel %vm500, %v1835, %v1849
      %v1864 = vsel %vm500, %v1836, %v1850
      %v1865 = vsel %vm500, %v1837, %v1851
      %v1866 = vsel %vm500, %v1838, %v1852
      %v1867 = vld [vmem:[%s1 + $0x1] sm:$0x1]
      %v1868 = vlaneseq
      %v1869 = vshrl.u32 %v1868, 7
      %v1870 = vsub.s32 0, %v1869
      %v1871 = vrot.slane %v1867, %v1870
      %v1872 = vmul.f32 %v1853, %v1871
      %v1873 = vmul.f32 %v1854, %v1871
      %v1874 = vmul.f32 %v1855, %v1871
      %v1875 = vmul.f32 %v1856, %v1871
      %v1876 = vmul.f32 %v1857, %v1871
      %v1877 = vmul.f32 %v1858, %v1871
      %v1878 = vmul.f32 %v1859, %v1871
      %v1879 = vmul.f32 %v1860, %v1871
      %v1880 = vadd.f32 %v1817, %v1872
      %v1881 = vadd.f32 %v1818, %v1873
      %v1882 = vadd.f32 %v1819, %v1874
      %v1883 = vadd.f32 %v1820, %v1875
      %v1884 = vadd.f32 %v1821, %v1876
      %v1885 = vadd.f32 %v1822, %v1877
      %v1886 = vadd.f32 %v1823, %v1878
      %v1887 = vadd.f32 %v1824, %v1879
      %v1888 = vld [vmem:[%s1 + $0x8] sm:$0x1]
      %v1889 = vlaneseq
      %v1890 = vshrl.u32 %v1889, 7
      %v1891 = vsub.s32 0, %v1890
      %v1892 = vrot.slane %v1888, %v1891
      %v1893 = vmul.f32 %v1854, %v1892
      %v1894 = vmul.f32 %v1855, %v1892
      %v1895 = vmul.f32 %v1856, %v1892
      %v1896 = vmul.f32 %v1857, %v1892
      %v1897 = vmul.f32 %v1858, %v1892
      %v1898 = vmul.f32 %v1859, %v1892
      %v1899 = vmul.f32 %v1860, %v1892
      %v1900 = vmul.f32 %v1861, %v1892
      %v1901 = vadd.f32 %v1880, %v1893
      %v1902 = vadd.f32 %v1881, %v1894
      %v1903 = vadd.f32 %v1882, %v1895
      %v1904 = vadd.f32 %v1883, %v1896
      %v1905 = vadd.f32 %v1884, %v1897
      %v1906 = vadd.f32 %v1885, %v1898
      %v1907 = vadd.f32 %v1886, %v1899
      %v1908 = vadd.f32 %v1887, %v1900
      %v1909 = vld [vmem:[%s1 + $0xf] sm:$0x1]
      %v1910 = vlaneseq
      %v1911 = vshrl.u32 %v1910, 7
      %v1912 = vsub.s32 0, %v1911
      %v1913 = vrot.slane %v1909, %v1912
      %v1914 = vmul.f32 %v1855, %v1913
      %v1915 = vmul.f32 %v1856, %v1913
      %v1916 = vmul.f32 %v1857, %v1913
      %v1917 = vmul.f32 %v1858, %v1913
      %v1918 = vmul.f32 %v1859, %v1913
      %v1919 = vmul.f32 %v1860, %v1913
      %v1920 = vmul.f32 %v1861, %v1913
      %v1921 = vmul.f32 %v1862, %v1913
      %v1922 = vadd.f32 %v1901, %v1914
      %v1923 = vadd.f32 %v1902, %v1915
      %v1924 = vadd.f32 %v1903, %v1916
      %v1925 = vadd.f32 %v1904, %v1917
      %v1926 = vadd.f32 %v1905, %v1918
      %v1927 = vadd.f32 %v1906, %v1919
      %v1928 = vadd.f32 %v1907, %v1920
      %v1929 = vadd.f32 %v1908, %v1921
      %v1930 = vld [vmem:[%s1 + $0x16] sm:$0x1]
      %v1931 = vlaneseq
      %v1932 = vshrl.u32 %v1931, 7
      %v1933 = vsub.s32 0, %v1932
      %v1934 = vrot.slane %v1930, %v1933
      %v1935 = vmul.f32 %v1856, %v1934
      %v1936 = vmul.f32 %v1857, %v1934
      %v1937 = vmul.f32 %v1858, %v1934
      %v1938 = vmul.f32 %v1859, %v1934
      %v1939 = vmul.f32 %v1860, %v1934
      %v1940 = vmul.f32 %v1861, %v1934
      %v1941 = vmul.f32 %v1862, %v1934
      %v1942 = vmul.f32 %v1863, %v1934
      %v1943 = vadd.f32 %v1922, %v1935
      %v1944 = vadd.f32 %v1923, %v1936
      %v1945 = vadd.f32 %v1924, %v1937
      %v1946 = vadd.f32 %v1925, %v1938
      %v1947 = vadd.f32 %v1926, %v1939
      %v1948 = vadd.f32 %v1927, %v1940
      %v1949 = vadd.f32 %v1928, %v1941
      %v1950 = vadd.f32 %v1929, %v1942
      %v1951 = vld [vmem:[%s1 + $0x1d] sm:$0x1]
      %v1952 = vlaneseq
      %v1953 = vshrl.u32 %v1952, 7
      %v1954 = vsub.s32 0, %v1953
      %v1955 = vrot.slane %v1951, %v1954
      %v1956 = vmul.f32 %v1857, %v1955
      %v1957 = vmul.f32 %v1858, %v1955
      %v1958 = vmul.f32 %v1859, %v1955
      %v1959 = vmul.f32 %v1860, %v1955
      %v1960 = vmul.f32 %v1861, %v1955
      %v1961 = vmul.f32 %v1862, %v1955
      %v1962 = vmul.f32 %v1863, %v1955
      %v1963 = vmul.f32 %v1864, %v1955
      %v1964 = vadd.f32 %v1943, %v1956
      %v1965 = vadd.f32 %v1944, %v1957
      %v1966 = vadd.f32 %v1945, %v1958
      %v1967 = vadd.f32 %v1946, %v1959
      %v1968 = vadd.f32 %v1947, %v1960
      %v1969 = vadd.f32 %v1948, %v1961
      %v1970 = vadd.f32 %v1949, %v1962
      %v1971 = vadd.f32 %v1950, %v1963
      %v1972 = vld [vmem:[%s1 + $0x24] sm:$0x1]
      %v1973 = vlaneseq
      %v1974 = vshrl.u32 %v1973, 7
      %v1975 = vsub.s32 0, %v1974
      %v1976 = vrot.slane %v1972, %v1975
      %v1977 = vmul.f32 %v1858, %v1976
      %v1978 = vmul.f32 %v1859, %v1976
      %v1979 = vmul.f32 %v1860, %v1976
      %v1980 = vmul.f32 %v1861, %v1976
      %v1981 = vmul.f32 %v1862, %v1976
      %v1982 = vmul.f32 %v1863, %v1976
      %v1983 = vmul.f32 %v1864, %v1976
      %v1984 = vmul.f32 %v1865, %v1976
      %v1985 = vadd.f32 %v1964, %v1977
      %v1986 = vadd.f32 %v1965, %v1978
      %v1987 = vadd.f32 %v1966, %v1979
      %v1988 = vadd.f32 %v1967, %v1980
      %v1989 = vadd.f32 %v1968, %v1981
      %v1990 = vadd.f32 %v1969, %v1982
      %v1991 = vadd.f32 %v1970, %v1983
      %v1992 = vadd.f32 %v1971, %v1984
      %v1993 = vld [vmem:[%s1 + $0x2b] sm:$0x1]
      %v1994 = vlaneseq
      %v1995 = vshrl.u32 %v1994, 7
      %v1996 = vsub.s32 0, %v1995
      %v1997 = vrot.slane %v1993, %v1996
      %v1998 = vmul.f32 %v1859, %v1997
      %v1999 = vmul.f32 %v1860, %v1997
      %v2000 = vmul.f32 %v1861, %v1997
      %v2001 = vmul.f32 %v1862, %v1997
      %v2002 = vmul.f32 %v1863, %v1997
      %v2003 = vmul.f32 %v1864, %v1997
      %v2004 = vmul.f32 %v1865, %v1997
      %v2005 = vmul.f32 %v1866, %v1997
      %v2006 = vadd.f32 %v1985, %v1998
      %v2007 = vadd.f32 %v1986, %v1999
      %v2008 = vadd.f32 %v1987, %v2000
      %v2009 = vadd.f32 %v1988, %v2001
      %v2010 = vadd.f32 %v1989, %v2002
      %v2011 = vadd.f32 %v1990, %v2003
      %v2012 = vadd.f32 %v1991, %v2004
      %v2013 = vadd.f32 %v1992, %v2005
      %v2014 = vrot.slane %v1594, 7
      %v2015 = vrot.slane %v1597, 7
      %v2016 = vrot.slane %v1600, 7
      %v2017 = vrot.slane %v1603, 7
      %v2018 = vrot.slane %v1606, 7
      %v2019 = vrot.slane %v1609, 7
      %v2020 = vrot.slane %v1612, 7
      %v2021 = vrot.slane %v1615, 7
      %v2022 = vrot.slane %v1618, 7
      %v2023 = vrot.slane %v1621, 7
      %v2024 = vrot.slane %v1624, 7
      %v2025 = vrot.slane %v1627, 7
      %v2026 = vrot.slane %v1630, 7
      %v2027 = vrot.slane %v1633, 7
      %v2028 = vrot.slane %v1595, 7
      %v2029 = vrot.slane %v1598, 7
      %v2030 = vrot.slane %v1601, 7
      %v2031 = vrot.slane %v1604, 7
      %v2032 = vrot.slane %v1607, 7
      %v2033 = vrot.slane %v1610, 7
      %v2034 = vrot.slane %v1613, 7
      %v2035 = vrot.slane %v1616, 7
      %v2036 = vrot.slane %v1619, 7
      %v2037 = vrot.slane %v1622, 7
      %v2038 = vrot.slane %v1625, 7
      %v2039 = vrot.slane %v1628, 7
      %v2040 = vrot.slane %v1631, 7
      %v2041 = vrot.slane %v1634, 7
      %v2042 = vsel %vm690, %v2014, %v2028
      %v2043 = vsel %vm690, %v2015, %v2029
      %v2044 = vsel %vm690, %v2016, %v2030
      %v2045 = vsel %vm690, %v2017, %v2031
      %v2046 = vsel %vm690, %v2018, %v2032
      %v2047 = vsel %vm690, %v2019, %v2033
      %v2048 = vsel %vm690, %v2020, %v2034
      %v2049 = vsel %vm690, %v2021, %v2035
      %v2050 = vsel %vm690, %v2022, %v2036
      %v2051 = vsel %vm690, %v2023, %v2037
      %v2052 = vsel %vm690, %v2024, %v2038
      %v2053 = vsel %vm690, %v2025, %v2039
      %v2054 = vsel %vm690, %v2026, %v2040
      %v2055 = vsel %vm690, %v2027, %v2041
      %v2056 = vld [vmem:[%s1 + $0x2] sm:$0x1]
      %v2057 = vlaneseq
      %v2058 = vshrl.u32 %v2057, 7
      %v2059 = vsub.s32 0, %v2058
      %v2060 = vrot.slane %v2056, %v2059
      %v2061 = vmul.f32 %v2042, %v2060
      %v2062 = vmul.f32 %v2043, %v2060
      %v2063 = vmul.f32 %v2044, %v2060
      %v2064 = vmul.f32 %v2045, %v2060
      %v2065 = vmul.f32 %v2046, %v2060
      %v2066 = vmul.f32 %v2047, %v2060
      %v2067 = vmul.f32 %v2048, %v2060
      %v2068 = vmul.f32 %v2049, %v2060
      %v2069 = vadd.f32 %v2006, %v2061
      %v2070 = vadd.f32 %v2007, %v2062
      %v2071 = vadd.f32 %v2008, %v2063
      %v2072 = vadd.f32 %v2009, %v2064
      %v2073 = vadd.f32 %v2010, %v2065
      %v2074 = vadd.f32 %v2011, %v2066
      %v2075 = vadd.f32 %v2012, %v2067
      %v2076 = vadd.f32 %v2013, %v2068
      %v2077 = vld [vmem:[%s1 + $0x9] sm:$0x1]
      %v2078 = vlaneseq
      %v2079 = vshrl.u32 %v2078, 7
      %v2080 = vsub.s32 0, %v2079
      %v2081 = vrot.slane %v2077, %v2080
      %v2082 = vmul.f32 %v2043, %v2081
      %v2083 = vmul.f32 %v2044, %v2081
      %v2084 = vmul.f32 %v2045, %v2081
      %v2085 = vmul.f32 %v2046, %v2081
      %v2086 = vmul.f32 %v2047, %v2081
      %v2087 = vmul.f32 %v2048, %v2081
      %v2088 = vmul.f32 %v2049, %v2081
      %v2089 = vmul.f32 %v2050, %v2081
      %v2090 = vadd.f32 %v2069, %v2082
      %v2091 = vadd.f32 %v2070, %v2083
      %v2092 = vadd.f32 %v2071, %v2084
      %v2093 = vadd.f32 %v2072, %v2085
      %v2094 = vadd.f32 %v2073, %v2086
      %v2095 = vadd.f32 %v2074, %v2087
      %v2096 = vadd.f32 %v2075, %v2088
      %v2097 = vadd.f32 %v2076, %v2089
      %v2098 = vld [vmem:[%s1 + $0x10] sm:$0x1]
      %v2099 = vlaneseq
      %v2100 = vshrl.u32 %v2099, 7
      %v2101 = vsub.s32 0, %v2100
      %v2102 = vrot.slane %v2098, %v2101
      %v2103 = vmul.f32 %v2044, %v2102
      %v2104 = vmul.f32 %v2045, %v2102
      %v2105 = vmul.f32 %v2046, %v2102
      %v2106 = vmul.f32 %v2047, %v2102
      %v2107 = vmul.f32 %v2048, %v2102
      %v2108 = vmul.f32 %v2049, %v2102
      %v2109 = vmul.f32 %v2050, %v2102
      %v2110 = vmul.f32 %v2051, %v2102
      %v2111 = vadd.f32 %v2090, %v2103
      %v2112 = vadd.f32 %v2091, %v2104
      %v2113 = vadd.f32 %v2092, %v2105
      %v2114 = vadd.f32 %v2093, %v2106
      %v2115 = vadd.f32 %v2094, %v2107
      %v2116 = vadd.f32 %v2095, %v2108
      %v2117 = vadd.f32 %v2096, %v2109
      %v2118 = vadd.f32 %v2097, %v2110
      %v2119 = vld [vmem:[%s1 + $0x17] sm:$0x1]
      %v2120 = vlaneseq
      %v2121 = vshrl.u32 %v2120, 7
      %v2122 = vsub.s32 0, %v2121
      %v2123 = vrot.slane %v2119, %v2122
      %v2124 = vmul.f32 %v2045, %v2123
      %v2125 = vmul.f32 %v2046, %v2123
      %v2126 = vmul.f32 %v2047, %v2123
      %v2127 = vmul.f32 %v2048, %v2123
      %v2128 = vmul.f32 %v2049, %v2123
      %v2129 = vmul.f32 %v2050, %v2123
      %v2130 = vmul.f32 %v2051, %v2123
      %v2131 = vmul.f32 %v2052, %v2123
      %v2132 = vadd.f32 %v2111, %v2124
      %v2133 = vadd.f32 %v2112, %v2125
      %v2134 = vadd.f32 %v2113, %v2126
      %v2135 = vadd.f32 %v2114, %v2127
      %v2136 = vadd.f32 %v2115, %v2128
      %v2137 = vadd.f32 %v2116, %v2129
      %v2138 = vadd.f32 %v2117, %v2130
      %v2139 = vadd.f32 %v2118, %v2131
      %v2140 = vld [vmem:[%s1 + $0x1e] sm:$0x1]
      %v2141 = vlaneseq
      %v2142 = vshrl.u32 %v2141, 7
      %v2143 = vsub.s32 0, %v2142
      %v2144 = vrot.slane %v2140, %v2143
      %v2145 = vmul.f32 %v2046, %v2144
      %v2146 = vmul.f32 %v2047, %v2144
      %v2147 = vmul.f32 %v2048, %v2144
      %v2148 = vmul.f32 %v2049, %v2144
      %v2149 = vmul.f32 %v2050, %v2144
      %v2150 = vmul.f32 %v2051, %v2144
      %v2151 = vmul.f32 %v2052, %v2144
      %v2152 = vmul.f32 %v2053, %v2144
      %v2153 = vadd.f32 %v2132, %v2145
      %v2154 = vadd.f32 %v2133, %v2146
      %v2155 = vadd.f32 %v2134, %v2147
      %v2156 = vadd.f32 %v2135, %v2148
      %v2157 = vadd.f32 %v2136, %v2149
      %v2158 = vadd.f32 %v2137, %v2150
      %v2159 = vadd.f32 %v2138, %v2151
      %v2160 = vadd.f32 %v2139, %v2152
      %v2161 = vld [vmem:[%s1 + $0x25] sm:$0x1]
      %v2162 = vlaneseq
      %v2163 = vshrl.u32 %v2162, 7
      %v2164 = vsub.s32 0, %v2163
      %v2165 = vrot.slane %v2161, %v2164
      %v2166 = vmul.f32 %v2047, %v2165
      %v2167 = vmul.f32 %v2048, %v2165
      %v2168 = vmul.f32 %v2049, %v2165
      %v2169 = vmul.f32 %v2050, %v2165
      %v2170 = vmul.f32 %v2051, %v2165
      %v2171 = vmul.f32 %v2052, %v2165
      %v2172 = vmul.f32 %v2053, %v2165
      %v2173 = vmul.f32 %v2054, %v2165
      %v2174 = vadd.f32 %v2153, %v2166
      %v2175 = vadd.f32 %v2154, %v2167
      %v2176 = vadd.f32 %v2155, %v2168
      %v2177 = vadd.f32 %v2156, %v2169
      %v2178 = vadd.f32 %v2157, %v2170
      %v2179 = vadd.f32 %v2158, %v2171
      %v2180 = vadd.f32 %v2159, %v2172
      %v2181 = vadd.f32 %v2160, %v2173
      %v2182 = vld [vmem:[%s1 + $0x2c] sm:$0x1]
      %v2183 = vlaneseq
      %v2184 = vshrl.u32 %v2183, 7
      %v2185 = vsub.s32 0, %v2184
      %v2186 = vrot.slane %v2182, %v2185
      %v2187 = vmul.f32 %v2048, %v2186
      %v2188 = vmul.f32 %v2049, %v2186
      %v2189 = vmul.f32 %v2050, %v2186
      %v2190 = vmul.f32 %v2051, %v2186
      %v2191 = vmul.f32 %v2052, %v2186
      %v2192 = vmul.f32 %v2053, %v2186
      %v2193 = vmul.f32 %v2054, %v2186
      %v2194 = vmul.f32 %v2055, %v2186
      %v2195 = vadd.f32 %v2174, %v2187
      %v2196 = vadd.f32 %v2175, %v2188
      %v2197 = vadd.f32 %v2176, %v2189
      %v2198 = vadd.f32 %v2177, %v2190
      %v2199 = vadd.f32 %v2178, %v2191
      %v2200 = vadd.f32 %v2179, %v2192
      %v2201 = vadd.f32 %v2180, %v2193
      %v2202 = vadd.f32 %v2181, %v2194
      %v2203 = vld [vmem:[%s1 + $0x3] sm:$0x1]
      %v2204 = vlaneseq
      %v2205 = vshrl.u32 %v2204, 7
      %v2206 = vsub.s32 0, %v2205
      %v2207 = vrot.slane %v2203, %v2206
      %v2208 = vmul.f32 %v1595, %v2207
      %v2209 = vmul.f32 %v1598, %v2207
      %v2210 = vmul.f32 %v1601, %v2207
      %v2211 = vmul.f32 %v1604, %v2207
      %v2212 = vmul.f32 %v1607, %v2207
      %v2213 = vmul.f32 %v1610, %v2207
      %v2214 = vmul.f32 %v1613, %v2207
      %v2215 = vmul.f32 %v1616, %v2207
      %v2216 = vadd.f32 %v2195, %v2208
      %v2217 = vadd.f32 %v2196, %v2209
      %v2218 = vadd.f32 %v2197, %v2210
      %v2219 = vadd.f32 %v2198, %v2211
      %v2220 = vadd.f32 %v2199, %v2212
      %v2221 = vadd.f32 %v2200, %v2213
      %v2222 = vadd.f32 %v2201, %v2214
      %v2223 = vadd.f32 %v2202, %v2215
      %v2224 = vld [vmem:[%s1 + $0xa] sm:$0x1]
      %v2225 = vlaneseq
      %v2226 = vshrl.u32 %v2225, 7
      %v2227 = vsub.s32 0, %v2226
      %v2228 = vrot.slane %v2224, %v2227
      %v2229 = vmul.f32 %v1598, %v2228
      %v2230 = vmul.f32 %v1601, %v2228
      %v2231 = vmul.f32 %v1604, %v2228
      %v2232 = vmul.f32 %v1607, %v2228
      %v2233 = vmul.f32 %v1610, %v2228
      %v2234 = vmul.f32 %v1613, %v2228
      %v2235 = vmul.f32 %v1616, %v2228
      %v2236 = vmul.f32 %v1619, %v2228
      %v2237 = vadd.f32 %v2216, %v2229
      %v2238 = vadd.f32 %v2217, %v2230
      %v2239 = vadd.f32 %v2218, %v2231
      %v2240 = vadd.f32 %v2219, %v2232
      %v2241 = vadd.f32 %v2220, %v2233
      %v2242 = vadd.f32 %v2221, %v2234
      %v2243 = vadd.f32 %v2222, %v2235
      %v2244 = vadd.f32 %v2223, %v2236
      %v2245 = vld [vmem:[%s1 + $0x11] sm:$0x1]
      %v2246 = vlaneseq
      %v2247 = vshrl.u32 %v2246, 7
      %v2248 = vsub.s32 0, %v2247
      %v2249 = vrot.slane %v2245, %v2248
      %v2250 = vmul.f32 %v1601, %v2249
      %v2251 = vmul.f32 %v1604, %v2249
      %v2252 = vmul.f32 %v1607, %v2249
      %v2253 = vmul.f32 %v1610, %v2249
      %v2254 = vmul.f32 %v1613, %v2249
      %v2255 = vmul.f32 %v1616, %v2249
      %v2256 = vmul.f32 %v1619, %v2249
      %v2257 = vmul.f32 %v1622, %v2249
      %v2258 = vadd.f32 %v2237, %v2250
      %v2259 = vadd.f32 %v2238, %v2251
      %v2260 = vadd.f32 %v2239, %v2252
      %v2261 = vadd.f32 %v2240, %v2253
      %v2262 = vadd.f32 %v2241, %v2254
      %v2263 = vadd.f32 %v2242, %v2255
      %v2264 = vadd.f32 %v2243, %v2256
      %v2265 = vadd.f32 %v2244, %v2257
      %v2266 = vld [vmem:[%s1 + $0x18] sm:$0x1]
      %v2267 = vlaneseq
      %v2268 = vshrl.u32 %v2267, 7
      %v2269 = vsub.s32 0, %v2268
      %v2270 = vrot.slane %v2266, %v2269
      %v2271 = vmul.f32 %v1604, %v2270
      %v2272 = vmul.f32 %v1607, %v2270
      %v2273 = vmul.f32 %v1610, %v2270
      %v2274 = vmul.f32 %v1613, %v2270
      %v2275 = vmul.f32 %v1616, %v2270
      %v2276 = vmul.f32 %v1619, %v2270
      %v2277 = vmul.f32 %v1622, %v2270
      %v2278 = vmul.f32 %v1625, %v2270
      %v2279 = vadd.f32 %v2258, %v2271
      %v2280 = vadd.f32 %v2259, %v2272
      %v2281 = vadd.f32 %v2260, %v2273
      %v2282 = vadd.f32 %v2261, %v2274
      %v2283 = vadd.f32 %v2262, %v2275
      %v2284 = vadd.f32 %v2263, %v2276
      %v2285 = vadd.f32 %v2264, %v2277
      %v2286 = vadd.f32 %v2265, %v2278
      %v2287 = vld [vmem:[%s1 + $0x1f] sm:$0x1]
      %v2288 = vlaneseq
      %v2289 = vshrl.u32 %v2288, 7
      %v2290 = vsub.s32 0, %v2289
      %v2291 = vrot.slane %v2287, %v2290
      %v2292 = vmul.f32 %v1607, %v2291
      %v2293 = vmul.f32 %v1610, %v2291
      %v2294 = vmul.f32 %v1613, %v2291
      %v2295 = vmul.f32 %v1616, %v2291
      %v2296 = vmul.f32 %v1619, %v2291
      %v2297 = vmul.f32 %v1622, %v2291
      %v2298 = vmul.f32 %v1625, %v2291
      %v2299 = vmul.f32 %v1628, %v2291
      %v2300 = vadd.f32 %v2279, %v2292
      %v2301 = vadd.f32 %v2280, %v2293
      %v2302 = vadd.f32 %v2281, %v2294
      %v2303 = vadd.f32 %v2282, %v2295
      %v2304 = vadd.f32 %v2283, %v2296
      %v2305 = vadd.f32 %v2284, %v2297
      %v2306 = vadd.f32 %v2285, %v2298
      %v2307 = vadd.f32 %v2286, %v2299
      %v2308 = vld [vmem:[%s1 + $0x26] sm:$0x1]
      %v2309 = vlaneseq
      %v2310 = vshrl.u32 %v2309, 7
      %v2311 = vsub.s32 0, %v2310
      %v2312 = vrot.slane %v2308, %v2311
      %v2313 = vmul.f32 %v1610, %v2312
      %v2314 = vmul.f32 %v1613, %v2312
      %v2315 = vmul.f32 %v1616, %v2312
      %v2316 = vmul.f32 %v1619, %v2312
      %v2317 = vmul.f32 %v1622, %v2312
      %v2318 = vmul.f32 %v1625, %v2312
      %v2319 = vmul.f32 %v1628, %v2312
      %v2320 = vmul.f32 %v1631, %v2312
      %v2321 = vadd.f32 %v2300, %v2313
      %v2322 = vadd.f32 %v2301, %v2314
      %v2323 = vadd.f32 %v2302, %v2315
      %v2324 = vadd.f32 %v2303, %v2316
      %v2325 = vadd.f32 %v2304, %v2317
      %v2326 = vadd.f32 %v2305, %v2318
      %v2327 = vadd.f32 %v2306, %v2319
      %v2328 = vadd.f32 %v2307, %v2320
      %v2329 = vld [vmem:[%s1 + $0x2d] sm:$0x1]
      %v2330 = vlaneseq
      %v2331 = vshrl.u32 %v2330, 7
      %v2332 = vsub.s32 0, %v2331
      %v2333 = vrot.slane %v2329, %v2332
      %v2334 = vmul.f32 %v1613, %v2333
      %v2335 = vmul.f32 %v1616, %v2333
      %v2336 = vmul.f32 %v1619, %v2333
      %v2337 = vmul.f32 %v1622, %v2333
      %v2338 = vmul.f32 %v1625, %v2333
      %v2339 = vmul.f32 %v1628, %v2333
      %v2340 = vmul.f32 %v1631, %v2333
      %v2341 = vmul.f32 %v1634, %v2333
      %v2342 = vadd.f32 %v2321, %v2334
      %v2343 = vadd.f32 %v2322, %v2335
      %v2344 = vadd.f32 %v2323, %v2336
      %v2345 = vadd.f32 %v2324, %v2337
      %v2346 = vadd.f32 %v2325, %v2338
      %v2347 = vadd.f32 %v2326, %v2339
      %v2348 = vadd.f32 %v2327, %v2340
      %v2349 = vadd.f32 %v2328, %v2341
      %v2350 = vrot.slane %v1595, 1
      %v2351 = vrot.slane %v1598, 1
      %v2352 = vrot.slane %v1601, 1
      %v2353 = vrot.slane %v1604, 1
      %v2354 = vrot.slane %v1607, 1
      %v2355 = vrot.slane %v1610, 1
      %v2356 = vrot.slane %v1613, 1
      %v2357 = vrot.slane %v1616, 1
      %v2358 = vrot.slane %v1619, 1
      %v2359 = vrot.slane %v1622, 1
      %v2360 = vrot.slane %v1625, 1
      %v2361 = vrot.slane %v1628, 1
      %v2362 = vrot.slane %v1631, 1
      %v2363 = vrot.slane %v1634, 1
      %v2364 = vrot.slane %v1596, 1
      %v2365 = vrot.slane %v1599, 1
      %v2366 = vrot.slane %v1602, 1
      %v2367 = vrot.slane %v1605, 1
      %v2368 = vrot.slane %v1608, 1
      %v2369 = vrot.slane %v1611, 1
      %v2370 = vrot.slane %v1614, 1
      %v2371 = vrot.slane %v1617, 1
      %v2372 = vrot.slane %v1620, 1
      %v2373 = vrot.slane %v1623, 1
      %v2374 = vrot.slane %v1626, 1
      %v2375 = vrot.slane %v1629, 1
      %v2376 = vrot.slane %v1632, 1
      %v2377 = vrot.slane %v1635, 1
      %v2378 = vsel %vm1027, %v2350, %v2364
      %v2379 = vsel %vm1027, %v2351, %v2365
      %v2380 = vsel %vm1027, %v2352, %v2366
      %v2381 = vsel %vm1027, %v2353, %v2367
      %v2382 = vsel %vm1027, %v2354, %v2368
      %v2383 = vsel %vm1027, %v2355, %v2369
      %v2384 = vsel %vm1027, %v2356, %v2370
      %v2385 = vsel %vm1027, %v2357, %v2371
      %v2386 = vsel %vm1027, %v2358, %v2372
      %v2387 = vsel %vm1027, %v2359, %v2373
      %v2388 = vsel %vm1027, %v2360, %v2374
      %v2389 = vsel %vm1027, %v2361, %v2375
      %v2390 = vsel %vm1027, %v2362, %v2376
      %v2391 = vsel %vm1027, %v2363, %v2377
      %v2392 = vld [vmem:[%s1 + $0x4] sm:$0x1]
      %v2393 = vlaneseq
      %v2394 = vshrl.u32 %v2393, 7
      %v2395 = vsub.s32 0, %v2394
      %v2396 = vrot.slane %v2392, %v2395
      %v2397 = vmul.f32 %v2378, %v2396
      %v2398 = vmul.f32 %v2379, %v2396
      %v2399 = vmul.f32 %v2380, %v2396
      %v2400 = vmul.f32 %v2381, %v2396
      %v2401 = vmul.f32 %v2382, %v2396
      %v2402 = vmul.f32 %v2383, %v2396
      %v2403 = vmul.f32 %v2384, %v2396
      %v2404 = vmul.f32 %v2385, %v2396
      %v2405 = vadd.f32 %v2342, %v2397
      %v2406 = vadd.f32 %v2343, %v2398
      %v2407 = vadd.f32 %v2344, %v2399
      %v2408 = vadd.f32 %v2345, %v2400
      %v2409 = vadd.f32 %v2346, %v2401
      %v2410 = vadd.f32 %v2347, %v2402
      %v2411 = vadd.f32 %v2348, %v2403
      %v2412 = vadd.f32 %v2349, %v2404
      %v2413 = vld [vmem:[%s1 + $0xb] sm:$0x1]
      %v2414 = vlaneseq
      %v2415 = vshrl.u32 %v2414, 7
      %v2416 = vsub.s32 0, %v2415
      %v2417 = vrot.slane %v2413, %v2416
      %v2418 = vmul.f32 %v2379, %v2417
      %v2419 = vmul.f32 %v2380, %v2417
      %v2420 = vmul.f32 %v2381, %v2417
      %v2421 = vmul.f32 %v2382, %v2417
      %v2422 = vmul.f32 %v2383, %v2417
      %v2423 = vmul.f32 %v2384, %v2417
      %v2424 = vmul.f32 %v2385, %v2417
      %v2425 = vmul.f32 %v2386, %v2417
      %v2426 = vadd.f32 %v2405, %v2418
      %v2427 = vadd.f32 %v2406, %v2419
      %v2428 = vadd.f32 %v2407, %v2420
      %v2429 = vadd.f32 %v2408, %v2421
      %v2430 = vadd.f32 %v2409, %v2422
      %v2431 = vadd.f32 %v2410, %v2423
      %v2432 = vadd.f32 %v2411, %v2424
      %v2433 = vadd.f32 %v2412, %v2425
      %v2434 = vld [vmem:[%s1 + $0x12] sm:$0x1]
      %v2435 = vlaneseq
      %v2436 = vshrl.u32 %v2435, 7
      %v2437 = vsub.s32 0, %v2436
      %v2438 = vrot.slane %v2434, %v2437
      %v2439 = vmul.f32 %v2380, %v2438
      %v2440 = vmul.f32 %v2381, %v2438
      %v2441 = vmul.f32 %v2382, %v2438
      %v2442 = vmul.f32 %v2383, %v2438
      %v2443 = vmul.f32 %v2384, %v2438
      %v2444 = vmul.f32 %v2385, %v2438
      %v2445 = vmul.f32 %v2386, %v2438
      %v2446 = vmul.f32 %v2387, %v2438
      %v2447 = vadd.f32 %v2426, %v2439
      %v2448 = vadd.f32 %v2427, %v2440
      %v2449 = vadd.f32 %v2428, %v2441
      %v2450 = vadd.f32 %v2429, %v2442
      %v2451 = vadd.f32 %v2430, %v2443
      %v2452 = vadd.f32 %v2431, %v2444
      %v2453 = vadd.f32 %v2432, %v2445
      %v2454 = vadd.f32 %v2433, %v2446
      %v2455 = vld [vmem:[%s1 + $0x19] sm:$0x1]
      %v2456 = vlaneseq
      %v2457 = vshrl.u32 %v2456, 7
      %v2458 = vsub.s32 0, %v2457
      %v2459 = vrot.slane %v2455, %v2458
      %v2460 = vmul.f32 %v2381, %v2459
      %v2461 = vmul.f32 %v2382, %v2459
      %v2462 = vmul.f32 %v2383, %v2459
      %v2463 = vmul.f32 %v2384, %v2459
      %v2464 = vmul.f32 %v2385, %v2459
      %v2465 = vmul.f32 %v2386, %v2459
      %v2466 = vmul.f32 %v2387, %v2459
      %v2467 = vmul.f32 %v2388, %v2459
      %v2468 = vadd.f32 %v2447, %v2460
      %v2469 = vadd.f32 %v2448, %v2461
      %v2470 = vadd.f32 %v2449, %v2462
      %v2471 = vadd.f32 %v2450, %v2463
      %v2472 = vadd.f32 %v2451, %v2464
      %v2473 = vadd.f32 %v2452, %v2465
      %v2474 = vadd.f32 %v2453, %v2466
      %v2475 = vadd.f32 %v2454, %v2467
      %v2476 = vld [vmem:[%s1 + $0x20] sm:$0x1]
      %v2477 = vlaneseq
      %v2478 = vshrl.u32 %v2477, 7
      %v2479 = vsub.s32 0, %v2478
      %v2480 = vrot.slane %v2476, %v2479
      %v2481 = vmul.f32 %v2382, %v2480
      %v2482 = vmul.f32 %v2383, %v2480
      %v2483 = vmul.f32 %v2384, %v2480
      %v2484 = vmul.f32 %v2385, %v2480
      %v2485 = vmul.f32 %v2386, %v2480
      %v2486 = vmul.f32 %v2387, %v2480
      %v2487 = vmul.f32 %v2388, %v2480
      %v2488 = vmul.f32 %v2389, %v2480
      %v2489 = vadd.f32 %v2468, %v2481
      %v2490 = vadd.f32 %v2469, %v2482
      %v2491 = vadd.f32 %v2470, %v2483
      %v2492 = vadd.f32 %v2471, %v2484
      %v2493 = vadd.f32 %v2472, %v2485
      %v2494 = vadd.f32 %v2473, %v2486
      %v2495 = vadd.f32 %v2474, %v2487
      %v2496 = vadd.f32 %v2475, %v2488
      %v2497 = vld [vmem:[%s1 + $0x27] sm:$0x1]
      %v2498 = vlaneseq
      %v2499 = vshrl.u32 %v2498, 7
      %v2500 = vsub.s32 0, %v2499
      %v2501 = vrot.slane %v2497, %v2500
      %v2502 = vmul.f32 %v2383, %v2501
      %v2503 = vmul.f32 %v2384, %v2501
      %v2504 = vmul.f32 %v2385, %v2501
      %v2505 = vmul.f32 %v2386, %v2501
      %v2506 = vmul.f32 %v2387, %v2501
      %v2507 = vmul.f32 %v2388, %v2501
      %v2508 = vmul.f32 %v2389, %v2501
      %v2509 = vmul.f32 %v2390, %v2501
      %v2510 = vadd.f32 %v2489, %v2502
      %v2511 = vadd.f32 %v2490, %v2503
      %v2512 = vadd.f32 %v2491, %v2504
      %v2513 = vadd.f32 %v2492, %v2505
      %v2514 = vadd.f32 %v2493, %v2506
      %v2515 = vadd.f32 %v2494, %v2507
      %v2516 = vadd.f32 %v2495, %v2508
      %v2517 = vadd.f32 %v2496, %v2509
      %v2518 = vld [vmem:[%s1 + $0x2e] sm:$0x1]
      %v2519 = vlaneseq
      %v2520 = vshrl.u32 %v2519, 7
      %v2521 = vsub.s32 0, %v2520
      %v2522 = vrot.slane %v2518, %v2521
      %v2523 = vmul.f32 %v2384, %v2522
      %v2524 = vmul.f32 %v2385, %v2522
      %v2525 = vmul.f32 %v2386, %v2522
      %v2526 = vmul.f32 %v2387, %v2522
      %v2527 = vmul.f32 %v2388, %v2522
      %v2528 = vmul.f32 %v2389, %v2522
      %v2529 = vmul.f32 %v2390, %v2522
      %v2530 = vmul.f32 %v2391, %v2522
      %v2531 = vadd.f32 %v2510, %v2523
      %v2532 = vadd.f32 %v2511, %v2524
      %v2533 = vadd.f32 %v2512, %v2525
      %v2534 = vadd.f32 %v2513, %v2526
      %v2535 = vadd.f32 %v2514, %v2527
      %v2536 = vadd.f32 %v2515, %v2528
      %v2537 = vadd.f32 %v2516, %v2529
      %v2538 = vadd.f32 %v2517, %v2530
      %v2539 = vrot.slane %v1595, 2
      %v2540 = vrot.slane %v1598, 2
      %v2541 = vrot.slane %v1601, 2
      %v2542 = vrot.slane %v1604, 2
      %v2543 = vrot.slane %v1607, 2
      %v2544 = vrot.slane %v1610, 2
      %v2545 = vrot.slane %v1613, 2
      %v2546 = vrot.slane %v1616, 2
      %v2547 = vrot.slane %v1619, 2
      %v2548 = vrot.slane %v1622, 2
      %v2549 = vrot.slane %v1625, 2
      %v2550 = vrot.slane %v1628, 2
      %v2551 = vrot.slane %v1631, 2
      %v2552 = vrot.slane %v1634, 2
      %v2553 = vrot.slane %v1596, 2
      %v2554 = vrot.slane %v1599, 2
      %v2555 = vrot.slane %v1602, 2
      %v2556 = vrot.slane %v1605, 2
      %v2557 = vrot.slane %v1608, 2
      %v2558 = vrot.slane %v1611, 2
      %v2559 = vrot.slane %v1614, 2
      %v2560 = vrot.slane %v1617, 2
      %v2561 = vrot.slane %v1620, 2
      %v2562 = vrot.slane %v1623, 2
      %v2563 = vrot.slane %v1626, 2
      %v2564 = vrot.slane %v1629, 2
      %v2565 = vrot.slane %v1632, 2
      %v2566 = vrot.slane %v1635, 2
      %v2567 = vsel %vm1217, %v2539, %v2553
      %v2568 = vsel %vm1217, %v2540, %v2554
      %v2569 = vsel %vm1217, %v2541, %v2555
      %v2570 = vsel %vm1217, %v2542, %v2556
      %v2571 = vsel %vm1217, %v2543, %v2557
      %v2572 = vsel %vm1217, %v2544, %v2558
      %v2573 = vsel %vm1217, %v2545, %v2559
      %v2574 = vsel %vm1217, %v2546, %v2560
      %v2575 = vsel %vm1217, %v2547, %v2561
      %v2576 = vsel %vm1217, %v2548, %v2562
      %v2577 = vsel %vm1217, %v2549, %v2563
      %v2578 = vsel %vm1217, %v2550, %v2564
      %v2579 = vsel %vm1217, %v2551, %v2565
      %v2580 = vsel %vm1217, %v2552, %v2566
      %v2581 = vld [vmem:[%s1 + $0x5] sm:$0x1]
      %v2582 = vlaneseq
      %v2583 = vshrl.u32 %v2582, 7
      %v2584 = vsub.s32 0, %v2583
      %v2585 = vrot.slane %v2581, %v2584
      %v2586 = vmul.f32 %v2567, %v2585
      %v2587 = vmul.f32 %v2568, %v2585
      %v2588 = vmul.f32 %v2569, %v2585
      %v2589 = vmul.f32 %v2570, %v2585
      %v2590 = vmul.f32 %v2571, %v2585
      %v2591 = vmul.f32 %v2572, %v2585
      %v2592 = vmul.f32 %v2573, %v2585
      %v2593 = vmul.f32 %v2574, %v2585
      %v2594 = vadd.f32 %v2531, %v2586
      %v2595 = vadd.f32 %v2532, %v2587
      %v2596 = vadd.f32 %v2533, %v2588
      %v2597 = vadd.f32 %v2534, %v2589
      %v2598 = vadd.f32 %v2535, %v2590
      %v2599 = vadd.f32 %v2536, %v2591
      %v2600 = vadd.f32 %v2537, %v2592
      %v2601 = vadd.f32 %v2538, %v2593
      %v2602 = vld [vmem:[%s1 + $0xc] sm:$0x1]
      %v2603 = vlaneseq
      %v2604 = vshrl.u32 %v2603, 7
      %v2605 = vsub.s32 0, %v2604
      %v2606 = vrot.slane %v2602, %v2605
      %v2607 = vmul.f32 %v2568, %v2606
      %v2608 = vmul.f32 %v2569, %v2606
      %v2609 = vmul.f32 %v2570, %v2606
      %v2610 = vmul.f32 %v2571, %v2606
      %v2611 = vmul.f32 %v2572, %v2606
      %v2612 = vmul.f32 %v2573, %v2606
      %v2613 = vmul.f32 %v2574, %v2606
      %v2614 = vmul.f32 %v2575, %v2606
      %v2615 = vadd.f32 %v2594, %v2607
      %v2616 = vadd.f32 %v2595, %v2608
      %v2617 = vadd.f32 %v2596, %v2609
      %v2618 = vadd.f32 %v2597, %v2610
      %v2619 = vadd.f32 %v2598, %v2611
      %v2620 = vadd.f32 %v2599, %v2612
      %v2621 = vadd.f32 %v2600, %v2613
      %v2622 = vadd.f32 %v2601, %v2614
      %v2623 = vld [vmem:[%s1 + $0x13] sm:$0x1]
      %v2624 = vlaneseq
      %v2625 = vshrl.u32 %v2624, 7
      %v2626 = vsub.s32 0, %v2625
      %v2627 = vrot.slane %v2623, %v2626
      %v2628 = vmul.f32 %v2569, %v2627
      %v2629 = vmul.f32 %v2570, %v2627
      %v2630 = vmul.f32 %v2571, %v2627
      %v2631 = vmul.f32 %v2572, %v2627
      %v2632 = vmul.f32 %v2573, %v2627
      %v2633 = vmul.f32 %v2574, %v2627
      %v2634 = vmul.f32 %v2575, %v2627
      %v2635 = vmul.f32 %v2576, %v2627
      %v2636 = vadd.f32 %v2615, %v2628
      %v2637 = vadd.f32 %v2616, %v2629
      %v2638 = vadd.f32 %v2617, %v2630
      %v2639 = vadd.f32 %v2618, %v2631
      %v2640 = vadd.f32 %v2619, %v2632
      %v2641 = vadd.f32 %v2620, %v2633
      %v2642 = vadd.f32 %v2621, %v2634
      %v2643 = vadd.f32 %v2622, %v2635
      %v2644 = vld [vmem:[%s1 + $0x1a] sm:$0x1]
      %v2645 = vlaneseq
      %v2646 = vshrl.u32 %v2645, 7
      %v2647 = vsub.s32 0, %v2646
      %v2648 = vrot.slane %v2644, %v2647
      %v2649 = vmul.f32 %v2570, %v2648
      %v2650 = vmul.f32 %v2571, %v2648
      %v2651 = vmul.f32 %v2572, %v2648
      %v2652 = vmul.f32 %v2573, %v2648
      %v2653 = vmul.f32 %v2574, %v2648
      %v2654 = vmul.f32 %v2575, %v2648
      %v2655 = vmul.f32 %v2576, %v2648
      %v2656 = vmul.f32 %v2577, %v2648
      %v2657 = vadd.f32 %v2636, %v2649
      %v2658 = vadd.f32 %v2637, %v2650
      %v2659 = vadd.f32 %v2638, %v2651
      %v2660 = vadd.f32 %v2639, %v2652
      %v2661 = vadd.f32 %v2640, %v2653
      %v2662 = vadd.f32 %v2641, %v2654
      %v2663 = vadd.f32 %v2642, %v2655
      %v2664 = vadd.f32 %v2643, %v2656
      %v2665 = vld [vmem:[%s1 + $0x21] sm:$0x1]
      %v2666 = vlaneseq
      %v2667 = vshrl.u32 %v2666, 7
      %v2668 = vsub.s32 0, %v2667
      %v2669 = vrot.slane %v2665, %v2668
      %v2670 = vmul.f32 %v2571, %v2669
      %v2671 = vmul.f32 %v2572, %v2669
      %v2672 = vmul.f32 %v2573, %v2669
      %v2673 = vmul.f32 %v2574, %v2669
      %v2674 = vmul.f32 %v2575, %v2669
      %v2675 = vmul.f32 %v2576, %v2669
      %v2676 = vmul.f32 %v2577, %v2669
      %v2677 = vmul.f32 %v2578, %v2669
      %v2678 = vadd.f32 %v2657, %v2670
      %v2679 = vadd.f32 %v2658, %v2671
      %v2680 = vadd.f32 %v2659, %v2672
      %v2681 = vadd.f32 %v2660, %v2673
      %v2682 = vadd.f32 %v2661, %v2674
      %v2683 = vadd.f32 %v2662, %v2675
      %v2684 = vadd.f32 %v2663, %v2676
      %v2685 = vadd.f32 %v2664, %v2677
      %v2686 = vld [vmem:[%s1 + $0x28] sm:$0x1]
      %v2687 = vlaneseq
      %v2688 = vshrl.u32 %v2687, 7
      %v2689 = vsub.s32 0, %v2688
      %v2690 = vrot.slane %v2686, %v2689
      %v2691 = vmul.f32 %v2572, %v2690
      %v2692 = vmul.f32 %v2573, %v2690
      %v2693 = vmul.f32 %v2574, %v2690
      %v2694 = vmul.f32 %v2575, %v2690
      %v2695 = vmul.f32 %v2576, %v2690
      %v2696 = vmul.f32 %v2577, %v2690
      %v2697 = vmul.f32 %v2578, %v2690
      %v2698 = vmul.f32 %v2579, %v2690
      %v2699 = vadd.f32 %v2678, %v2691
      %v2700 = vadd.f32 %v2679, %v2692
      %v2701 = vadd.f32 %v2680, %v2693
      %v2702 = vadd.f32 %v2681, %v2694
      %v2703 = vadd.f32 %v2682, %v2695
      %v2704 = vadd.f32 %v2683, %v2696
      %v2705 = vadd.f32 %v2684, %v2697
      %v2706 = vadd.f32 %v2685, %v2698
      %v2707 = vld [vmem:[%s1 + $0x2f] sm:$0x1]
      %v2708 = vlaneseq
      %v2709 = vshrl.u32 %v2708, 7
      %v2710 = vsub.s32 0, %v2709
      %v2711 = vrot.slane %v2707, %v2710
      %v2712 = vmul.f32 %v2573, %v2711
      %v2713 = vmul.f32 %v2574, %v2711
      %v2714 = vmul.f32 %v2575, %v2711
      %v2715 = vmul.f32 %v2576, %v2711
      %v2716 = vmul.f32 %v2577, %v2711
      %v2717 = vmul.f32 %v2578, %v2711
      %v2718 = vmul.f32 %v2579, %v2711
      %v2719 = vmul.f32 %v2580, %v2711
      %v2720 = vadd.f32 %v2699, %v2712
      %v2721 = vadd.f32 %v2700, %v2713
      %v2722 = vadd.f32 %v2701, %v2714
      %v2723 = vadd.f32 %v2702, %v2715
      %v2724 = vadd.f32 %v2703, %v2716
      %v2725 = vadd.f32 %v2704, %v2717
      %v2726 = vadd.f32 %v2705, %v2718
      %v2727 = vadd.f32 %v2706, %v2719
      %v2728 = vrot.slane %v1595, 3
      %v2729 = vrot.slane %v1598, 3
      %v2730 = vrot.slane %v1601, 3
      %v2731 = vrot.slane %v1604, 3
      %v2732 = vrot.slane %v1607, 3
      %v2733 = vrot.slane %v1610, 3
      %v2734 = vrot.slane %v1613, 3
      %v2735 = vrot.slane %v1616, 3
      %v2736 = vrot.slane %v1619, 3
      %v2737 = vrot.slane %v1622, 3
      %v2738 = vrot.slane %v1625, 3
      %v2739 = vrot.slane %v1628, 3
      %v2740 = vrot.slane %v1631, 3
      %v2741 = vrot.slane %v1634, 3
      %v2742 = vrot.slane %v1596, 3
      %v2743 = vrot.slane %v1599, 3
      %v2744 = vrot.slane %v1602, 3
      %v2745 = vrot.slane %v1605, 3
      %v2746 = vrot.slane %v1608, 3
      %v2747 = vrot.slane %v1611, 3
      %v2748 = vrot.slane %v1614, 3
      %v2749 = vrot.slane %v1617, 3
      %v2750 = vrot.slane %v1620, 3
      %v2751 = vrot.slane %v1623, 3
      %v2752 = vrot.slane %v1626, 3
      %v2753 = vrot.slane %v1629, 3
      %v2754 = vrot.slane %v1632, 3
      %v2755 = vrot.slane %v1635, 3
      %v2756 = vsel %vm1407, %v2728, %v2742
      %v2757 = vsel %vm1407, %v2729, %v2743
      %v2758 = vsel %vm1407, %v2730, %v2744
      %v2759 = vsel %vm1407, %v2731, %v2745
      %v2760 = vsel %vm1407, %v2732, %v2746
      %v2761 = vsel %vm1407, %v2733, %v2747
      %v2762 = vsel %vm1407, %v2734, %v2748
      %v2763 = vsel %vm1407, %v2735, %v2749
      %v2764 = vsel %vm1407, %v2736, %v2750
      %v2765 = vsel %vm1407, %v2737, %v2751
      %v2766 = vsel %vm1407, %v2738, %v2752
      %v2767 = vsel %vm1407, %v2739, %v2753
      %v2768 = vsel %vm1407, %v2740, %v2754
      %v2769 = vsel %vm1407, %v2741, %v2755
      %v2770 = vld [vmem:[%s1 + $0x6] sm:$0x1]
      %v2771 = vlaneseq
      %v2772 = vshrl.u32 %v2771, 7
      %v2773 = vsub.s32 0, %v2772
      %v2774 = vrot.slane %v2770, %v2773
      %v2775 = vmul.f32 %v2756, %v2774
      %v2776 = vmul.f32 %v2757, %v2774
      %v2777 = vmul.f32 %v2758, %v2774
      %v2778 = vmul.f32 %v2759, %v2774
      %v2779 = vmul.f32 %v2760, %v2774
      %v2780 = vmul.f32 %v2761, %v2774
      %v2781 = vmul.f32 %v2762, %v2774
      %v2782 = vmul.f32 %v2763, %v2774
      %v2783 = vadd.f32 %v2720, %v2775
      %v2784 = vadd.f32 %v2721, %v2776
      %v2785 = vadd.f32 %v2722, %v2777
      %v2786 = vadd.f32 %v2723, %v2778
      %v2787 = vadd.f32 %v2724, %v2779
      %v2788 = vadd.f32 %v2725, %v2780
      %v2789 = vadd.f32 %v2726, %v2781
      %v2790 = vadd.f32 %v2727, %v2782
      %v2791 = vld [vmem:[%s1 + $0xd] sm:$0x1]
      %v2792 = vlaneseq
      %v2793 = vshrl.u32 %v2792, 7
      %v2794 = vsub.s32 0, %v2793
      %v2795 = vrot.slane %v2791, %v2794
      %v2796 = vmul.f32 %v2757, %v2795
      %v2797 = vmul.f32 %v2758, %v2795
      %v2798 = vmul.f32 %v2759, %v2795
      %v2799 = vmul.f32 %v2760, %v2795
      %v2800 = vmul.f32 %v2761, %v2795
      %v2801 = vmul.f32 %v2762, %v2795
      %v2802 = vmul.f32 %v2763, %v2795
      %v2803 = vmul.f32 %v2764, %v2795
      %v2804 = vadd.f32 %v2783, %v2796
      %v2805 = vadd.f32 %v2784, %v2797
      %v2806 = vadd.f32 %v2785, %v2798
      %v2807 = vadd.f32 %v2786, %v2799
      %v2808 = vadd.f32 %v2787, %v2800
      %v2809 = vadd.f32 %v2788, %v2801
      %v2810 = vadd.f32 %v2789, %v2802
      %v2811 = vadd.f32 %v2790, %v2803
      %v2812 = vld [vmem:[%s1 + $0x14] sm:$0x1]
      %v2813 = vlaneseq
      %v2814 = vshrl.u32 %v2813, 7
      %v2815 = vsub.s32 0, %v2814
      %v2816 = vrot.slane %v2812, %v2815
      %v2817 = vmul.f32 %v2758, %v2816
      %v2818 = vmul.f32 %v2759, %v2816
      %v2819 = vmul.f32 %v2760, %v2816
      %v2820 = vmul.f32 %v2761, %v2816
      %v2821 = vmul.f32 %v2762, %v2816
      %v2822 = vmul.f32 %v2763, %v2816
      %v2823 = vmul.f32 %v2764, %v2816
      %v2824 = vmul.f32 %v2765, %v2816
      %v2825 = vadd.f32 %v2804, %v2817
      %v2826 = vadd.f32 %v2805, %v2818
      %v2827 = vadd.f32 %v2806, %v2819
      %v2828 = vadd.f32 %v2807, %v2820
      %v2829 = vadd.f32 %v2808, %v2821
      %v2830 = vadd.f32 %v2809, %v2822
      %v2831 = vadd.f32 %v2810, %v2823
      %v2832 = vadd.f32 %v2811, %v2824
      %v2833 = vld [vmem:[%s1 + $0x1b] sm:$0x1]
      %v2834 = vlaneseq
      %v2835 = vshrl.u32 %v2834, 7
      %v2836 = vsub.s32 0, %v2835
      %v2837 = vrot.slane %v2833, %v2836
      %v2838 = vmul.f32 %v2759, %v2837
      %v2839 = vmul.f32 %v2760, %v2837
      %v2840 = vmul.f32 %v2761, %v2837
      %v2841 = vmul.f32 %v2762, %v2837
      %v2842 = vmul.f32 %v2763, %v2837
      %v2843 = vmul.f32 %v2764, %v2837
      %v2844 = vmul.f32 %v2765, %v2837
      %v2845 = vmul.f32 %v2766, %v2837
      %v2846 = vadd.f32 %v2825, %v2838
      %v2847 = vadd.f32 %v2826, %v2839
      %v2848 = vadd.f32 %v2827, %v2840
      %v2849 = vadd.f32 %v2828, %v2841
      %v2850 = vadd.f32 %v2829, %v2842
      %v2851 = vadd.f32 %v2830, %v2843
      %v2852 = vadd.f32 %v2831, %v2844
      %v2853 = vadd.f32 %v2832, %v2845
      %v2854 = vld [vmem:[%s1 + $0x22] sm:$0x1]
      %v2855 = vlaneseq
      %v2856 = vshrl.u32 %v2855, 7
      %v2857 = vsub.s32 0, %v2856
      %v2858 = vrot.slane %v2854, %v2857
      %v2859 = vmul.f32 %v2760, %v2858
      %v2860 = vmul.f32 %v2761, %v2858
      %v2861 = vmul.f32 %v2762, %v2858
      %v2862 = vmul.f32 %v2763, %v2858
      %v2863 = vmul.f32 %v2764, %v2858
      %v2864 = vmul.f32 %v2765, %v2858
      %v2865 = vmul.f32 %v2766, %v2858
      %v2866 = vmul.f32 %v2767, %v2858
      %v2867 = vadd.f32 %v2846, %v2859
      %v2868 = vadd.f32 %v2847, %v2860
      %v2869 = vadd.f32 %v2848, %v2861
      %v2870 = vadd.f32 %v2849, %v2862
      %v2871 = vadd.f32 %v2850, %v2863
      %v2872 = vadd.f32 %v2851, %v2864
      %v2873 = vadd.f32 %v2852, %v2865
      %v2874 = vadd.f32 %v2853, %v2866
      %v2875 = vld [vmem:[%s1 + $0x29] sm:$0x1]
      %v2876 = vlaneseq
      %v2877 = vshrl.u32 %v2876, 7
      %v2878 = vsub.s32 0, %v2877
      %v2879 = vrot.slane %v2875, %v2878
      %v2880 = vmul.f32 %v2761, %v2879
      %v2881 = vmul.f32 %v2762, %v2879
      %v2882 = vmul.f32 %v2763, %v2879
      %v2883 = vmul.f32 %v2764, %v2879
      %v2884 = vmul.f32 %v2765, %v2879
      %v2885 = vmul.f32 %v2766, %v2879
      %v2886 = vmul.f32 %v2767, %v2879
      %v2887 = vmul.f32 %v2768, %v2879
      %v2888 = vadd.f32 %v2867, %v2880
      %v2889 = vadd.f32 %v2868, %v2881
      %v2890 = vadd.f32 %v2869, %v2882
      %v2891 = vadd.f32 %v2870, %v2883
      %v2892 = vadd.f32 %v2871, %v2884
      %v2893 = vadd.f32 %v2872, %v2885
      %v2894 = vadd.f32 %v2873, %v2886
      %v2895 = vadd.f32 %v2874, %v2887
      %v2896 = vld [vmem:[%s1 + $0x30] sm:$0x1]
      %v2897 = vlaneseq
      %v2898 = vshrl.u32 %v2897, 7
      %v2899 = vsub.s32 0, %v2898
      %v2900 = vrot.slane %v2896, %v2899
      %v2901 = vmul.f32 %v2762, %v2900
      %v2902 = vmul.f32 %v2763, %v2900
      %v2903 = vmul.f32 %v2764, %v2900
      %v2904 = vmul.f32 %v2765, %v2900
      %v2905 = vmul.f32 %v2766, %v2900
      %v2906 = vmul.f32 %v2767, %v2900
      %v2907 = vmul.f32 %v2768, %v2900
      %v2908 = vmul.f32 %v2769, %v2900
      %v2909 = vadd.f32 %v2888, %v2901
      %v2910 = vadd.f32 %v2889, %v2902
      %v2911 = vadd.f32 %v2890, %v2903
      %v2912 = vadd.f32 %v2891, %v2904
      %v2913 = vadd.f32 %v2892, %v2905
      %v2914 = vadd.f32 %v2893, %v2906
      %v2915 = vadd.f32 %v2894, %v2907
      %v2916 = vadd.f32 %v2895, %v2908
      %s2917 = scalar_lea.vmem %s177, 64
      %2918 = vst [vmem:[%s2917] sm:$0xff] %v2909
      %2919 = vst [vmem:[%s2917 + $0x8] sm:$0xff] %v2910
      %2920 = vst [vmem:[%s2917 + $0x10] sm:$0xff] %v2911
      %2921 = vst [vmem:[%s2917 + $0x18] sm:$0xff] %v2912
      %2922 = vst [vmem:[%s2917 + $0x20] sm:$0xff] %v2913
      %2923 = vst [vmem:[%s2917 + $0x28] sm:$0xff] %v2914
      %2924 = vst [vmem:[%s2917 + $0x30] sm:$0xff] %v2915
      %2925 = vst [vmem:[%s2917 + $0x38] sm:$0xff] %v2916
      %s2926 = smul.u32 2, %s14
      %p2927 = scmp.lt.s32.totalorder %s2926, 3
      %s2928 = scalar_select %p2927, %s2926, 3
      %s2929 = smul.addr %s2928, 8
      %s2930 = smul.addr %s2929, 8
      %s2931 = scalar_lea.vmem %s3, %s2930
      // Predicated region
      $region33: #{ppeg_forward.1} parent=31 // pred_check
        %p2932 = pneg %p100
      $region34: #{ppeg_forward.1} parent=31 // pred_check_branch
        %2934 = sbr.rel (%p2932) target = $region36
      $region35: #{ppeg_forward.1} parent=31 // pred_region
        %s2935 = smul.u32 2, %s14
      $region36: #{ppeg_forward.1} parent=31 // pred_fallthru
        _
    $region32: #{ppeg_forward.1} parent=5 // pred_fallthru
      _
    %p2936 = scmp.le.s32.totalorder 2, %s9
    // Predicated region
    $region37: #{ppeg_forward.1} parent=5 // pred_check
      %p2937 = pneg %p2936
    $region38: #{ppeg_forward.1} parent=5 // pred_check_branch
      %2939 = sbr.rel (%p2937) target = $region40
    $region39: #{ppeg_forward.1} parent=5 // pred_region
      %s2940 = ssub.s32 %s9, 2
      // Predicated region
      $region41: #{ppeg_forward.1} parent=39 // pred_check
        %p2941 = pneg %p106
      $region42: #{ppeg_forward.1} parent=39 // pred_check_branch
        %2943 = sbr.rel (%p2941) target = $region44
      $region43: #{ppeg_forward.1} parent=39 // pred_region
        %s2944 = smul.u32 2, %s15
        %p2945 = scmp.lt.s32.totalorder %s2944, 3
        %s2946 = scalar_select %p2945, %s2944, 3
        %s2947 = smul.addr %s2946, 8
        %s2948 = smul.addr %s2947, 8
        %s2949 = scalar_lea.vmem %s3, %s2948
      $region44: #{ppeg_forward.1} parent=39 // pred_fallthru
        _
    $region40: #{ppeg_forward.1} parent=5 // pred_fallthru
      _
  $region6: #{ppeg_forward.1} parent=0 // loop_footer
    %s13 = sadd.s32 1, %s9
  $region7: #{ppeg_forward.1} parent=0 // loop_footer_branch
    %8 = sbr.rel target = $region3
  $region8: #{ppeg_forward.1} parent=0 // loop_exit
    _

</llo_original>
